<compile_context>
chip_gen: v5e
topology: v5e:2x2
jax: 0.10.0
libtpu: 0.0.40
codegen_flags: <defaults>
</compile_context>

<pallas_src>
import jax
import jax.numpy as jnp
import numpy as np
from jax.experimental import pallas as pl
from jax.experimental.pallas import tpu as pltpu

NEG_SLOPE = 0.01   # nn.LeakyReLU default
BN_EPS = 1e-5      # nn.BatchNorm2d default
LANE = 128
N_CLASSES = 10


# ---------------------------------------------------------------------------
# The single fused Pallas kernel
# ---------------------------------------------------------------------------
def _fused_encoder_kernel(
    x_ref,
    t1_ref, l1b_ref, l1g_ref, l1bt_ref, l1m_ref, l1s_ref, l1st_ref,
    t2_ref, l2b_ref, l2g_ref, l2bt_ref, l2m_ref, l2s_ref, l2st_ref,
    t3_ref, l3b_ref, l3g_ref, l3bt_ref, l3m_ref, l3s_ref, l3st_ref,
    w1_ref, b1_ref, w2_ref, b2_ref,
    o_ref,
):
    """Whole encoder: 3x (conv-as-GEMM + BN(batch stats) + LeakyReLU) + 2 FC."""

    def conv_bn_lrelu(a, t_ref, blane_ref, g_ref, bt_ref, m_ref, s_ref, st_ref):
        # Conv2d(3x3, s=2, p=1) as one lane-dense GEMM against the precomputed
        # Toeplitz matrix (patch gather + spatial zero-padding baked in).
        y = jnp.dot(a, t_ref[...], preferred_element_type=jnp.float32)
        y = y + blane_ref[...]                                    # conv bias
        # BatchNorm2d training mode: per-channel stats over (batch, H, W).
        # s_ref: (F, 128) one-hot lane->channel segment matrix.
        ch_sum = jnp.sum(
            jnp.dot(y, s_ref[...], preferred_element_type=jnp.float32),
            axis=0, keepdims=True)                                # (1, 128)
        ch_sqsum = jnp.sum(
            jnp.dot(y * y, s_ref[...], preferred_element_type=jnp.float32),
            axis=0, keepdims=True)                                # (1, 128)
        inv_count = m_ref[...] * (1.0 / y.shape[0])               # mask / (N*H*W)
        mean = ch_sum * inv_count
        var = jnp.maximum(ch_sqsum * inv_count - mean * mean, 0.0)  # biased var
        scale = g_ref[...] * jax.lax.rsqrt(var + BN_EPS)          # gamma/std
        shift = bt_ref[...] - mean * scale                        # beta - mean*scale
        # Expand per-channel scale/shift back to lane space (st_ref: 128 x F)
        # and apply as a single FMA, then LeakyReLU.
        rows = jnp.zeros((y.shape[0], LANE), jnp.float32)
        scale_l = jnp.dot(rows + scale, st_ref[...],
                          preferred_element_type=jnp.float32)     # (N, F)
        shift_l = jnp.dot(rows + shift, st_ref[...],
                          preferred_element_type=jnp.float32)     # (N, F)
        y = y * scale_l + shift_l
        return jnp.where(y > 0.0, y, NEG_SLOPE * y)

    a = x_ref[...]
    a = conv_bn_lrelu(a, t1_ref, l1b_ref, l1g_ref, l1bt_ref, l1m_ref, l1s_ref, l1st_ref)
    a = conv_bn_lrelu(a, t2_ref, l2b_ref, l2g_ref, l2bt_ref, l2m_ref, l2s_ref, l2st_ref)
    a = conv_bn_lrelu(a, t3_ref, l3b_ref, l3g_ref, l3bt_ref, l3m_ref, l3s_ref, l3st_ref)
    # Flatten is implicit: layer-3 lanes are already in PyTorch (c, h, w) order.
    h = jnp.dot(a, w1_ref[...], preferred_element_type=jnp.float32) + b1_ref[...]
    o_ref[...] = jnp.dot(h, w2_ref[...], preferred_element_type=jnp.float32) + b2_ref[...]


# ---------------------------------------------------------------------------
# Host-side operand packing (pure functions of the weights; done once)
# ---------------------------------------------------------------------------
def _rup(n, m=LANE):
    return ((n + m - 1) // m) * m


def _conv_toeplitz(w, hin, win, stride=2, pad=1):
    """Dense (Cin*Hin*Win, Cout*Hout*Wout) matrix equivalent to
    Conv2d(k=3, stride=2, padding=1) on channel-major/row-major flattened
    feature vectors (spatial zero-padding handled by dropped taps)."""
    cout, cin, ksz_h, ksz_w = w.shape
    hout = (hin + 2 * pad - ksz_h) // stride + 1
    wout = (win + 2 * pad - ksz_w) // stride + 1
    t = np.zeros((cin * hin * win, cout * hout * wout), np.float32)
    ho = np.arange(hout)
    wo = np.arange(wout)
    for kh in range(ksz_h):
        hi = stride * ho + kh - pad
        hm = (hi >= 0) & (hi < hin)
        for kw in range(ksz_w):
            wi = stride * wo + kw - pad
            wm = (wi >= 0) & (wi < win)
            fin_sp = (hi[hm][:, None] * win + wi[wm][None, :]).ravel()
            fout_sp = (ho[hm][:, None] * wout + wo[wm][None, :]).ravel()
            for co in range(cout):
                for ci in range(cin):
                    t[ci * hin * win + fin_sp,
                      co * hout * wout + fout_sp] += w[co, ci, kh, kw]
    return t, hout, wout


def _pack_conv_layer(w, b, gamma, beta, hin, win):
    """Build 128-lane-padded operands for one conv+BN+LReLU layer."""
    w = np.asarray(w, np.float32)
    b = np.asarray(b, np.float32)
    gamma = np.asarray(gamma, np.float32)
    beta = np.asarray(beta, np.float32)
    cout, cin = w.shape[0], w.shape[1]

    t, hout, wout = _conv_toeplitz(w, hin, win)
    s_out = hout * wout
    f_in_pad = _rup(cin * hin * win)
    f_out_pad = _rup(cout * s_out)

    t_pad = np.zeros((f_in_pad, f_out_pad), np.float32)
    t_pad[: cin * hin * win, : cout * s_out] = t

    blane = np.zeros((1, f_out_pad), np.float32)        # per-lane conv bias
    blane[0, : cout * s_out] = np.repeat(b, s_out)

    g = np.zeros((1, LANE), np.float32); g[0, :cout] = gamma
    bt = np.zeros((1, LANE), np.float32); bt[0, :cout] = beta
    md = np.zeros((1, LANE), np.float32); md[0, :cout] = 1.0 / s_out  # 1/(H*W)

    seg = np.zeros((f_out_pad, LANE), np.float32)       # lane -> channel one-hot
    for c in range(cout):
        seg[c * s_out:(c + 1) * s_out, c] = 1.0
    segt = np.ascontiguousarray(seg.T)

    ops = [jnp.asarray(v) for v in (t_pad, blane, g, bt, md, seg, segt)]
    return ops, hout, wout


def pack_operands(params):
    """Turn PyTorch-style params into the flat list of fused-kernel operands."""
    ops = []
    sp_h = sp_w = 28
    for name in ("conv1", "conv2", "conv3"):
        layer_ops, sp_h, sp_w = _pack_conv_layer(*params[name], hin=sp_h, win=sp_w)
        ops.extend(layer_ops)

    w1, b1 = params["fc1"]                  # (256, 64), (64,) -- already (in,out)
    w2, b2 = params["fc2"]                  # (64, 10), (10,)
    w1 = np.asarray(w1, np.float32); b1 = np.asarray(b1, np.float32)
    w2 = np.asarray(w2, np.float32); b2 = np.asarray(b2, np.float32)

    w1p = np.zeros((_rup(w1.shape[0]), _rup(w1.shape[1])), np.float32)
    w1p[: w1.shape[0], : w1.shape[1]] = w1
    b1p = np.zeros((1, w1p.shape[1]), np.float32); b1p[0, : b1.shape[0]] = b1
    w2p = np.zeros((_rup(w2.shape[0]), _rup(w2.shape[1])), np.float32)
    w2p[: w2.shape[0], : w2.shape[1]] = w2
    b2p = np.zeros((1, w2p.shape[1]), np.float32); b2p[0, : b2.shape[0]] = b2

    ops.extend(jnp.asarray(v) for v in (w1p, b1p, w2p, b2p))
    return ops


# ---------------------------------------------------------------------------
# pallas_call wrapper (single fused call, full-array VMEM blocks, grid=(1,))
# ---------------------------------------------------------------------------
def _full_spec(shape):
    return pl.BlockSpec(shape, lambda i: (0,) * len(shape))


def auto_edcoder_forward(x_nchw, operands):
    n = x_nchw.shape[0]
    feat = x_nchw.shape[1] * x_nchw.shape[2] * x_nchw.shape[3]
    x2d = x_nchw.reshape(n, feat)                       # NCHW flatten: (c,h,w) order
    f_in_pad = operands[0].shape[0]                     # rows of Toeplitz-1 (= 896)
    x_pad = jnp.pad(x2d, ((0, 0), (0, f_in_pad - feat)))

    args = [x_pad] + list(operands)
    out_width = operands[-2].shape[1]                   # padded FC2 out width (128)

    # TODO(synk): for large batches, tile the row (batch) dim over a parallel
    # grid axis with a two-pass BN (stats accumulate + normalize) so v7x's
    # second TensorCore is used and VMEM stays bounded.
    out_pad = pl.pallas_call(
        _fused_encoder_kernel,
        out_shape=jax.ShapeDtypeStruct((n, out_width), jnp.float32),
        grid=(1,),
        in_specs=[_full_spec(a.shape) for a in args],
        out_specs=_full_spec((n, out_width)),
        compiler_params=pltpu.CompilerParams(
            dimension_semantics=("arbitrary",),
            vmem_limit_bytes=32 * 1024 * 1024),
    )(*args)
    return out_pad[:, :N_CLASSES]


# ---------------------------------------------------------------------------
# Deterministic parameter initialization (synthetic; no checkpoint load)
# ---------------------------------------------------------------------------
def init_params(key):
    keys = jax.random.split(key, 10)

    def uinit(k, shape, fan_in):
        bound = 1.0 / jnp.sqrt(jnp.float32(fan_in))
        return jax.random.uniform(k, shape, jnp.float32, -bound, bound)

    def conv_params(k1, k2, cout, cin):
        fan_in = cin * 9
        w = uinit(k1, (cout, cin, 3, 3), fan_in)
        b = uinit(k2, (cout,), fan_in)
        gamma = jnp.ones((cout,), jnp.float32)          # BN affine init
        beta = jnp.zeros((cout,), jnp.float32)
        return (w, b, gamma, beta)

    return {
        "conv1": conv_params(keys[0], keys[1], 3, 1),
        "conv2": conv_params(keys[2], keys[3], 9, 3),
        "conv3": conv_params(keys[4], keys[5], 16, 9),
        "fc1": (uinit(keys[6], (256, 64), 256), uinit(keys[7], (64,), 256)),
        "fc2": (uinit(keys[8], (64, 10), 64), uinit(keys[9], (10,), 64)),
    }


# ---------------------------------------------------------------------------
# Pure-JAX reference (mirrors the PyTorch module, training-mode BN)
# ---------------------------------------------------------------------------
def _reference_forward(x, params):
    hp = jax.lax.Precision.HIGHEST

    def conv_bn_lrelu(h, w, b, gamma, beta):
        y = jax.lax.conv_general_dilated(
            h, w, window_strides=(2, 2), padding=((1, 1), (1, 1)),
            dimension_numbers=("NCHW", "OIHW", "NCHW"), precision=hp)
        y = y + b.reshape(1, -1, 1, 1)
        mean = jnp.mean(y, axis=(0, 2, 3), keepdims=True)
        var = jnp.mean((y - mean) ** 2, axis=(0, 2, 3), keepdims=True)
        y = (y - mean) * jax.lax.rsqrt(var + BN_EPS)
        y = y * gamma.reshape(1, -1, 1, 1) + beta.reshape(1, -1, 1, 1)
        return jnp.where(y > 0, y, NEG_SLOPE * y)

    h = conv_bn_lrelu(x, *params["conv1"])
    h = conv_bn_lrelu(h, *params["conv2"])
    h = conv_bn_lrelu(h, *params["conv3"])
    flat = h.reshape(h.shape[0], -1)
    w1, b1 = params["fc1"]
    w2, b2 = params["fc2"]
    h1 = jnp.dot(flat, w1, precision=hp) + b1
    return jnp.dot(h1, w2, precision=hp) + b2


if __name__ == "__main__":
    key = jax.random.PRNGKey(0)
    k_x, k_p = jax.random.split(key)
    x = jax.random.normal(k_x, (2, 1, 28, 28), jnp.float32)   # NCHW, like PyTorch
    params = init_params(k_p)

    operands = pack_operands(params)
    fwd = jax.jit(auto_edcoder_forward)
    code = jax.block_until_ready(fwd(x, operands))
    assert code.shape == (2, N_CLASSES), code.shape

    # Numerical self-check against a pure-JAX reference of the PyTorch module.
    ref = jax.block_until_ready(_reference_forward(x, params))
    max_err = float(jnp.max(jnp.abs(code - ref)))
    assert max_err < 5e-3, f"kernel mismatch vs reference: {max_err}"

    print("KERNEL_OK")
</pallas_src>

<mosaic_0001>
module attributes {stable_mosaic.version = 11 : i64} {
  func.func @_fused_encoder_kernel(%arg0: i32, %arg1: memref<2x896xf32, #tpu.memory_space<vmem>>, %arg2: memref<896x640xf32, #tpu.memory_space<vmem>>, %arg3: memref<1x640xf32, #tpu.memory_space<vmem>>, %arg4: memref<1x128xf32, #tpu.memory_space<vmem>>, %arg5: memref<1x128xf32, #tpu.memory_space<vmem>>, %arg6: memref<1x128xf32, #tpu.memory_space<vmem>>, %arg7: memref<640x128xf32, #tpu.memory_space<vmem>>, %arg8: memref<128x640xf32, #tpu.memory_space<vmem>>, %arg9: memref<640x512xf32, #tpu.memory_space<vmem>>, %arg10: memref<1x512xf32, #tpu.memory_space<vmem>>, %arg11: memref<1x128xf32, #tpu.memory_space<vmem>>, %arg12: memref<1x128xf32, #tpu.memory_space<vmem>>, %arg13: memref<1x128xf32, #tpu.memory_space<vmem>>, %arg14: memref<512x128xf32, #tpu.memory_space<vmem>>, %arg15: memref<128x512xf32, #tpu.memory_space<vmem>>, %arg16: memref<512x256xf32, #tpu.memory_space<vmem>>, %arg17: memref<1x256xf32, #tpu.memory_space<vmem>>, %arg18: memref<1x128xf32, #tpu.memory_space<vmem>>, %arg19: memref<1x128xf32, #tpu.memory_space<vmem>>, %arg20: memref<1x128xf32, #tpu.memory_space<vmem>>, %arg21: memref<256x128xf32, #tpu.memory_space<vmem>>, %arg22: memref<128x256xf32, #tpu.memory_space<vmem>>, %arg23: memref<256x128xf32, #tpu.memory_space<vmem>>, %arg24: memref<1x128xf32, #tpu.memory_space<vmem>>, %arg25: memref<128x128xf32, #tpu.memory_space<vmem>>, %arg26: memref<1x128xf32, #tpu.memory_space<vmem>>, %arg27: memref<2x128xf32, #tpu.memory_space<vmem>>) attributes {dimension_semantics = [#tpu.dimension_semantics<arbitrary>], iteration_bounds = array<i64: 1>, scalar_prefetch = 0 : i64, scratch_operands = 0 : i64, tpu.core_type = #tpu.core_type<tc>, window_params = [{pipeline_mode = #tpu.pipeline_mode<synchronous>, transform_indices = @transform_0, window_bounds = array<i64: 2, 896>}, {pipeline_mode = #tpu.pipeline_mode<synchronous>, transform_indices = @transform_1, window_bounds = array<i64: 896, 640>}, {pipeline_mode = #tpu.pipeline_mode<synchronous>, transform_indices = @transform_2, window_bounds = array<i64: 1, 640>}, {pipeline_mode = #tpu.pipeline_mode<synchronous>, transform_indices = @transform_3, window_bounds = array<i64: 1, 128>}, {pipeline_mode = #tpu.pipeline_mode<synchronous>, transform_indices = @transform_4, window_bounds = array<i64: 1, 128>}, {pipeline_mode = #tpu.pipeline_mode<synchronous>, transform_indices = @transform_5, window_bounds = array<i64: 1, 128>}, {pipeline_mode = #tpu.pipeline_mode<synchronous>, transform_indices = @transform_6, window_bounds = array<i64: 640, 128>}, {pipeline_mode = #tpu.pipeline_mode<synchronous>, transform_indices = @transform_7, window_bounds = array<i64: 128, 640>}, {pipeline_mode = #tpu.pipeline_mode<synchronous>, transform_indices = @transform_8, window_bounds = array<i64: 640, 512>}, {pipeline_mode = #tpu.pipeline_mode<synchronous>, transform_indices = @transform_9, window_bounds = array<i64: 1, 512>}, {pipeline_mode = #tpu.pipeline_mode<synchronous>, transform_indices = @transform_10, window_bounds = array<i64: 1, 128>}, {pipeline_mode = #tpu.pipeline_mode<synchronous>, transform_indices = @transform_11, window_bounds = array<i64: 1, 128>}, {pipeline_mode = #tpu.pipeline_mode<synchronous>, transform_indices = @transform_12, window_bounds = array<i64: 1, 128>}, {pipeline_mode = #tpu.pipeline_mode<synchronous>, transform_indices = @transform_13, window_bounds = array<i64: 512, 128>}, {pipeline_mode = #tpu.pipeline_mode<synchronous>, transform_indices = @transform_14, window_bounds = array<i64: 128, 512>}, {pipeline_mode = #tpu.pipeline_mode<synchronous>, transform_indices = @transform_15, window_bounds = array<i64: 512, 256>}, {pipeline_mode = #tpu.pipeline_mode<synchronous>, transform_indices = @transform_16, window_bounds = array<i64: 1, 256>}, {pipeline_mode = #tpu.pipeline_mode<synchronous>, transform_indices = @transform_17, window_bounds = array<i64: 1, 128>}, {pipeline_mode = #tpu.pipeline_mode<synchronous>, transform_indices = @transform_18, window_bounds = array<i64: 1, 128>}, {pipeline_mode = #tpu.pipeline_mode<synchronous>, transform_indices = @transform_19, window_bounds = array<i64: 1, 128>}, {pipeline_mode = #tpu.pipeline_mode<synchronous>, transform_indices = @transform_20, window_bounds = array<i64: 256, 128>}, {pipeline_mode = #tpu.pipeline_mode<synchronous>, transform_indices = @transform_21, window_bounds = array<i64: 128, 256>}, {pipeline_mode = #tpu.pipeline_mode<synchronous>, transform_indices = @transform_22, window_bounds = array<i64: 256, 128>}, {pipeline_mode = #tpu.pipeline_mode<synchronous>, transform_indices = @transform_23, window_bounds = array<i64: 1, 128>}, {pipeline_mode = #tpu.pipeline_mode<synchronous>, transform_indices = @transform_24, window_bounds = array<i64: 128, 128>}, {pipeline_mode = #tpu.pipeline_mode<synchronous>, transform_indices = @transform_25, window_bounds = array<i64: 1, 128>}, {pipeline_mode = #tpu.pipeline_mode<synchronous>, transform_indices = @transform_26, window_bounds = array<i64: 2, 128>}]} {
    %c0 = arith.constant 0 : index
    %c0_0 = arith.constant 0 : index
    %0 = vector.load %arg1[%c0, %c0_0] : memref<2x896xf32, #tpu.memory_space<vmem>>, vector<2x896xf32>
    %c0_1 = arith.constant 0 : index
    %c0_2 = arith.constant 0 : index
    %1 = vector.load %arg2[%c0_1, %c0_2] : memref<896x640xf32, #tpu.memory_space<vmem>>, vector<896x640xf32>
    %cst = arith.constant dense<0.000000e+00> : vector<2x640xf32>
    %2 = tpu.matmul %0, %1, %cst {dimension_numbers = #tpu.dot_dimension_numbers<[1], [0], [0], [1], [0, 0, 1, 1], [], []>} : vector<2x896xf32>, vector<896x640xf32>, vector<2x640xf32> -> vector<2x640xf32>
    %c0_3 = arith.constant 0 : index
    %c0_4 = arith.constant 0 : index
    %3 = vector.load %arg3[%c0_3, %c0_4] : memref<1x640xf32, #tpu.memory_space<vmem>>, vector<1x640xf32>
    %4 = vector.broadcast %3 : vector<1x640xf32> to vector<2x640xf32>
    %5 = arith.addf %2, %4 : vector<2x640xf32>
    %c0_5 = arith.constant 0 : index
    %c0_6 = arith.constant 0 : index
    %6 = vector.load %arg7[%c0_5, %c0_6] : memref<640x128xf32, #tpu.memory_space<vmem>>, vector<640x128xf32>
    %cst_7 = arith.constant dense<0.000000e+00> : vector<2x128xf32>
    %7 = tpu.matmul %5, %6, %cst_7 {dimension_numbers = #tpu.dot_dimension_numbers<[1], [0], [0], [1], [0, 0, 1, 1], [], []>} : vector<2x640xf32>, vector<640x128xf32>, vector<2x128xf32> -> vector<2x128xf32>
    %cst_8 = arith.constant dense<0.000000e+00> : vector<128xf32>
    %8 = vector.multi_reduction <add>, %7, %cst_8 [0] : vector<2x128xf32> to vector<128xf32>
    %9 = vector.shape_cast %8 : vector<128xf32> to vector<1x128xf32>
    %10 = arith.mulf %5, %5 : vector<2x640xf32>
    %c0_9 = arith.constant 0 : index
    %c0_10 = arith.constant 0 : index
    %11 = vector.load %arg7[%c0_9, %c0_10] : memref<640x128xf32, #tpu.memory_space<vmem>>, vector<640x128xf32>
    %cst_11 = arith.constant dense<0.000000e+00> : vector<2x128xf32>
    %12 = tpu.matmul %10, %11, %cst_11 {dimension_numbers = #tpu.dot_dimension_numbers<[1], [0], [0], [1], [0, 0, 1, 1], [], []>} : vector<2x640xf32>, vector<640x128xf32>, vector<2x128xf32> -> vector<2x128xf32>
    %cst_12 = arith.constant dense<0.000000e+00> : vector<128xf32>
    %13 = vector.multi_reduction <add>, %12, %cst_12 [0] : vector<2x128xf32> to vector<128xf32>
    %14 = vector.shape_cast %13 : vector<128xf32> to vector<1x128xf32>
    %c0_13 = arith.constant 0 : index
    %c0_14 = arith.constant 0 : index
    %15 = vector.load %arg6[%c0_13, %c0_14] : memref<1x128xf32, #tpu.memory_space<vmem>>, vector<1x128xf32>
    %cst_15 = arith.constant 5.000000e-01 : f32
    %16 = vector.broadcast %cst_15 : f32 to vector<1x128xf32>
    %17 = arith.mulf %15, %16 : vector<1x128xf32>
    %18 = arith.mulf %9, %17 : vector<1x128xf32>
    %19 = arith.mulf %14, %17 : vector<1x128xf32>
    %20 = arith.mulf %18, %18 : vector<1x128xf32>
    %21 = arith.subf %19, %20 : vector<1x128xf32>
    %cst_16 = arith.constant 0.000000e+00 : f32
    %22 = vector.broadcast %cst_16 : f32 to vector<1x128xf32>
    %23 = arith.maximumf %21, %22 : vector<1x128xf32>
    %c0_17 = arith.constant 0 : index
    %c0_18 = arith.constant 0 : index
    %24 = vector.load %arg4[%c0_17, %c0_18] : memref<1x128xf32, #tpu.memory_space<vmem>>, vector<1x128xf32>
    %cst_19 = arith.constant 9.99999974E-6 : f32
    %25 = vector.broadcast %cst_19 : f32 to vector<1x128xf32>
    %26 = arith.addf %23, %25 : vector<1x128xf32>
    %27 = math.rsqrt %26 : vector<1x128xf32>
    %28 = arith.mulf %24, %27 : vector<1x128xf32>
    %c0_20 = arith.constant 0 : index
    %c0_21 = arith.constant 0 : index
    %29 = vector.load %arg5[%c0_20, %c0_21] : memref<1x128xf32, #tpu.memory_space<vmem>>, vector<1x128xf32>
    %30 = arith.mulf %18, %28 : vector<1x128xf32>
    %31 = arith.subf %29, %30 : vector<1x128xf32>
    %cst_22 = arith.constant 0.000000e+00 : f32
    %32 = vector.broadcast %cst_22 : f32 to vector<2x128xf32>
    %33 = vector.broadcast %28 : vector<1x128xf32> to vector<2x128xf32>
    %34 = arith.addf %32, %33 : vector<2x128xf32>
    %c0_23 = arith.constant 0 : index
    %c0_24 = arith.constant 0 : index
    %35 = vector.load %arg8[%c0_23, %c0_24] : memref<128x640xf32, #tpu.memory_space<vmem>>, vector<128x640xf32>
    %cst_25 = arith.constant dense<0.000000e+00> : vector<2x640xf32>
    %36 = tpu.matmul %34, %35, %cst_25 {dimension_numbers = #tpu.dot_dimension_numbers<[1], [0], [0], [1], [0, 0, 1, 1], [], []>} : vector<2x128xf32>, vector<128x640xf32>, vector<2x640xf32> -> vector<2x640xf32>
    %37 = vector.broadcast %31 : vector<1x128xf32> to vector<2x128xf32>
    %38 = arith.addf %32, %37 : vector<2x128xf32>
    %c0_26 = arith.constant 0 : index
    %c0_27 = arith.constant 0 : index
    %39 = vector.load %arg8[%c0_26, %c0_27] : memref<128x640xf32, #tpu.memory_space<vmem>>, vector<128x640xf32>
    %cst_28 = arith.constant dense<0.000000e+00> : vector<2x640xf32>
    %40 = tpu.matmul %38, %39, %cst_28 {dimension_numbers = #tpu.dot_dimension_numbers<[1], [0], [0], [1], [0, 0, 1, 1], [], []>} : vector<2x128xf32>, vector<128x640xf32>, vector<2x640xf32> -> vector<2x640xf32>
    %41 = arith.mulf %5, %36 : vector<2x640xf32>
    %42 = arith.addf %41, %40 : vector<2x640xf32>
    %cst_29 = arith.constant 0.000000e+00 : f32
    %43 = vector.broadcast %cst_29 : f32 to vector<2x640xf32>
    %44 = arith.cmpf ogt, %42, %43 : vector<2x640xf32>
    %cst_30 = arith.constant 0.00999999977 : f32
    %45 = vector.broadcast %cst_30 : f32 to vector<2x640xf32>
    %46 = arith.mulf %45, %42 : vector<2x640xf32>
    %47 = arith.select %44, %42, %46 : vector<2x640xi1>, vector<2x640xf32>
    %c0_31 = arith.constant 0 : index
    %c0_32 = arith.constant 0 : index
    %48 = vector.load %arg9[%c0_31, %c0_32] : memref<640x512xf32, #tpu.memory_space<vmem>>, vector<640x512xf32>
    %cst_33 = arith.constant dense<0.000000e+00> : vector<2x512xf32>
    %49 = tpu.matmul %47, %48, %cst_33 {dimension_numbers = #tpu.dot_dimension_numbers<[1], [0], [0], [1], [0, 0, 1, 1], [], []>} : vector<2x640xf32>, vector<640x512xf32>, vector<2x512xf32> -> vector<2x512xf32>
    %c0_34 = arith.constant 0 : index
    %c0_35 = arith.constant 0 : index
    %50 = vector.load %arg10[%c0_34, %c0_35] : memref<1x512xf32, #tpu.memory_space<vmem>>, vector<1x512xf32>
    %51 = vector.broadcast %50 : vector<1x512xf32> to vector<2x512xf32>
    %52 = arith.addf %49, %51 : vector<2x512xf32>
    %c0_36 = arith.constant 0 : index
    %c0_37 = arith.constant 0 : index
    %53 = vector.load %arg14[%c0_36, %c0_37] : memref<512x128xf32, #tpu.memory_space<vmem>>, vector<512x128xf32>
    %cst_38 = arith.constant dense<0.000000e+00> : vector<2x128xf32>
    %54 = tpu.matmul %52, %53, %cst_38 {dimension_numbers = #tpu.dot_dimension_numbers<[1], [0], [0], [1], [0, 0, 1, 1], [], []>} : vector<2x512xf32>, vector<512x128xf32>, vector<2x128xf32> -> vector<2x128xf32>
    %cst_39 = arith.constant dense<0.000000e+00> : vector<128xf32>
    %55 = vector.multi_reduction <add>, %54, %cst_39 [0] : vector<2x128xf32> to vector<128xf32>
    %56 = vector.shape_cast %55 : vector<128xf32> to vector<1x128xf32>
    %57 = arith.mulf %52, %52 : vector<2x512xf32>
    %c0_40 = arith.constant 0 : index
    %c0_41 = arith.constant 0 : index
    %58 = vector.load %arg14[%c0_40, %c0_41] : memref<512x128xf32, #tpu.memory_space<vmem>>, vector<512x128xf32>
    %cst_42 = arith.constant dense<0.000000e+00> : vector<2x128xf32>
    %59 = tpu.matmul %57, %58, %cst_42 {dimension_numbers = #tpu.dot_dimension_numbers<[1], [0], [0], [1], [0, 0, 1, 1], [], []>} : vector<2x512xf32>, vector<512x128xf32>, vector<2x128xf32> -> vector<2x128xf32>
    %cst_43 = arith.constant dense<0.000000e+00> : vector<128xf32>
    %60 = vector.multi_reduction <add>, %59, %cst_43 [0] : vector<2x128xf32> to vector<128xf32>
    %61 = vector.shape_cast %60 : vector<128xf32> to vector<1x128xf32>
    %c0_44 = arith.constant 0 : index
    %c0_45 = arith.constant 0 : index
    %62 = vector.load %arg13[%c0_44, %c0_45] : memref<1x128xf32, #tpu.memory_space<vmem>>, vector<1x128xf32>
    %cst_46 = arith.constant 5.000000e-01 : f32
    %63 = vector.broadcast %cst_46 : f32 to vector<1x128xf32>
    %64 = arith.mulf %62, %63 : vector<1x128xf32>
    %65 = arith.mulf %56, %64 : vector<1x128xf32>
    %66 = arith.mulf %61, %64 : vector<1x128xf32>
    %67 = arith.mulf %65, %65 : vector<1x128xf32>
    %68 = arith.subf %66, %67 : vector<1x128xf32>
    %cst_47 = arith.constant 0.000000e+00 : f32
    %69 = vector.broadcast %cst_47 : f32 to vector<1x128xf32>
    %70 = arith.maximumf %68, %69 : vector<1x128xf32>
    %c0_48 = arith.constant 0 : index
    %c0_49 = arith.constant 0 : index
    %71 = vector.load %arg11[%c0_48, %c0_49] : memref<1x128xf32, #tpu.memory_space<vmem>>, vector<1x128xf32>
    %cst_50 = arith.constant 9.99999974E-6 : f32
    %72 = vector.broadcast %cst_50 : f32 to vector<1x128xf32>
    %73 = arith.addf %70, %72 : vector<1x128xf32>
    %74 = math.rsqrt %73 : vector<1x128xf32>
    %75 = arith.mulf %71, %74 : vector<1x128xf32>
    %c0_51 = arith.constant 0 : index
    %c0_52 = arith.constant 0 : index
    %76 = vector.load %arg12[%c0_51, %c0_52] : memref<1x128xf32, #tpu.memory_space<vmem>>, vector<1x128xf32>
    %77 = arith.mulf %65, %75 : vector<1x128xf32>
    %78 = arith.subf %76, %77 : vector<1x128xf32>
    %cst_53 = arith.constant 0.000000e+00 : f32
    %79 = vector.broadcast %cst_53 : f32 to vector<2x128xf32>
    %80 = vector.broadcast %75 : vector<1x128xf32> to vector<2x128xf32>
    %81 = arith.addf %79, %80 : vector<2x128xf32>
    %c0_54 = arith.constant 0 : index
    %c0_55 = arith.constant 0 : index
    %82 = vector.load %arg15[%c0_54, %c0_55] : memref<128x512xf32, #tpu.memory_space<vmem>>, vector<128x512xf32>
    %cst_56 = arith.constant dense<0.000000e+00> : vector<2x512xf32>
    %83 = tpu.matmul %81, %82, %cst_56 {dimension_numbers = #tpu.dot_dimension_numbers<[1], [0], [0], [1], [0, 0, 1, 1], [], []>} : vector<2x128xf32>, vector<128x512xf32>, vector<2x512xf32> -> vector<2x512xf32>
    %84 = vector.broadcast %78 : vector<1x128xf32> to vector<2x128xf32>
    %85 = arith.addf %79, %84 : vector<2x128xf32>
    %c0_57 = arith.constant 0 : index
    %c0_58 = arith.constant 0 : index
    %86 = vector.load %arg15[%c0_57, %c0_58] : memref<128x512xf32, #tpu.memory_space<vmem>>, vector<128x512xf32>
    %cst_59 = arith.constant dense<0.000000e+00> : vector<2x512xf32>
    %87 = tpu.matmul %85, %86, %cst_59 {dimension_numbers = #tpu.dot_dimension_numbers<[1], [0], [0], [1], [0, 0, 1, 1], [], []>} : vector<2x128xf32>, vector<128x512xf32>, vector<2x512xf32> -> vector<2x512xf32>
    %88 = arith.mulf %52, %83 : vector<2x512xf32>
    %89 = arith.addf %88, %87 : vector<2x512xf32>
    %cst_60 = arith.constant 0.000000e+00 : f32
    %90 = vector.broadcast %cst_60 : f32 to vector<2x512xf32>
    %91 = arith.cmpf ogt, %89, %90 : vector<2x512xf32>
    %cst_61 = arith.constant 0.00999999977 : f32
    %92 = vector.broadcast %cst_61 : f32 to vector<2x512xf32>
    %93 = arith.mulf %92, %89 : vector<2x512xf32>
    %94 = arith.select %91, %89, %93 : vector<2x512xi1>, vector<2x512xf32>
    %c0_62 = arith.constant 0 : index
    %c0_63 = arith.constant 0 : index
    %95 = vector.load %arg16[%c0_62, %c0_63] : memref<512x256xf32, #tpu.memory_space<vmem>>, vector<512x256xf32>
    %cst_64 = arith.constant dense<0.000000e+00> : vector<2x256xf32>
    %96 = tpu.matmul %94, %95, %cst_64 {dimension_numbers = #tpu.dot_dimension_numbers<[1], [0], [0], [1], [0, 0, 1, 1], [], []>} : vector<2x512xf32>, vector<512x256xf32>, vector<2x256xf32> -> vector<2x256xf32>
    %c0_65 = arith.constant 0 : index
    %c0_66 = arith.constant 0 : index
    %97 = vector.load %arg17[%c0_65, %c0_66] : memref<1x256xf32, #tpu.memory_space<vmem>>, vector<1x256xf32>
    %98 = vector.broadcast %97 : vector<1x256xf32> to vector<2x256xf32>
    %99 = arith.addf %96, %98 : vector<2x256xf32>
    %c0_67 = arith.constant 0 : index
    %c0_68 = arith.constant 0 : index
    %100 = vector.load %arg21[%c0_67, %c0_68] : memref<256x128xf32, #tpu.memory_space<vmem>>, vector<256x128xf32>
    %cst_69 = arith.constant dense<0.000000e+00> : vector<2x128xf32>
    %101 = tpu.matmul %99, %100, %cst_69 {dimension_numbers = #tpu.dot_dimension_numbers<[1], [0], [0], [1], [0, 0, 1, 1], [], []>} : vector<2x256xf32>, vector<256x128xf32>, vector<2x128xf32> -> vector<2x128xf32>
    %cst_70 = arith.constant dense<0.000000e+00> : vector<128xf32>
    %102 = vector.multi_reduction <add>, %101, %cst_70 [0] : vector<2x128xf32> to vector<128xf32>
    %103 = vector.shape_cast %102 : vector<128xf32> to vector<1x128xf32>
    %104 = arith.mulf %99, %99 : vector<2x256xf32>
    %c0_71 = arith.constant 0 : index
    %c0_72 = arith.constant 0 : index
    %105 = vector.load %arg21[%c0_71, %c0_72] : memref<256x128xf32, #tpu.memory_space<vmem>>, vector<256x128xf32>
    %cst_73 = arith.constant dense<0.000000e+00> : vector<2x128xf32>
    %106 = tpu.matmul %104, %105, %cst_73 {dimension_numbers = #tpu.dot_dimension_numbers<[1], [0], [0], [1], [0, 0, 1, 1], [], []>} : vector<2x256xf32>, vector<256x128xf32>, vector<2x128xf32> -> vector<2x128xf32>
    %cst_74 = arith.constant dense<0.000000e+00> : vector<128xf32>
    %107 = vector.multi_reduction <add>, %106, %cst_74 [0] : vector<2x128xf32> to vector<128xf32>
    %108 = vector.shape_cast %107 : vector<128xf32> to vector<1x128xf32>
    %c0_75 = arith.constant 0 : index
    %c0_76 = arith.constant 0 : index
    %109 = vector.load %arg20[%c0_75, %c0_76] : memref<1x128xf32, #tpu.memory_space<vmem>>, vector<1x128xf32>
    %cst_77 = arith.constant 5.000000e-01 : f32
    %110 = vector.broadcast %cst_77 : f32 to vector<1x128xf32>
    %111 = arith.mulf %109, %110 : vector<1x128xf32>
    %112 = arith.mulf %103, %111 : vector<1x128xf32>
    %113 = arith.mulf %108, %111 : vector<1x128xf32>
    %114 = arith.mulf %112, %112 : vector<1x128xf32>
    %115 = arith.subf %113, %114 : vector<1x128xf32>
    %cst_78 = arith.constant 0.000000e+00 : f32
    %116 = vector.broadcast %cst_78 : f32 to vector<1x128xf32>
    %117 = arith.maximumf %115, %116 : vector<1x128xf32>
    %c0_79 = arith.constant 0 : index
    %c0_80 = arith.constant 0 : index
    %118 = vector.load %arg18[%c0_79, %c0_80] : memref<1x128xf32, #tpu.memory_space<vmem>>, vector<1x128xf32>
    %cst_81 = arith.constant 9.99999974E-6 : f32
    %119 = vector.broadcast %cst_81 : f32 to vector<1x128xf32>
    %120 = arith.addf %117, %119 : vector<1x128xf32>
    %121 = math.rsqrt %120 : vector<1x128xf32>
    %122 = arith.mulf %118, %121 : vector<1x128xf32>
    %c0_82 = arith.constant 0 : index
    %c0_83 = arith.constant 0 : index
    %123 = vector.load %arg19[%c0_82, %c0_83] : memref<1x128xf32, #tpu.memory_space<vmem>>, vector<1x128xf32>
    %124 = arith.mulf %112, %122 : vector<1x128xf32>
    %125 = arith.subf %123, %124 : vector<1x128xf32>
    %cst_84 = arith.constant 0.000000e+00 : f32
    %126 = vector.broadcast %cst_84 : f32 to vector<2x128xf32>
    %127 = vector.broadcast %122 : vector<1x128xf32> to vector<2x128xf32>
    %128 = arith.addf %126, %127 : vector<2x128xf32>
    %c0_85 = arith.constant 0 : index
    %c0_86 = arith.constant 0 : index
    %129 = vector.load %arg22[%c0_85, %c0_86] : memref<128x256xf32, #tpu.memory_space<vmem>>, vector<128x256xf32>
    %cst_87 = arith.constant dense<0.000000e+00> : vector<2x256xf32>
    %130 = tpu.matmul %128, %129, %cst_87 {dimension_numbers = #tpu.dot_dimension_numbers<[1], [0], [0], [1], [0, 0, 1, 1], [], []>} : vector<2x128xf32>, vector<128x256xf32>, vector<2x256xf32> -> vector<2x256xf32>
    %131 = vector.broadcast %125 : vector<1x128xf32> to vector<2x128xf32>
    %132 = arith.addf %126, %131 : vector<2x128xf32>
    %c0_88 = arith.constant 0 : index
    %c0_89 = arith.constant 0 : index
    %133 = vector.load %arg22[%c0_88, %c0_89] : memref<128x256xf32, #tpu.memory_space<vmem>>, vector<128x256xf32>
    %cst_90 = arith.constant dense<0.000000e+00> : vector<2x256xf32>
    %134 = tpu.matmul %132, %133, %cst_90 {dimension_numbers = #tpu.dot_dimension_numbers<[1], [0], [0], [1], [0, 0, 1, 1], [], []>} : vector<2x128xf32>, vector<128x256xf32>, vector<2x256xf32> -> vector<2x256xf32>
    %135 = arith.mulf %99, %130 : vector<2x256xf32>
    %136 = arith.addf %135, %134 : vector<2x256xf32>
    %cst_91 = arith.constant 0.000000e+00 : f32
    %137 = vector.broadcast %cst_91 : f32 to vector<2x256xf32>
    %138 = arith.cmpf ogt, %136, %137 : vector<2x256xf32>
    %cst_92 = arith.constant 0.00999999977 : f32
    %139 = vector.broadcast %cst_92 : f32 to vector<2x256xf32>
    %140 = arith.mulf %139, %136 : vector<2x256xf32>
    %141 = arith.select %138, %136, %140 : vector<2x256xi1>, vector<2x256xf32>
    %c0_93 = arith.constant 0 : index
    %c0_94 = arith.constant 0 : index
    %142 = vector.load %arg23[%c0_93, %c0_94] : memref<256x128xf32, #tpu.memory_space<vmem>>, vector<256x128xf32>
    %cst_95 = arith.constant dense<0.000000e+00> : vector<2x128xf32>
    %143 = tpu.matmul %141, %142, %cst_95 {dimension_numbers = #tpu.dot_dimension_numbers<[1], [0], [0], [1], [0, 0, 1, 1], [], []>} : vector<2x256xf32>, vector<256x128xf32>, vector<2x128xf32> -> vector<2x128xf32>
    %c0_96 = arith.constant 0 : index
    %c0_97 = arith.constant 0 : index
    %144 = vector.load %arg24[%c0_96, %c0_97] : memref<1x128xf32, #tpu.memory_space<vmem>>, vector<1x128xf32>
    %145 = vector.broadcast %144 : vector<1x128xf32> to vector<2x128xf32>
    %146 = arith.addf %143, %145 : vector<2x128xf32>
    %c0_98 = arith.constant 0 : index
    %c0_99 = arith.constant 0 : index
    %147 = vector.load %arg25[%c0_98, %c0_99] : memref<128x128xf32, #tpu.memory_space<vmem>>, vector<128x128xf32>
    %cst_100 = arith.constant dense<0.000000e+00> : vector<2x128xf32>
    %148 = tpu.matmul %146, %147, %cst_100 {dimension_numbers = #tpu.dot_dimension_numbers<[1], [0], [0], [1], [0, 0, 1, 1], [], []>} : vector<2x128xf32>, vector<128x128xf32>, vector<2x128xf32> -> vector<2x128xf32>
    %c0_101 = arith.constant 0 : index
    %c0_102 = arith.constant 0 : index
    %149 = vector.load %arg26[%c0_101, %c0_102] : memref<1x128xf32, #tpu.memory_space<vmem>>, vector<1x128xf32>
    %150 = vector.broadcast %149 : vector<1x128xf32> to vector<2x128xf32>
    %151 = arith.addf %148, %150 : vector<2x128xf32>
    %c0_103 = arith.constant 0 : index
    %c0_104 = arith.constant 0 : index
    %152 = vector.load %arg27[%c0_103, %c0_104] : memref<2x128xf32, #tpu.memory_space<vmem>>, vector<2x128xf32>
    tpu.vector_store %arg27[%c0_103, %c0_104], %151 {strides = array<i32>} : memref<2x128xf32, #tpu.memory_space<vmem>>, vector<2x128xf32>,
    return
  }
  func.func @transform_0(%arg0: i32) -> (i32, i32) {
    %c0_i32 = arith.constant 0 : i32
    %c0_i32_0 = arith.constant 0 : i32
    %c0_i32_1 = arith.constant 0 : i32
    return %c0_i32, %c0_i32_0 : i32, i32
  }
  func.func @transform_1(%arg0: i32) -> (i32, i32) {
    %c0_i32 = arith.constant 0 : i32
    %c0_i32_0 = arith.constant 0 : i32
    %c0_i32_1 = arith.constant 0 : i32
    return %c0_i32, %c0_i32_0 : i32, i32
  }
  func.func @transform_2(%arg0: i32) -> (i32, i32) {
    %c0_i32 = arith.constant 0 : i32
    %c0_i32_0 = arith.constant 0 : i32
    %c0_i32_1 = arith.constant 0 : i32
    return %c0_i32, %c0_i32_0 : i32, i32
  }
  func.func @transform_3(%arg0: i32) -> (i32, i32) {
    %c0_i32 = arith.constant 0 : i32
    %c0_i32_0 = arith.constant 0 : i32
    %c0_i32_1 = arith.constant 0 : i32
    return %c0_i32, %c0_i32_0 : i32, i32
  }
  func.func @transform_4(%arg0: i32) -> (i32, i32) {
    %c0_i32 = arith.constant 0 : i32
    %c0_i32_0 = arith.constant 0 : i32
    %c0_i32_1 = arith.constant 0 : i32
    return %c0_i32, %c0_i32_0 : i32, i32
  }
  func.func @transform_5(%arg0: i32) -> (i32, i32) {
    %c0_i32 = arith.constant 0 : i32
    %c0_i32_0 = arith.constant 0 : i32
    %c0_i32_1 = arith.constant 0 : i32
    return %c0_i32, %c0_i32_0 : i32, i32
  }
  func.func @transform_6(%arg0: i32) -> (i32, i32) {
    %c0_i32 = arith.constant 0 : i32
    %c0_i32_0 = arith.constant 0 : i32
    %c0_i32_1 = arith.constant 0 : i32
    return %c0_i32, %c0_i32_0 : i32, i32
  }
  func.func @transform_7(%arg0: i32) -> (i32, i32) {
    %c0_i32 = arith.constant 0 : i32
    %c0_i32_0 = arith.constant 0 : i32
    %c0_i32_1 = arith.constant 0 : i32
    return %c0_i32, %c0_i32_0 : i32, i32
  }
  func.func @transform_8(%arg0: i32) -> (i32, i32) {
    %c0_i32 = arith.constant 0 : i32
    %c0_i32_0 = arith.constant 0 : i32
    %c0_i32_1 = arith.constant 0 : i32
    return %c0_i32, %c0_i32_0 : i32, i32
  }
  func.func @transform_9(%arg0: i32) -> (i32, i32) {
    %c0_i32 = arith.constant 0 : i32
    %c0_i32_0 = arith.constant 0 : i32
    %c0_i32_1 = arith.constant 0 : i32
    return %c0_i32, %c0_i32_0 : i32, i32
  }
  func.func @transform_10(%arg0: i32) -> (i32, i32) {
    %c0_i32 = arith.constant 0 : i32
    %c0_i32_0 = arith.constant 0 : i32
    %c0_i32_1 = arith.constant 0 : i32
    return %c0_i32, %c0_i32_0 : i32, i32
  }
  func.func @transform_11(%arg0: i32) -> (i32, i32) {
    %c0_i32 = arith.constant 0 : i32
    %c0_i32_0 = arith.constant 0 : i32
    %c0_i32_1 = arith.constant 0 : i32
    return %c0_i32, %c0_i32_0 : i32, i32
  }
  func.func @transform_12(%arg0: i32) -> (i32, i32) {
    %c0_i32 = arith.constant 0 : i32
    %c0_i32_0 = arith.constant 0 : i32
    %c0_i32_1 = arith.constant 0 : i32
    return %c0_i32, %c0_i32_0 : i32, i32
  }
  func.func @transform_13(%arg0: i32) -> (i32, i32) {
    %c0_i32 = arith.constant 0 : i32
    %c0_i32_0 = arith.constant 0 : i32
    %c0_i32_1 = arith.constant 0 : i32
    return %c0_i32, %c0_i32_0 : i32, i32
  }
  func.func @transform_14(%arg0: i32) -> (i32, i32) {
    %c0_i32 = arith.constant 0 : i32
    %c0_i32_0 = arith.constant 0 : i32
    %c0_i32_1 = arith.constant 0 : i32
    return %c0_i32, %c0_i32_0 : i32, i32
  }
  func.func @transform_15(%arg0: i32) -> (i32, i32) {
    %c0_i32 = arith.constant 0 : i32
    %c0_i32_0 = arith.constant 0 : i32
    %c0_i32_1 = arith.constant 0 : i32
    return %c0_i32, %c0_i32_0 : i32, i32
  }
  func.func @transform_16(%arg0: i32) -> (i32, i32) {
    %c0_i32 = arith.constant 0 : i32
    %c0_i32_0 = arith.constant 0 : i32
    %c0_i32_1 = arith.constant 0 : i32
    return %c0_i32, %c0_i32_0 : i32, i32
  }
  func.func @transform_17(%arg0: i32) -> (i32, i32) {
    %c0_i32 = arith.constant 0 : i32
    %c0_i32_0 = arith.constant 0 : i32
    %c0_i32_1 = arith.constant 0 : i32
    return %c0_i32, %c0_i32_0 : i32, i32
  }
  func.func @transform_18(%arg0: i32) -> (i32, i32) {
    %c0_i32 = arith.constant 0 : i32
    %c0_i32_0 = arith.constant 0 : i32
    %c0_i32_1 = arith.constant 0 : i32
    return %c0_i32, %c0_i32_0 : i32, i32
  }
  func.func @transform_19(%arg0: i32) -> (i32, i32) {
    %c0_i32 = arith.constant 0 : i32
    %c0_i32_0 = arith.constant 0 : i32
    %c0_i32_1 = arith.constant 0 : i32
    return %c0_i32, %c0_i32_0 : i32, i32
  }
  func.func @transform_20(%arg0: i32) -> (i32, i32) {
    %c0_i32 = arith.constant 0 : i32
    %c0_i32_0 = arith.constant 0 : i32
    %c0_i32_1 = arith.constant 0 : i32
    return %c0_i32, %c0_i32_0 : i32, i32
  }
  func.func @transform_21(%arg0: i32) -> (i32, i32) {
    %c0_i32 = arith.constant 0 : i32
    %c0_i32_0 = arith.constant 0 : i32
    %c0_i32_1 = arith.constant 0 : i32
    return %c0_i32, %c0_i32_0 : i32, i32
  }
  func.func @transform_22(%arg0: i32) -> (i32, i32) {
    %c0_i32 = arith.constant 0 : i32
    %c0_i32_0 = arith.constant 0 : i32
    %c0_i32_1 = arith.constant 0 : i32
    return %c0_i32, %c0_i32_0 : i32, i32
  }
  func.func @transform_23(%arg0: i32) -> (i32, i32) {
    %c0_i32 = arith.constant 0 : i32
    %c0_i32_0 = arith.constant 0 : i32
    %c0_i32_1 = arith.constant 0 : i32
    return %c0_i32, %c0_i32_0 : i32, i32
  }
  func.func @transform_24(%arg0: i32) -> (i32, i32) {
    %c0_i32 = arith.constant 0 : i32
    %c0_i32_0 = arith.constant 0 : i32
    %c0_i32_1 = arith.constant 0 : i32
    return %c0_i32, %c0_i32_0 : i32, i32
  }
  func.func @transform_25(%arg0: i32) -> (i32, i32) {
    %c0_i32 = arith.constant 0 : i32
    %c0_i32_0 = arith.constant 0 : i32
    %c0_i32_1 = arith.constant 0 : i32
    return %c0_i32, %c0_i32_0 : i32, i32
  }
  func.func @transform_26(%arg0: i32) -> (i32, i32) {
    %c0_i32 = arith.constant 0 : i32
    %c0_i32_0 = arith.constant 0 : i32
    %c0_i32_1 = arith.constant 0 : i32
    return %c0_i32, %c0_i32_0 : i32, i32
  }
}

</mosaic_0001>

<llo_original>
// kernel: auto_edcoder_forward.1
$region0: #{auto_edcoder_forward.1}
  #allocation0 [shape = 'u32[]', space=smem, size = 0x4, offset = 0x4, fixed_abs, tag = 'smem constant byte address 0x4 - core index']
  #allocation1 [shape = 'u32[72,128]{1,0:T(1,128)}', space=vmem, size = 0x9000, scoped, tag = 'internal scratch']
  %s0 = inlined_call_operand.vmem [shape: f32[2,896], index: 0, kind: input, shape index: {}]
  %s1 = inlined_call_operand.hbm [shape: f32[896,640], index: 1, kind: input, shape index: {}]
  %s2 = inlined_call_operand.hbm [shape: f32[1,640], index: 2, kind: input, shape index: {}]
  %s3 = inlined_call_operand.hbm [shape: f32[1,128], index: 3, kind: input, shape index: {}]
  %s4 = inlined_call_operand.hbm [shape: f32[1,128], index: 4, kind: input, shape index: {}]
  %s5 = inlined_call_operand.hbm [shape: f32[1,128], index: 5, kind: input, shape index: {}]
  %s6 = inlined_call_operand.hbm [shape: f32[640,128], index: 6, kind: input, shape index: {}]
  %s7 = inlined_call_operand.hbm [shape: f32[128,640], index: 7, kind: input, shape index: {}]
  %s8 = inlined_call_operand.hbm [shape: f32[640,512], index: 8, kind: input, shape index: {}]
  %s9 = inlined_call_operand.hbm [shape: f32[1,512], index: 9, kind: input, shape index: {}]
  %s10 = inlined_call_operand.hbm [shape: f32[1,128], index: 10, kind: input, shape index: {}]
  %s11 = inlined_call_operand.hbm [shape: f32[1,128], index: 11, kind: input, shape index: {}]
  %s12 = inlined_call_operand.hbm [shape: f32[1,128], index: 12, kind: input, shape index: {}]
  %s13 = inlined_call_operand.hbm [shape: f32[512,128], index: 13, kind: input, shape index: {}]
  %s14 = inlined_call_operand.hbm [shape: f32[128,512], index: 14, kind: input, shape index: {}]
  %s15 = inlined_call_operand.hbm [shape: f32[512,256], index: 15, kind: input, shape index: {}]
  %s16 = inlined_call_operand.hbm [shape: f32[1,256], index: 16, kind: input, shape index: {}]
  %s17 = inlined_call_operand.hbm [shape: f32[1,128], index: 17, kind: input, shape index: {}]
  %s18 = inlined_call_operand.hbm [shape: f32[1,128], index: 18, kind: input, shape index: {}]
  %s19 = inlined_call_operand.hbm [shape: f32[1,128], index: 19, kind: input, shape index: {}]
  %s20 = inlined_call_operand.hbm [shape: f32[256,128], index: 20, kind: input, shape index: {}]
  %s21 = inlined_call_operand.hbm [shape: f32[128,256], index: 21, kind: input, shape index: {}]
  %s22 = inlined_call_operand.hbm [shape: f32[256,128], index: 22, kind: input, shape index: {}]
  %s23 = inlined_call_operand.hbm [shape: f32[1,128], index: 23, kind: input, shape index: {}]
  %s24 = inlined_call_operand.hbm [shape: f32[128,128], index: 24, kind: input, shape index: {}]
  %s25 = inlined_call_operand.hbm [shape: f32[1,128], index: 25, kind: input, shape index: {}]
  %s26 = inlined_call_operand.hbm [shape: f32[2,128], index: 26, kind: output, shape index: {}]
  %s27 = sld [smem:[#allocation0]]
  $region214: #{auto_edcoder_forward.1} parent=0
    _
  %s29 = ssub.s32 1, %s27
  %s30 = scalar_select 0, %s29, %s27
  $region1: #{auto_edcoder_forward.1} parent=0
    #allocation2 [shape = 'u8[2293760]{0}', space=vmem, size = 0x230000, scoped, tag = 'input window, operand 1, single buffered']
    #allocation3 [shape = 's32[1]{0}', space=sflag, size = 0x4, scoped, tag = 'scoped memory for auto_edcoder_forward.1']
    #allocation4 [shape = 's32[1]{0}', space=sflag, size = 0x4, scoped, tag = 'scoped memory for auto_edcoder_forward.1']
    #allocation5 [shape = 'u8[2560]{0}', space=vmem, size = 0xc00, scoped, tag = 'input window, operand 2, single buffered']
    #allocation6 [shape = 's32[1]{0}', space=sflag, size = 0x4, scoped, tag = 'scoped memory for auto_edcoder_forward.1']
    #allocation7 [shape = 'u8[512]{0}', space=vmem, size = 0x400, scoped, tag = 'input window, operand 3, single buffered']
    #allocation8 [shape = 'u8[512]{0}', space=vmem, size = 0x400, scoped, tag = 'input window, operand 4, single buffered']
    #allocation9 [shape = 's32[1]{0}', space=sflag, size = 0x4, scoped, tag = 'scoped memory for auto_edcoder_forward.1']
    #allocation10 [shape = 'u8[512]{0}', space=vmem, size = 0x400, scoped, tag = 'input window, operand 5, single buffered']
    #allocation11 [shape = 'u8[327680]{0}', space=vmem, size = 0x50000, scoped, tag = 'input window, operand 6, single buffered']
    #allocation12 [shape = 's32[1]{0}', space=sflag, size = 0x4, scoped, tag = 'scoped memory for auto_edcoder_forward.1']
    #allocation13 [shape = 'u8[327680]{0}', space=vmem, size = 0x50000, scoped, tag = 'input window, operand 7, single buffered']
    #allocation14 [shape = 'u8[1310720]{0}', space=vmem, size = 0x140000, scoped, tag = 'input window, operand 8, single buffered']
    #allocation15 [shape = 's32[1]{0}', space=sflag, size = 0x4, scoped, tag = 'scoped memory for auto_edcoder_forward.1']
    #allocation16 [shape = 'u8[2048]{0}', space=vmem, size = 0x800, scoped, tag = 'input window, operand 9, single buffered']
    #allocation17 [shape = 'u8[512]{0}', space=vmem, size = 0x400, scoped, tag = 'input window, operand 10, single buffered']
    #allocation18 [shape = 's32[1]{0}', space=sflag, size = 0x4, scoped, tag = 'scoped memory for auto_edcoder_forward.1']
    #allocation19 [shape = 'u8[512]{0}', space=vmem, size = 0x400, scoped, tag = 'input window, operand 11, single buffered']
    #allocation20 [shape = 'u8[512]{0}', space=vmem, size = 0x400, scoped, tag = 'input window, operand 12, single buffered']
    #allocation21 [shape = 's32[1]{0}', space=sflag, size = 0x4, scoped, tag = 'scoped memory for auto_edcoder_forward.1']
    #allocation22 [shape = 'u8[262144]{0}', space=vmem, size = 0x40000, scoped, tag = 'input window, operand 13, single buffered']
    #allocation23 [shape = 'u8[262144]{0}', space=vmem, size = 0x40000, scoped, tag = 'input window, operand 14, single buffered']
    #allocation24 [shape = 's32[1]{0}', space=sflag, size = 0x4, scoped, tag = 'scoped memory for auto_edcoder_forward.1']
    #allocation25 [shape = 'u8[524288]{0}', space=vmem, size = 0x80000, scoped, tag = 'input window, operand 15, single buffered']
    #allocation26 [shape = 'u8[1024]{0}', space=vmem, size = 0x400, scoped, tag = 'input window, operand 16, single buffered']
    #allocation27 [shape = 's32[1]{0}', space=sflag, size = 0x4, scoped, tag = 'scoped memory for auto_edcoder_forward.1']
    #allocation28 [shape = 'u8[512]{0}', space=vmem, size = 0x400, scoped, tag = 'input window, operand 17, single buffered']
    #allocation29 [shape = 'u8[512]{0}', space=vmem, size = 0x400, scoped, tag = 'input window, operand 18, single buffered']
    #allocation30 [shape = 's32[1]{0}', space=sflag, size = 0x4, scoped, tag = 'scoped memory for auto_edcoder_forward.1']
    #allocation31 [shape = 'u8[512]{0}', space=vmem, size = 0x400, scoped, tag = 'input window, operand 19, single buffered']
    #allocation32 [shape = 'u8[131072]{0}', space=vmem, size = 0x20000, scoped, tag = 'input window, operand 20, single buffered']
    #allocation33 [shape = 's32[1]{0}', space=sflag, size = 0x4, scoped, tag = 'scoped memory for auto_edcoder_forward.1']
    #allocation34 [shape = 'u8[131072]{0}', space=vmem, size = 0x20000, scoped, tag = 'input window, operand 21, single buffered']
    #allocation35 [shape = 'u8[131072]{0}', space=vmem, size = 0x20000, scoped, tag = 'input window, operand 22, single buffered']
    #allocation36 [shape = 's32[1]{0}', space=sflag, size = 0x4, scoped, tag = 'scoped memory for auto_edcoder_forward.1']
    #allocation37 [shape = 'u8[512]{0}', space=vmem, size = 0x400, scoped, tag = 'input window, operand 23, single buffered']
    #allocation38 [shape = 'u8[65536]{0}', space=vmem, size = 0x10000, scoped, tag = 'input window, operand 24, single buffered']
    #allocation39 [shape = 's32[1]{0}', space=sflag, size = 0x4, scoped, tag = 'scoped memory for auto_edcoder_forward.1']
    #allocation40 [shape = 'u8[512]{0}', space=vmem, size = 0x400, scoped, tag = 'input window, operand 25, single buffered']
    #allocation41 [shape = 'u8[1024]{0}', space=vmem, size = 0x400, scoped, tag = 'output window, operand 0, single buffered']
    %31 = vsyncpa [#allocation3], 0
    %32 = vsyncpa [#allocation6], 0
    %33 = vsyncpa [#allocation9], 0
    %34 = vsyncpa [#allocation12], 0
    %35 = vsyncpa [#allocation15], 0
    %36 = vsyncpa [#allocation18], 0
    %37 = vsyncpa [#allocation21], 0
    %38 = vsyncpa [#allocation24], 0
    %39 = vsyncpa [#allocation27], 0
    %40 = vsyncpa [#allocation30], 0
    %41 = vsyncpa [#allocation33], 0
    %42 = vsyncpa [#allocation36], 0
    %43 = vsyncpa [#allocation39], 0
    %44 = vsyncpa [#allocation4], 0
    // Predicated region
    $region2: #{auto_edcoder_forward.1} parent=1 // pred_check
      _
    $region3: #{auto_edcoder_forward.1} parent=1 // pred_check_branch
      %46 = sbr.rel (0) target = $region5
    $region4: #{auto_edcoder_forward.1} parent=1 // pred_region
      _
    $region5: #{auto_edcoder_forward.1} parent=1 // pred_fallthru
      _
    // Predicated region
    $region6: #{auto_edcoder_forward.1} parent=1 // pred_check
      _
    $region7: #{auto_edcoder_forward.1} parent=1 // pred_check_branch
      %48 = sbr.rel (0) target = $region9
    $region8: #{auto_edcoder_forward.1} parent=1 // pred_region
      %50 = vsyncadd [#allocation3], 0
      %s51 = sshll.u32 %s1, 4
      %s52 = int_to_ptr.hbm [resolvable:$true] %s51
      %s53 = sshll.u32 [#allocation2], 4
      %s54 = int_to_ptr.vmem [resolvable:$true] %s53
      %59 = dma.hbm_to_vmem [thread:$0]  %s52, 71680, %s54, [#allocation3], 640, 640, 40
    $region9: #{auto_edcoder_forward.1} parent=1 // pred_fallthru
      _
    // Predicated region
    $region10: #{auto_edcoder_forward.1} parent=1 // pred_check
      _
    $region11: #{auto_edcoder_forward.1} parent=1 // pred_check_branch
      %61 = sbr.rel (0) target = $region13
    $region12: #{auto_edcoder_forward.1} parent=1 // pred_region
      %63 = vsyncadd [#allocation6], 0
      %s65 = sshll.u32 %s2, 4
      %s66 = int_to_ptr.hbm [resolvable:$true] %s65
      %s67 = sshll.u32 [#allocation5], 4
      %s68 = int_to_ptr.vmem [resolvable:$true] %s67
      %70 = dma.hbm_to_vmem [thread:$0]  %s66, 80, %s68, [#allocation6]
    $region13: #{auto_edcoder_forward.1} parent=1 // pred_fallthru
      _
    // Predicated region
    $region14: #{auto_edcoder_forward.1} parent=1 // pred_check
      _
    $region15: #{auto_edcoder_forward.1} parent=1 // pred_check_branch
      %72 = sbr.rel (0) target = $region17
    $region16: #{auto_edcoder_forward.1} parent=1 // pred_region
      %74 = vsyncadd [#allocation6], 0
      %s76 = sshll.u32 %s3, 4
      %s77 = int_to_ptr.hbm [resolvable:$true] %s76
      %s78 = sshll.u32 [#allocation7], 4
      %s79 = int_to_ptr.vmem [resolvable:$true] %s78
      %81 = dma.hbm_to_vmem [thread:$0]  %s77, 16, %s79, [#allocation6]
    $region17: #{auto_edcoder_forward.1} parent=1 // pred_fallthru
      _
    // Predicated region
    $region18: #{auto_edcoder_forward.1} parent=1 // pred_check
      _
    $region19: #{auto_edcoder_forward.1} parent=1 // pred_check_branch
      %83 = sbr.rel (0) target = $region21
    $region20: #{auto_edcoder_forward.1} parent=1 // pred_region
      %85 = vsyncadd [#allocation9], 0
      %s87 = sshll.u32 %s4, 4
      %s88 = int_to_ptr.hbm [resolvable:$true] %s87
      %s89 = sshll.u32 [#allocation8], 4
      %s90 = int_to_ptr.vmem [resolvable:$true] %s89
      %92 = dma.hbm_to_vmem [thread:$0]  %s88, 16, %s90, [#allocation9]
    $region21: #{auto_edcoder_forward.1} parent=1 // pred_fallthru
      _
    // Predicated region
    $region22: #{auto_edcoder_forward.1} parent=1 // pred_check
      _
    $region23: #{auto_edcoder_forward.1} parent=1 // pred_check_branch
      %94 = sbr.rel (0) target = $region25
    $region24: #{auto_edcoder_forward.1} parent=1 // pred_region
      %96 = vsyncadd [#allocation9], 0
      %s98 = sshll.u32 %s5, 4
      %s99 = int_to_ptr.hbm [resolvable:$true] %s98
      %s100 = sshll.u32 [#allocation10], 4
      %s101 = int_to_ptr.vmem [resolvable:$true] %s100
      %103 = dma.hbm_to_vmem [thread:$0]  %s99, 16, %s101, [#allocation9]
    $region25: #{auto_edcoder_forward.1} parent=1 // pred_fallthru
      _
    // Predicated region
    $region26: #{auto_edcoder_forward.1} parent=1 // pred_check
      _
    $region27: #{auto_edcoder_forward.1} parent=1 // pred_check_branch
      %105 = sbr.rel (0) target = $region29
    $region28: #{auto_edcoder_forward.1} parent=1 // pred_region
      %107 = vsyncadd [#allocation12], 0
      %s108 = sshll.u32 %s6, 4
      %s109 = int_to_ptr.hbm [resolvable:$true] %s108
      %s110 = sshll.u32 [#allocation11], 4
      %s111 = int_to_ptr.vmem [resolvable:$true] %s110
      %116 = dma.hbm_to_vmem [thread:$0]  %s109, 10240, %s111, [#allocation12], 128, 128, 8
    $region29: #{auto_edcoder_forward.1} parent=1 // pred_fallthru
      _
    // Predicated region
    $region30: #{auto_edcoder_forward.1} parent=1 // pred_check
      _
    $region31: #{auto_edcoder_forward.1} parent=1 // pred_check_branch
      %118 = sbr.rel (0) target = $region33
    $region32: #{auto_edcoder_forward.1} parent=1 // pred_region
      %120 = vsyncadd [#allocation12], 0
      %s121 = sshll.u32 %s7, 4
      %s122 = int_to_ptr.hbm [resolvable:$true] %s121
      %s123 = sshll.u32 [#allocation13], 4
      %s124 = int_to_ptr.vmem [resolvable:$true] %s123
      %129 = dma.hbm_to_vmem [thread:$0]  %s122, 10240, %s124, [#allocation12], 640, 640, 40
    $region33: #{auto_edcoder_forward.1} parent=1 // pred_fallthru
      _
    // Predicated region
    $region34: #{auto_edcoder_forward.1} parent=1 // pred_check
      _
    $region35: #{auto_edcoder_forward.1} parent=1 // pred_check_branch
      %131 = sbr.rel (0) target = $region37
    $region36: #{auto_edcoder_forward.1} parent=1 // pred_region
      %133 = vsyncadd [#allocation15], 0
      %s134 = sshll.u32 %s8, 4
      %s135 = int_to_ptr.hbm [resolvable:$true] %s134
      %s136 = sshll.u32 [#allocation14], 4
      %s137 = int_to_ptr.vmem [resolvable:$true] %s136
      %142 = dma.hbm_to_vmem [thread:$0]  %s135, 40960, %s137, [#allocation15], 512, 512, 32
    $region37: #{auto_edcoder_forward.1} parent=1 // pred_fallthru
      _
    // Predicated region
    $region38: #{auto_edcoder_forward.1} parent=1 // pred_check
      _
    $region39: #{auto_edcoder_forward.1} parent=1 // pred_check_branch
      %144 = sbr.rel (0) target = $region41
    $region40: #{auto_edcoder_forward.1} parent=1 // pred_region
      %146 = vsyncadd [#allocation15], 0
      %s148 = sshll.u32 %s9, 4
      %s149 = int_to_ptr.hbm [resolvable:$true] %s148
      %s150 = sshll.u32 [#allocation16], 4
      %s151 = int_to_ptr.vmem [resolvable:$true] %s150
      %153 = dma.hbm_to_vmem [thread:$0]  %s149, 64, %s151, [#allocation15]
    $region41: #{auto_edcoder_forward.1} parent=1 // pred_fallthru
      _
    // Predicated region
    $region42: #{auto_edcoder_forward.1} parent=1 // pred_check
      _
    $region43: #{auto_edcoder_forward.1} parent=1 // pred_check_branch
      %155 = sbr.rel (0) target = $region45
    $region44: #{auto_edcoder_forward.1} parent=1 // pred_region
      %157 = vsyncadd [#allocation18], 0
      %s159 = sshll.u32 %s10, 4
      %s160 = int_to_ptr.hbm [resolvable:$true] %s159
      %s161 = sshll.u32 [#allocation17], 4
      %s162 = int_to_ptr.vmem [resolvable:$true] %s161
      %164 = dma.hbm_to_vmem [thread:$0]  %s160, 16, %s162, [#allocation18]
    $region45: #{auto_edcoder_forward.1} parent=1 // pred_fallthru
      _
    // Predicated region
    $region46: #{auto_edcoder_forward.1} parent=1 // pred_check
      _
    $region47: #{auto_edcoder_forward.1} parent=1 // pred_check_branch
      %166 = sbr.rel (0) target = $region49
    $region48: #{auto_edcoder_forward.1} parent=1 // pred_region
      %168 = vsyncadd [#allocation18], 0
      %s170 = sshll.u32 %s11, 4
      %s171 = int_to_ptr.hbm [resolvable:$true] %s170
      %s172 = sshll.u32 [#allocation19], 4
      %s173 = int_to_ptr.vmem [resolvable:$true] %s172
      %175 = dma.hbm_to_vmem [thread:$0]  %s171, 16, %s173, [#allocation18]
    $region49: #{auto_edcoder_forward.1} parent=1 // pred_fallthru
      _
    // Predicated region
    $region50: #{auto_edcoder_forward.1} parent=1 // pred_check
      _
    $region51: #{auto_edcoder_forward.1} parent=1 // pred_check_branch
      %177 = sbr.rel (0) target = $region53
    $region52: #{auto_edcoder_forward.1} parent=1 // pred_region
      %179 = vsyncadd [#allocation21], 0
      %s181 = sshll.u32 %s12, 4
      %s182 = int_to_ptr.hbm [resolvable:$true] %s181
      %s183 = sshll.u32 [#allocation20], 4
      %s184 = int_to_ptr.vmem [resolvable:$true] %s183
      %186 = dma.hbm_to_vmem [thread:$0]  %s182, 16, %s184, [#allocation21]
    $region53: #{auto_edcoder_forward.1} parent=1 // pred_fallthru
      _
    // Predicated region
    $region54: #{auto_edcoder_forward.1} parent=1 // pred_check
      _
    $region55: #{auto_edcoder_forward.1} parent=1 // pred_check_branch
      %188 = sbr.rel (0) target = $region57
    $region56: #{auto_edcoder_forward.1} parent=1 // pred_region
      %190 = vsyncadd [#allocation21], 0
      %s191 = sshll.u32 %s13, 4
      %s192 = int_to_ptr.hbm [resolvable:$true] %s191
      %s193 = sshll.u32 [#allocation22], 4
      %s194 = int_to_ptr.vmem [resolvable:$true] %s193
      %199 = dma.hbm_to_vmem [thread:$0]  %s192, 8192, %s194, [#allocation21], 128, 128, 8
    $region57: #{auto_edcoder_forward.1} parent=1 // pred_fallthru
      _
    // Predicated region
    $region58: #{auto_edcoder_forward.1} parent=1 // pred_check
      _
    $region59: #{auto_edcoder_forward.1} parent=1 // pred_check_branch
      %201 = sbr.rel (0) target = $region61
    $region60: #{auto_edcoder_forward.1} parent=1 // pred_region
      %203 = vsyncadd [#allocation24], 0
      %s204 = sshll.u32 %s14, 4
      %s205 = int_to_ptr.hbm [resolvable:$true] %s204
      %s206 = sshll.u32 [#allocation23], 4
      %s207 = int_to_ptr.vmem [resolvable:$true] %s206
      %212 = dma.hbm_to_vmem [thread:$0]  %s205, 8192, %s207, [#allocation24], 512, 512, 32
    $region61: #{auto_edcoder_forward.1} parent=1 // pred_fallthru
      _
    // Predicated region
    $region62: #{auto_edcoder_forward.1} parent=1 // pred_check
      _
    $region63: #{auto_edcoder_forward.1} parent=1 // pred_check_branch
      %214 = sbr.rel (0) target = $region65
    $region64: #{auto_edcoder_forward.1} parent=1 // pred_region
      %216 = vsyncadd [#allocation24], 0
      %s217 = sshll.u32 %s15, 4
      %s218 = int_to_ptr.hbm [resolvable:$true] %s217
      %s219 = sshll.u32 [#allocation25], 4
      %s220 = int_to_ptr.vmem [resolvable:$true] %s219
      %225 = dma.hbm_to_vmem [thread:$0]  %s218, 16384, %s220, [#allocation24], 256, 256, 16
    $region65: #{auto_edcoder_forward.1} parent=1 // pred_fallthru
      _
    // Predicated region
    $region66: #{auto_edcoder_forward.1} parent=1 // pred_check
      _
    $region67: #{auto_edcoder_forward.1} parent=1 // pred_check_branch
      %227 = sbr.rel (0) target = $region69
    $region68: #{auto_edcoder_forward.1} parent=1 // pred_region
      %229 = vsyncadd [#allocation27], 0
      %s231 = sshll.u32 %s16, 4
      %s232 = int_to_ptr.hbm [resolvable:$true] %s231
      %s233 = sshll.u32 [#allocation26], 4
      %s234 = int_to_ptr.vmem [resolvable:$true] %s233
      %236 = dma.hbm_to_vmem [thread:$0]  %s232, 32, %s234, [#allocation27]
    $region69: #{auto_edcoder_forward.1} parent=1 // pred_fallthru
      _
    // Predicated region
    $region70: #{auto_edcoder_forward.1} parent=1 // pred_check
      _
    $region71: #{auto_edcoder_forward.1} parent=1 // pred_check_branch
      %238 = sbr.rel (0) target = $region73
    $region72: #{auto_edcoder_forward.1} parent=1 // pred_region
      %240 = vsyncadd [#allocation27], 0
      %s242 = sshll.u32 %s17, 4
      %s243 = int_to_ptr.hbm [resolvable:$true] %s242
      %s244 = sshll.u32 [#allocation28], 4
      %s245 = int_to_ptr.vmem [resolvable:$true] %s244
      %247 = dma.hbm_to_vmem [thread:$0]  %s243, 16, %s245, [#allocation27]
    $region73: #{auto_edcoder_forward.1} parent=1 // pred_fallthru
      _
    // Predicated region
    $region74: #{auto_edcoder_forward.1} parent=1 // pred_check
      _
    $region75: #{auto_edcoder_forward.1} parent=1 // pred_check_branch
      %249 = sbr.rel (0) target = $region77
    $region76: #{auto_edcoder_forward.1} parent=1 // pred_region
      %251 = vsyncadd [#allocation30], 0
      %s253 = sshll.u32 %s18, 4
      %s254 = int_to_ptr.hbm [resolvable:$true] %s253
      %s255 = sshll.u32 [#allocation29], 4
      %s256 = int_to_ptr.vmem [resolvable:$true] %s255
      %258 = dma.hbm_to_vmem [thread:$0]  %s254, 16, %s256, [#allocation30]
    $region77: #{auto_edcoder_forward.1} parent=1 // pred_fallthru
      _
    // Predicated region
    $region78: #{auto_edcoder_forward.1} parent=1 // pred_check
      _
    $region79: #{auto_edcoder_forward.1} parent=1 // pred_check_branch
      %260 = sbr.rel (0) target = $region81
    $region80: #{auto_edcoder_forward.1} parent=1 // pred_region
      %262 = vsyncadd [#allocation30], 0
      %s264 = sshll.u32 %s19, 4
      %s265 = int_to_ptr.hbm [resolvable:$true] %s264
      %s266 = sshll.u32 [#allocation31], 4
      %s267 = int_to_ptr.vmem [resolvable:$true] %s266
      %269 = dma.hbm_to_vmem [thread:$0]  %s265, 16, %s267, [#allocation30]
    $region81: #{auto_edcoder_forward.1} parent=1 // pred_fallthru
      _
    // Predicated region
    $region82: #{auto_edcoder_forward.1} parent=1 // pred_check
      _
    $region83: #{auto_edcoder_forward.1} parent=1 // pred_check_branch
      %271 = sbr.rel (0) target = $region85
    $region84: #{auto_edcoder_forward.1} parent=1 // pred_region
      %273 = vsyncadd [#allocation33], 0
      %s274 = sshll.u32 %s20, 4
      %s275 = int_to_ptr.hbm [resolvable:$true] %s274
      %s276 = sshll.u32 [#allocation32], 4
      %s277 = int_to_ptr.vmem [resolvable:$true] %s276
      %282 = dma.hbm_to_vmem [thread:$0]  %s275, 4096, %s277, [#allocation33], 128, 128, 8
    $region85: #{auto_edcoder_forward.1} parent=1 // pred_fallthru
      _
    // Predicated region
    $region86: #{auto_edcoder_forward.1} parent=1 // pred_check
      _
    $region87: #{auto_edcoder_forward.1} parent=1 // pred_check_branch
      %284 = sbr.rel (0) target = $region89
    $region88: #{auto_edcoder_forward.1} parent=1 // pred_region
      %286 = vsyncadd [#allocation33], 0
      %s287 = sshll.u32 %s21, 4
      %s288 = int_to_ptr.hbm [resolvable:$true] %s287
      %s289 = sshll.u32 [#allocation34], 4
      %s290 = int_to_ptr.vmem [resolvable:$true] %s289
      %295 = dma.hbm_to_vmem [thread:$0]  %s288, 4096, %s290, [#allocation33], 256, 256, 16
    $region89: #{auto_edcoder_forward.1} parent=1 // pred_fallthru
      _
    // Predicated region
    $region90: #{auto_edcoder_forward.1} parent=1 // pred_check
      _
    $region91: #{auto_edcoder_forward.1} parent=1 // pred_check_branch
      %297 = sbr.rel (0) target = $region93
    $region92: #{auto_edcoder_forward.1} parent=1 // pred_region
      %299 = vsyncadd [#allocation36], 0
      %s300 = sshll.u32 %s22, 4
      %s301 = int_to_ptr.hbm [resolvable:$true] %s300
      %s302 = sshll.u32 [#allocation35], 4
      %s303 = int_to_ptr.vmem [resolvable:$true] %s302
      %308 = dma.hbm_to_vmem [thread:$0]  %s301, 4096, %s303, [#allocation36], 128, 128, 8
    $region93: #{auto_edcoder_forward.1} parent=1 // pred_fallthru
      _
    // Predicated region
    $region94: #{auto_edcoder_forward.1} parent=1 // pred_check
      _
    $region95: #{auto_edcoder_forward.1} parent=1 // pred_check_branch
      %310 = sbr.rel (0) target = $region97
    $region96: #{auto_edcoder_forward.1} parent=1 // pred_region
      %312 = vsyncadd [#allocation36], 0
      %s314 = sshll.u32 %s23, 4
      %s315 = int_to_ptr.hbm [resolvable:$true] %s314
      %s316 = sshll.u32 [#allocation37], 4
      %s317 = int_to_ptr.vmem [resolvable:$true] %s316
      %319 = dma.hbm_to_vmem [thread:$0]  %s315, 16, %s317, [#allocation36]
    $region97: #{auto_edcoder_forward.1} parent=1 // pred_fallthru
      _
    // Predicated region
    $region98: #{auto_edcoder_forward.1} parent=1 // pred_check
      _
    $region99: #{auto_edcoder_forward.1} parent=1 // pred_check_branch
      %321 = sbr.rel (0) target = $region101
    $region100: #{auto_edcoder_forward.1} parent=1 // pred_region
      %323 = vsyncadd [#allocation39], 0
      %s324 = sshll.u32 %s24, 4
      %s325 = int_to_ptr.hbm [resolvable:$true] %s324
      %s326 = sshll.u32 [#allocation38], 4
      %s327 = int_to_ptr.vmem [resolvable:$true] %s326
      %332 = dma.hbm_to_vmem [thread:$0]  %s325, 2048, %s327, [#allocation39], 128, 128, 8
    $region101: #{auto_edcoder_forward.1} parent=1 // pred_fallthru
      _
    // Predicated region
    $region102: #{auto_edcoder_forward.1} parent=1 // pred_check
      _
    $region103: #{auto_edcoder_forward.1} parent=1 // pred_check_branch
      %334 = sbr.rel (0) target = $region105
    $region104: #{auto_edcoder_forward.1} parent=1 // pred_region
      %336 = vsyncadd [#allocation39], 0
      %s338 = sshll.u32 %s25, 4
      %s339 = int_to_ptr.hbm [resolvable:$true] %s338
      %s340 = sshll.u32 [#allocation40], 4
      %s341 = int_to_ptr.vmem [resolvable:$true] %s340
      %343 = dma.hbm_to_vmem [thread:$0]  %s339, 16, %s341, [#allocation39]
    $region105: #{auto_edcoder_forward.1} parent=1 // pred_fallthru
      _
    // Predicated region
    $region106: #{auto_edcoder_forward.1} parent=1 // pred_check
      _
    $region107: #{auto_edcoder_forward.1} parent=1 // pred_check_branch
      %345 = sbr.rel (0) target = $region109
    $region108: #{auto_edcoder_forward.1} parent=1 // pred_region
      %347 = dma.done [#allocation3], 71680
    $region109: #{auto_edcoder_forward.1} parent=1 // pred_fallthru
      _
    // Predicated region
    $region110: #{auto_edcoder_forward.1} parent=1 // pred_check
      _
    $region111: #{auto_edcoder_forward.1} parent=1 // pred_check_branch
      %349 = sbr.rel (0) target = $region113
    $region112: #{auto_edcoder_forward.1} parent=1 // pred_region
      %351 = dma.done [#allocation6], 80
    $region113: #{auto_edcoder_forward.1} parent=1 // pred_fallthru
      _
    // Predicated region
    $region114: #{auto_edcoder_forward.1} parent=1 // pred_check
      _
    $region115: #{auto_edcoder_forward.1} parent=1 // pred_check_branch
      %353 = sbr.rel (0) target = $region117
    $region116: #{auto_edcoder_forward.1} parent=1 // pred_region
      %355 = dma.done [#allocation6], 16
    $region117: #{auto_edcoder_forward.1} parent=1 // pred_fallthru
      _
    // Predicated region
    $region118: #{auto_edcoder_forward.1} parent=1 // pred_check
      _
    $region119: #{auto_edcoder_forward.1} parent=1 // pred_check_branch
      %357 = sbr.rel (0) target = $region121
    $region120: #{auto_edcoder_forward.1} parent=1 // pred_region
      %359 = dma.done [#allocation9], 16
    $region121: #{auto_edcoder_forward.1} parent=1 // pred_fallthru
      _
    // Predicated region
    $region122: #{auto_edcoder_forward.1} parent=1 // pred_check
      _
    $region123: #{auto_edcoder_forward.1} parent=1 // pred_check_branch
      %361 = sbr.rel (0) target = $region125
    $region124: #{auto_edcoder_forward.1} parent=1 // pred_region
      %363 = dma.done [#allocation9], 16
    $region125: #{auto_edcoder_forward.1} parent=1 // pred_fallthru
      _
    // Predicated region
    $region126: #{auto_edcoder_forward.1} parent=1 // pred_check
      _
    $region127: #{auto_edcoder_forward.1} parent=1 // pred_check_branch
      %365 = sbr.rel (0) target = $region129
    $region128: #{auto_edcoder_forward.1} parent=1 // pred_region
      %367 = dma.done [#allocation12], 10240
    $region129: #{auto_edcoder_forward.1} parent=1 // pred_fallthru
      _
    // Predicated region
    $region130: #{auto_edcoder_forward.1} parent=1 // pred_check
      _
    $region131: #{auto_edcoder_forward.1} parent=1 // pred_check_branch
      %369 = sbr.rel (0) target = $region133
    $region132: #{auto_edcoder_forward.1} parent=1 // pred_region
      %371 = dma.done [#allocation12], 10240
    $region133: #{auto_edcoder_forward.1} parent=1 // pred_fallthru
      _
    // Predicated region
    $region134: #{auto_edcoder_forward.1} parent=1 // pred_check
      _
    $region135: #{auto_edcoder_forward.1} parent=1 // pred_check_branch
      %373 = sbr.rel (0) target = $region137
    $region136: #{auto_edcoder_forward.1} parent=1 // pred_region
      %375 = dma.done [#allocation15], 40960
    $region137: #{auto_edcoder_forward.1} parent=1 // pred_fallthru
      _
    // Predicated region
    $region138: #{auto_edcoder_forward.1} parent=1 // pred_check
      _
    $region139: #{auto_edcoder_forward.1} parent=1 // pred_check_branch
      %377 = sbr.rel (0) target = $region141
    $region140: #{auto_edcoder_forward.1} parent=1 // pred_region
      %379 = dma.done [#allocation15], 64
    $region141: #{auto_edcoder_forward.1} parent=1 // pred_fallthru
      _
    // Predicated region
    $region142: #{auto_edcoder_forward.1} parent=1 // pred_check
      _
    $region143: #{auto_edcoder_forward.1} parent=1 // pred_check_branch
      %381 = sbr.rel (0) target = $region145
    $region144: #{auto_edcoder_forward.1} parent=1 // pred_region
      %383 = dma.done [#allocation18], 16
    $region145: #{auto_edcoder_forward.1} parent=1 // pred_fallthru
      _
    // Predicated region
    $region146: #{auto_edcoder_forward.1} parent=1 // pred_check
      _
    $region147: #{auto_edcoder_forward.1} parent=1 // pred_check_branch
      %385 = sbr.rel (0) target = $region149
    $region148: #{auto_edcoder_forward.1} parent=1 // pred_region
      %387 = dma.done [#allocation18], 16
    $region149: #{auto_edcoder_forward.1} parent=1 // pred_fallthru
      _
    // Predicated region
    $region150: #{auto_edcoder_forward.1} parent=1 // pred_check
      _
    $region151: #{auto_edcoder_forward.1} parent=1 // pred_check_branch
      %389 = sbr.rel (0) target = $region153
    $region152: #{auto_edcoder_forward.1} parent=1 // pred_region
      %391 = dma.done [#allocation21], 16
    $region153: #{auto_edcoder_forward.1} parent=1 // pred_fallthru
      _
    // Predicated region
    $region154: #{auto_edcoder_forward.1} parent=1 // pred_check
      _
    $region155: #{auto_edcoder_forward.1} parent=1 // pred_check_branch
      %393 = sbr.rel (0) target = $region157
    $region156: #{auto_edcoder_forward.1} parent=1 // pred_region
      %395 = dma.done [#allocation21], 8192
    $region157: #{auto_edcoder_forward.1} parent=1 // pred_fallthru
      _
    // Predicated region
    $region158: #{auto_edcoder_forward.1} parent=1 // pred_check
      _
    $region159: #{auto_edcoder_forward.1} parent=1 // pred_check_branch
      %397 = sbr.rel (0) target = $region161
    $region160: #{auto_edcoder_forward.1} parent=1 // pred_region
      %399 = dma.done [#allocation24], 8192
    $region161: #{auto_edcoder_forward.1} parent=1 // pred_fallthru
      _
    // Predicated region
    $region162: #{auto_edcoder_forward.1} parent=1 // pred_check
      _
    $region163: #{auto_edcoder_forward.1} parent=1 // pred_check_branch
      %401 = sbr.rel (0) target = $region165
    $region164: #{auto_edcoder_forward.1} parent=1 // pred_region
      %403 = dma.done [#allocation24], 16384
    $region165: #{auto_edcoder_forward.1} parent=1 // pred_fallthru
      _
    // Predicated region
    $region166: #{auto_edcoder_forward.1} parent=1 // pred_check
      _
    $region167: #{auto_edcoder_forward.1} parent=1 // pred_check_branch
      %405 = sbr.rel (0) target = $region169
    $region168: #{auto_edcoder_forward.1} parent=1 // pred_region
      %407 = dma.done [#allocation27], 32
    $region169: #{auto_edcoder_forward.1} parent=1 // pred_fallthru
      _
    // Predicated region
    $region170: #{auto_edcoder_forward.1} parent=1 // pred_check
      _
    $region171: #{auto_edcoder_forward.1} parent=1 // pred_check_branch
      %409 = sbr.rel (0) target = $region173
    $region172: #{auto_edcoder_forward.1} parent=1 // pred_region
      %411 = dma.done [#allocation27], 16
    $region173: #{auto_edcoder_forward.1} parent=1 // pred_fallthru
      _
    // Predicated region
    $region174: #{auto_edcoder_forward.1} parent=1 // pred_check
      _
    $region175: #{auto_edcoder_forward.1} parent=1 // pred_check_branch
      %413 = sbr.rel (0) target = $region177
    $region176: #{auto_edcoder_forward.1} parent=1 // pred_region
      %415 = dma.done [#allocation30], 16
    $region177: #{auto_edcoder_forward.1} parent=1 // pred_fallthru
      _
    // Predicated region
    $region178: #{auto_edcoder_forward.1} parent=1 // pred_check
      _
    $region179: #{auto_edcoder_forward.1} parent=1 // pred_check_branch
      %417 = sbr.rel (0) target = $region181
    $region180: #{auto_edcoder_forward.1} parent=1 // pred_region
      %419 = dma.done [#allocation30], 16
    $region181: #{auto_edcoder_forward.1} parent=1 // pred_fallthru
      _
    // Predicated region
    $region182: #{auto_edcoder_forward.1} parent=1 // pred_check
      _
    $region183: #{auto_edcoder_forward.1} parent=1 // pred_check_branch
      %421 = sbr.rel (0) target = $region185
    $region184: #{auto_edcoder_forward.1} parent=1 // pred_region
      %423 = dma.done [#allocation33], 4096
    $region185: #{auto_edcoder_forward.1} parent=1 // pred_fallthru
      _
    // Predicated region
    $region186: #{auto_edcoder_forward.1} parent=1 // pred_check
      _
    $region187: #{auto_edcoder_forward.1} parent=1 // pred_check_branch
      %425 = sbr.rel (0) target = $region189
    $region188: #{auto_edcoder_forward.1} parent=1 // pred_region
      %427 = dma.done [#allocation33], 4096
    $region189: #{auto_edcoder_forward.1} parent=1 // pred_fallthru
      _
    // Predicated region
    $region190: #{auto_edcoder_forward.1} parent=1 // pred_check
      _
    $region191: #{auto_edcoder_forward.1} parent=1 // pred_check_branch
      %429 = sbr.rel (0) target = $region193
    $region192: #{auto_edcoder_forward.1} parent=1 // pred_region
      %431 = dma.done [#allocation36], 4096
    $region193: #{auto_edcoder_forward.1} parent=1 // pred_fallthru
      _
    // Predicated region
    $region194: #{auto_edcoder_forward.1} parent=1 // pred_check
      _
    $region195: #{auto_edcoder_forward.1} parent=1 // pred_check_branch
      %433 = sbr.rel (0) target = $region197
    $region196: #{auto_edcoder_forward.1} parent=1 // pred_region
      %435 = dma.done [#allocation36], 16
    $region197: #{auto_edcoder_forward.1} parent=1 // pred_fallthru
      _
    // Predicated region
    $region198: #{auto_edcoder_forward.1} parent=1 // pred_check
      _
    $region199: #{auto_edcoder_forward.1} parent=1 // pred_check_branch
      %437 = sbr.rel (0) target = $region201
    $region200: #{auto_edcoder_forward.1} parent=1 // pred_region
      %439 = dma.done [#allocation39], 2048
    $region201: #{auto_edcoder_forward.1} parent=1 // pred_fallthru
      _
    // Predicated region
    $region202: #{auto_edcoder_forward.1} parent=1 // pred_check
      _
    $region203: #{auto_edcoder_forward.1} parent=1 // pred_check_branch
      %441 = sbr.rel (0) target = $region205
    $region204: #{auto_edcoder_forward.1} parent=1 // pred_region
      %443 = dma.done [#allocation39], 16
    $region205: #{auto_edcoder_forward.1} parent=1 // pred_fallthru
      _
    %v444 = vld [vmem:[%s0] sm:$0xff]
    %v445 = vld [vmem:[%s0 + $0x8] sm:$0x3f]
    %v446 = vld [vmem:[#allocation2] sm:$0xff]
    %v447 = vld [vmem:[#allocation2 + $0x8] sm:$0xff]
    %v448 = vld [vmem:[#allocation2 + $0x10] sm:$0xff]
    %v449 = vld [vmem:[#allocation2 + $0x18] sm:$0xff]
    %v450 = vld [vmem:[#allocation2 + $0x20] sm:$0xff]
    %v451 = vld [vmem:[#allocation2 + $0x28] sm:$0xff]
    %v452 = vld [vmem:[#allocation2 + $0x30] sm:$0xff]
    %v453 = vld [vmem:[#allocation2 + $0x38] sm:$0xff]
    %v454 = vld [vmem:[#allocation2 + $0x40] sm:$0xff]
    %v455 = vld [vmem:[#allocation2 + $0x48] sm:$0xff]
    %v456 = vld [vmem:[#allocation2 + $0x50] sm:$0xff]
    %v457 = vld [vmem:[#allocation2 + $0x58] sm:$0xff]
    %v458 = vld [vmem:[#allocation2 + $0x60] sm:$0xff]
    %v459 = vld [vmem:[#allocation2 + $0x68] sm:$0xff]
    %v460 = vld [vmem:[#allocation2 + $0x70] sm:$0xff]
    %v461 = vld [vmem:[#allocation2 + $0x78] sm:$0xff]
    %v462 = vld [vmem:[#allocation2 + $0x80] sm:$0xff]
    %v463 = vld [vmem:[#allocation2 + $0x88] sm:$0xff]
    %v464 = vld [vmem:[#allocation2 + $0x90] sm:$0xff]
    %v465 = vld [vmem:[#allocation2 + $0x98] sm:$0xff]
    %v466 = vld [vmem:[#allocation2 + $0xa0] sm:$0xff]
    %v467 = vld [vmem:[#allocation2 + $0xa8] sm:$0xff]
    %v468 = vld [vmem:[#allocation2 + $0xb0] sm:$0xff]
    %v469 = vld [vmem:[#allocation2 + $0xb8] sm:$0xff]
    %v470 = vld [vmem:[#allocation2 + $0xc0] sm:$0xff]
    %v471 = vld [vmem:[#allocation2 + $0xc8] sm:$0xff]
    %v472 = vld [vmem:[#allocation2 + $0xd0] sm:$0xff]
    %v473 = vld [vmem:[#allocation2 + $0xd8] sm:$0xff]
    %v474 = vld [vmem:[#allocation2 + $0xe0] sm:$0xff]
    %v475 = vld [vmem:[#allocation2 + $0xe8] sm:$0xff]
    %v476 = vld [vmem:[#allocation2 + $0xf0] sm:$0xff]
    %v477 = vld [vmem:[#allocation2 + $0xf8] sm:$0xff]
    %v478 = vld [vmem:[#allocation2 + $0x100] sm:$0xff]
    %v479 = vld [vmem:[#allocation2 + $0x108] sm:$0xff]
    %v480 = vld [vmem:[#allocation2 + $0x110] sm:$0xff]
    %v481 = vld [vmem:[#allocation2 + $0x118] sm:$0xff]
    %v482 = vld [vmem:[#allocation2 + $0x120] sm:$0xff]
    %v483 = vld [vmem:[#allocation2 + $0x128] sm:$0xff]
    %v484 = vld [vmem:[#allocation2 + $0x130] sm:$0xff]
    %v485 = vld [vmem:[#allocation2 + $0x138] sm:$0xff]
    %v486 = vld [vmem:[#allocation2 + $0x140] sm:$0xff]
    %v487 = vld [vmem:[#allocation2 + $0x148] sm:$0xff]
    %v488 = vld [vmem:[#allocation2 + $0x150] sm:$0xff]
    %v489 = vld [vmem:[#allocation2 + $0x158] sm:$0xff]
    %v490 = vld [vmem:[#allocation2 + $0x160] sm:$0xff]
    %v491 = vld [vmem:[#allocation2 + $0x168] sm:$0xff]
    %v492 = vld [vmem:[#allocation2 + $0x170] sm:$0xff]
    %v493 = vld [vmem:[#allocation2 + $0x178] sm:$0xff]
    %v494 = vld [vmem:[#allocation2 + $0x180] sm:$0xff]
    %v495 = vld [vmem:[#allocation2 + $0x188] sm:$0xff]
    %v496 = vld [vmem:[#allocation2 + $0x190] sm:$0xff]
    %v497 = vld [vmem:[#allocation2 + $0x198] sm:$0xff]
    %v498 = vld [vmem:[#allocation2 + $0x1a0] sm:$0xff]
    %v499 = vld [vmem:[#allocation2 + $0x1a8] sm:$0xff]
    %v500 = vld [vmem:[#allocation2 + $0x1b0] sm:$0xff]
    %v501 = vld [vmem:[#allocation2 + $0x1b8] sm:$0xff]
    %v502 = vld [vmem:[#allocation2 + $0x1c0] sm:$0xff]
    %v503 = vld [vmem:[#allocation2 + $0x1c8] sm:$0xff]
    %v504 = vld [vmem:[#allocation2 + $0x1d0] sm:$0xff]
    %v505 = vld [vmem:[#allocation2 + $0x1d8] sm:$0xff]
    %v506 = vld [vmem:[#allocation2 + $0x1e0] sm:$0xff]
    %v507 = vld [vmem:[#allocation2 + $0x1e8] sm:$0xff]
    %v508 = vld [vmem:[#allocation2 + $0x1f0] sm:$0xff]
    %v509 = vld [vmem:[#allocation2 + $0x1f8] sm:$0xff]
    %v510 = vld [vmem:[#allocation2 + $0x200] sm:$0xff]
    %v511 = vld [vmem:[#allocation2 + $0x208] sm:$0xff]
    %v512 = vld [vmem:[#allocation2 + $0x210] sm:$0xff]
    %v513 = vld [vmem:[#allocation2 + $0x218] sm:$0xff]
    %v514 = vld [vmem:[#allocation2 + $0x220] sm:$0xff]
    %v515 = vld [vmem:[#allocation2 + $0x228] sm:$0xff]
    %v516 = vld [vmem:[#allocation2 + $0x230] sm:$0xff]
    %v517 = vld [vmem:[#allocation2 + $0x238] sm:$0xff]
    %v518 = vld [vmem:[#allocation2 + $0x240] sm:$0xff]
    %v519 = vld [vmem:[#allocation2 + $0x248] sm:$0xff]
    %v520 = vld [vmem:[#allocation2 + $0x250] sm:$0xff]
    %v521 = vld [vmem:[#allocation2 + $0x258] sm:$0xff]
    %v522 = vld [vmem:[#allocation2 + $0x260] sm:$0xff]
    %v523 = vld [vmem:[#allocation2 + $0x268] sm:$0xff]
    %v524 = vld [vmem:[#allocation2 + $0x270] sm:$0xff]
    %v525 = vld [vmem:[#allocation2 + $0x278] sm:$0xff]
    %v526 = vld [vmem:[#allocation2 + $0x280] sm:$0xff]
    %v527 = vld [vmem:[#allocation2 + $0x288] sm:$0xff]
    %v528 = vld [vmem:[#allocation2 + $0x290] sm:$0xff]
    %v529 = vld [vmem:[#allocation2 + $0x298] sm:$0xff]
    %v530 = vld [vmem:[#allocation2 + $0x2a0] sm:$0xff]
    %v531 = vld [vmem:[#allocation2 + $0x2a8] sm:$0xff]
    %v532 = vld [vmem:[#allocation2 + $0x2b0] sm:$0xff]
    %v533 = vld [vmem:[#allocation2 + $0x2b8] sm:$0xff]
    %v534 = vld [vmem:[#allocation2 + $0x2c0] sm:$0xff]
    %v535 = vld [vmem:[#allocation2 + $0x2c8] sm:$0xff]
    %v536 = vld [vmem:[#allocation2 + $0x2d0] sm:$0xff]
    %v537 = vld [vmem:[#allocation2 + $0x2d8] sm:$0xff]
    %v538 = vld [vmem:[#allocation2 + $0x2e0] sm:$0xff]
    %v539 = vld [vmem:[#allocation2 + $0x2e8] sm:$0xff]
    %v540 = vld [vmem:[#allocation2 + $0x2f0] sm:$0xff]
    %v541 = vld [vmem:[#allocation2 + $0x2f8] sm:$0xff]
    %v542 = vld [vmem:[#allocation2 + $0x300] sm:$0xff]
    %v543 = vld [vmem:[#allocation2 + $0x308] sm:$0xff]
    %v544 = vld [vmem:[#allocation2 + $0x310] sm:$0xff]
    %v545 = vld [vmem:[#allocation2 + $0x318] sm:$0xff]
    %v546 = vld [vmem:[#allocation2 + $0x320] sm:$0xff]
    %v547 = vld [vmem:[#allocation2 + $0x328] sm:$0xff]
    %v548 = vld [vmem:[#allocation2 + $0x330] sm:$0xff]
    %v549 = vld [vmem:[#allocation2 + $0x338] sm:$0xff]
    %v550 = vld [vmem:[#allocation2 + $0x340] sm:$0xff]
    %v551 = vld [vmem:[#allocation2 + $0x348] sm:$0xff]
    %v552 = vld [vmem:[#allocation2 + $0x350] sm:$0xff]
    %v553 = vld [vmem:[#allocation2 + $0x358] sm:$0xff]
    %v554 = vld [vmem:[#allocation2 + $0x360] sm:$0xff]
    %v555 = vld [vmem:[#allocation2 + $0x368] sm:$0xff]
    %v556 = vld [vmem:[#allocation2 + $0x370] sm:$0xff]
    %v557 = vld [vmem:[#allocation2 + $0x378] sm:$0xff]
    %v558 = vld [vmem:[#allocation2 + $0x380] sm:$0xff]
    %v559 = vld [vmem:[#allocation2 + $0x388] sm:$0xff]
    %v560 = vld [vmem:[#allocation2 + $0x390] sm:$0xff]
    %v561 = vld [vmem:[#allocation2 + $0x398] sm:$0xff]
    %v562 = vld [vmem:[#allocation2 + $0x3a0] sm:$0xff]
    %v563 = vld [vmem:[#allocation2 + $0x3a8] sm:$0xff]
    %v564 = vld [vmem:[#allocation2 + $0x3b0] sm:$0xff]
    %v565 = vld [vmem:[#allocation2 + $0x3b8] sm:$0xff]
    %v566 = vld [vmem:[#allocation2 + $0x3c0] sm:$0xff]
    %v567 = vld [vmem:[#allocation2 + $0x3c8] sm:$0xff]
    %v568 = vld [vmem:[#allocation2 + $0x3d0] sm:$0xff]
    %v569 = vld [vmem:[#allocation2 + $0x3d8] sm:$0xff]
    %v570 = vld [vmem:[#allocation2 + $0x3e0] sm:$0xff]
    %v571 = vld [vmem:[#allocation2 + $0x3e8] sm:$0xff]
    %v572 = vld [vmem:[#allocation2 + $0x3f0] sm:$0xff]
    %v573 = vld [vmem:[#allocation2 + $0x3f8] sm:$0xff]
    %v574 = vld [vmem:[#allocation2 + $0x400] sm:$0xff]
    %v575 = vld [vmem:[#allocation2 + $0x408] sm:$0xff]
    %v576 = vld [vmem:[#allocation2 + $0x410] sm:$0xff]
    %v577 = vld [vmem:[#allocation2 + $0x418] sm:$0xff]
    %v578 = vld [vmem:[#allocation2 + $0x420] sm:$0xff]
    %v579 = vld [vmem:[#allocation2 + $0x428] sm:$0xff]
    %v580 = vld [vmem:[#allocation2 + $0x430] sm:$0xff]
    %v581 = vld [vmem:[#allocation2 + $0x438] sm:$0xff]
    %v582 = vld [vmem:[#allocation2 + $0x440] sm:$0xff]
    %v583 = vld [vmem:[#allocation2 + $0x448] sm:$0xff]
    %v584 = vld [vmem:[#allocation2 + $0x450] sm:$0xff]
    %v585 = vld [vmem:[#allocation2 + $0x458] sm:$0xff]
    %v586 = vld [vmem:[#allocation2 + $0x460] sm:$0xff]
    %v587 = vld [vmem:[#allocation2 + $0x468] sm:$0xff]
    %v588 = vld [vmem:[#allocation2 + $0x470] sm:$0xff]
    %v589 = vld [vmem:[#allocation2 + $0x478] sm:$0xff]
    %v590 = vld [vmem:[#allocation2 + $0x480] sm:$0xff]
    %v591 = vld [vmem:[#allocation2 + $0x488] sm:$0xff]
    %v592 = vld [vmem:[#allocation2 + $0x490] sm:$0xff]
    %v593 = vld [vmem:[#allocation2 + $0x498] sm:$0xff]
    %v594 = vld [vmem:[#allocation2 + $0x4a0] sm:$0xff]
    %v595 = vld [vmem:[#allocation2 + $0x4a8] sm:$0xff]
    %v596 = vld [vmem:[#allocation2 + $0x4b0] sm:$0xff]
    %v597 = vld [vmem:[#allocation2 + $0x4b8] sm:$0xff]
    %v598 = vld [vmem:[#allocation2 + $0x4c0] sm:$0xff]
    %v599 = vld [vmem:[#allocation2 + $0x4c8] sm:$0xff]
    %v600 = vld [vmem:[#allocation2 + $0x4d0] sm:$0xff]
    %v601 = vld [vmem:[#allocation2 + $0x4d8] sm:$0xff]
    %v602 = vld [vmem:[#allocation2 + $0x4e0] sm:$0xff]
    %v603 = vld [vmem:[#allocation2 + $0x4e8] sm:$0xff]
    %v604 = vld [vmem:[#allocation2 + $0x4f0] sm:$0xff]
    %v605 = vld [vmem:[#allocation2 + $0x4f8] sm:$0xff]
    %v606 = vld [vmem:[#allocation2 + $0x500] sm:$0xff]
    %v607 = vld [vmem:[#allocation2 + $0x508] sm:$0xff]
    %v608 = vld [vmem:[#allocation2 + $0x510] sm:$0xff]
    %v609 = vld [vmem:[#allocation2 + $0x518] sm:$0xff]
    %v610 = vld [vmem:[#allocation2 + $0x520] sm:$0xff]
    %v611 = vld [vmem:[#allocation2 + $0x528] sm:$0xff]
    %v612 = vld [vmem:[#allocation2 + $0x530] sm:$0xff]
    %v613 = vld [vmem:[#allocation2 + $0x538] sm:$0xff]
    %v614 = vld [vmem:[#allocation2 + $0x540] sm:$0xff]
    %v615 = vld [vmem:[#allocation2 + $0x548] sm:$0xff]
    %v616 = vld [vmem:[#allocation2 + $0x550] sm:$0xff]
    %v617 = vld [vmem:[#allocation2 + $0x558] sm:$0xff]
    %v618 = vld [vmem:[#allocation2 + $0x560] sm:$0xff]
    %v619 = vld [vmem:[#allocation2 + $0x568] sm:$0xff]
    %v620 = vld [vmem:[#allocation2 + $0x570] sm:$0xff]
    %v621 = vld [vmem:[#allocation2 + $0x578] sm:$0xff]
    %v622 = vld [vmem:[#allocation2 + $0x580] sm:$0xff]
    %v623 = vld [vmem:[#allocation2 + $0x588] sm:$0xff]
    %v624 = vld [vmem:[#allocation2 + $0x590] sm:$0xff]
    %v625 = vld [vmem:[#allocation2 + $0x598] sm:$0xff]
    %v626 = vld [vmem:[#allocation2 + $0x5a0] sm:$0xff]
    %v627 = vld [vmem:[#allocation2 + $0x5a8] sm:$0xff]
    %v628 = vld [vmem:[#allocation2 + $0x5b0] sm:$0xff]
    %v629 = vld [vmem:[#allocation2 + $0x5b8] sm:$0xff]
    %v630 = vld [vmem:[#allocation2 + $0x5c0] sm:$0xff]
    %v631 = vld [vmem:[#allocation2 + $0x5c8] sm:$0xff]
    %v632 = vld [vmem:[#allocation2 + $0x5d0] sm:$0xff]
    %v633 = vld [vmem:[#allocation2 + $0x5d8] sm:$0xff]
    %v634 = vld [vmem:[#allocation2 + $0x5e0] sm:$0xff]
    %v635 = vld [vmem:[#allocation2 + $0x5e8] sm:$0xff]
    %v636 = vld [vmem:[#allocation2 + $0x5f0] sm:$0xff]
    %v637 = vld [vmem:[#allocation2 + $0x5f8] sm:$0xff]
    %v638 = vld [vmem:[#allocation2 + $0x600] sm:$0xff]
    %v639 = vld [vmem:[#allocation2 + $0x608] sm:$0xff]
    %v640 = vld [vmem:[#allocation2 + $0x610] sm:$0xff]
    %v641 = vld [vmem:[#allocation2 + $0x618] sm:$0xff]
    %v642 = vld [vmem:[#allocation2 + $0x620] sm:$0xff]
    %v643 = vld [vmem:[#allocation2 + $0x628] sm:$0xff]
    %v644 = vld [vmem:[#allocation2 + $0x630] sm:$0xff]
    %v645 = vld [vmem:[#allocation2 + $0x638] sm:$0xff]
    %v646 = vld [vmem:[#allocation2 + $0x640] sm:$0xff]
    %v647 = vld [vmem:[#allocation2 + $0x648] sm:$0xff]
    %v648 = vld [vmem:[#allocation2 + $0x650] sm:$0xff]
    %v649 = vld [vmem:[#allocation2 + $0x658] sm:$0xff]
    %v650 = vld [vmem:[#allocation2 + $0x660] sm:$0xff]
    %v651 = vld [vmem:[#allocation2 + $0x668] sm:$0xff]
    %v652 = vld [vmem:[#allocation2 + $0x670] sm:$0xff]
    %v653 = vld [vmem:[#allocation2 + $0x678] sm:$0xff]
    %v654 = vld [vmem:[#allocation2 + $0x680] sm:$0xff]
    %v655 = vld [vmem:[#allocation2 + $0x688] sm:$0xff]
    %v656 = vld [vmem:[#allocation2 + $0x690] sm:$0xff]
    %v657 = vld [vmem:[#allocation2 + $0x698] sm:$0xff]
    %v658 = vld [vmem:[#allocation2 + $0x6a0] sm:$0xff]
    %v659 = vld [vmem:[#allocation2 + $0x6a8] sm:$0xff]
    %v660 = vld [vmem:[#allocation2 + $0x6b0] sm:$0xff]
    %v661 = vld [vmem:[#allocation2 + $0x6b8] sm:$0xff]
    %v662 = vld [vmem:[#allocation2 + $0x6c0] sm:$0xff]
    %v663 = vld [vmem:[#allocation2 + $0x6c8] sm:$0xff]
    %v664 = vld [vmem:[#allocation2 + $0x6d0] sm:$0xff]
    %v665 = vld [vmem:[#allocation2 + $0x6d8] sm:$0xff]
    %v666 = vld [vmem:[#allocation2 + $0x6e0] sm:$0xff]
    %v667 = vld [vmem:[#allocation2 + $0x6e8] sm:$0xff]
    %v668 = vld [vmem:[#allocation2 + $0x6f0] sm:$0xff]
    %v669 = vld [vmem:[#allocation2 + $0x6f8] sm:$0xff]
    %v670 = vld [vmem:[#allocation2 + $0x700] sm:$0xff]
    %v671 = vld [vmem:[#allocation2 + $0x708] sm:$0xff]
    %v672 = vld [vmem:[#allocation2 + $0x710] sm:$0xff]
    %v673 = vld [vmem:[#allocation2 + $0x718] sm:$0xff]
    %v674 = vld [vmem:[#allocation2 + $0x720] sm:$0xff]
    %v675 = vld [vmem:[#allocation2 + $0x728] sm:$0xff]
    %v676 = vld [vmem:[#allocation2 + $0x730] sm:$0xff]
    %v677 = vld [vmem:[#allocation2 + $0x738] sm:$0xff]
    %v678 = vld [vmem:[#allocation2 + $0x740] sm:$0xff]
    %v679 = vld [vmem:[#allocation2 + $0x748] sm:$0xff]
    %v680 = vld [vmem:[#allocation2 + $0x750] sm:$0xff]
    %v681 = vld [vmem:[#allocation2 + $0x758] sm:$0xff]
    %v682 = vld [vmem:[#allocation2 + $0x760] sm:$0xff]
    %v683 = vld [vmem:[#allocation2 + $0x768] sm:$0xff]
    %v684 = vld [vmem:[#allocation2 + $0x770] sm:$0xff]
    %v685 = vld [vmem:[#allocation2 + $0x778] sm:$0xff]
    %v686 = vld [vmem:[#allocation2 + $0x780] sm:$0xff]
    %v687 = vld [vmem:[#allocation2 + $0x788] sm:$0xff]
    %v688 = vld [vmem:[#allocation2 + $0x790] sm:$0xff]
    %v689 = vld [vmem:[#allocation2 + $0x798] sm:$0xff]
    %v690 = vld [vmem:[#allocation2 + $0x7a0] sm:$0xff]
    %v691 = vld [vmem:[#allocation2 + $0x7a8] sm:$0xff]
    %v692 = vld [vmem:[#allocation2 + $0x7b0] sm:$0xff]
    %v693 = vld [vmem:[#allocation2 + $0x7b8] sm:$0xff]
    %v694 = vld [vmem:[#allocation2 + $0x7c0] sm:$0xff]
    %v695 = vld [vmem:[#allocation2 + $0x7c8] sm:$0xff]
    %v696 = vld [vmem:[#allocation2 + $0x7d0] sm:$0xff]
    %v697 = vld [vmem:[#allocation2 + $0x7d8] sm:$0xff]
    %v698 = vld [vmem:[#allocation2 + $0x7e0] sm:$0xff]
    %v699 = vld [vmem:[#allocation2 + $0x7e8] sm:$0xff]
    %v700 = vld [vmem:[#allocation2 + $0x7f0] sm:$0xff]
    %v701 = vld [vmem:[#allocation2 + $0x7f8] sm:$0xff]
    %v702 = vld [vmem:[#allocation2 + $0x800] sm:$0xff]
    %v703 = vld [vmem:[#allocation2 + $0x808] sm:$0xff]
    %v704 = vld [vmem:[#allocation2 + $0x810] sm:$0xff]
    %v705 = vld [vmem:[#allocation2 + $0x818] sm:$0xff]
    %v706 = vld [vmem:[#allocation2 + $0x820] sm:$0xff]
    %v707 = vld [vmem:[#allocation2 + $0x828] sm:$0xff]
    %v708 = vld [vmem:[#allocation2 + $0x830] sm:$0xff]
    %v709 = vld [vmem:[#allocation2 + $0x838] sm:$0xff]
    %v710 = vld [vmem:[#allocation2 + $0x840] sm:$0xff]
    %v711 = vld [vmem:[#allocation2 + $0x848] sm:$0xff]
    %v712 = vld [vmem:[#allocation2 + $0x850] sm:$0xff]
    %v713 = vld [vmem:[#allocation2 + $0x858] sm:$0xff]
    %v714 = vld [vmem:[#allocation2 + $0x860] sm:$0xff]
    %v715 = vld [vmem:[#allocation2 + $0x868] sm:$0xff]
    %v716 = vld [vmem:[#allocation2 + $0x870] sm:$0xff]
    %v717 = vld [vmem:[#allocation2 + $0x878] sm:$0xff]
    %v718 = vld [vmem:[#allocation2 + $0x880] sm:$0xff]
    %v719 = vld [vmem:[#allocation2 + $0x888] sm:$0xff]
    %v720 = vld [vmem:[#allocation2 + $0x890] sm:$0xff]
    %v721 = vld [vmem:[#allocation2 + $0x898] sm:$0xff]
    %v722 = vld [vmem:[#allocation2 + $0x8a0] sm:$0xff]
    %v723 = vld [vmem:[#allocation2 + $0x8a8] sm:$0xff]
    %v724 = vld [vmem:[#allocation2 + $0x8b0] sm:$0xff]
    %v725 = vld [vmem:[#allocation2 + $0x8b8] sm:$0xff]
    %v726 = vld [vmem:[#allocation2 + $0x8c0] sm:$0xff]
    %v727 = vld [vmem:[#allocation2 + $0x8c8] sm:$0xff]
    %v728 = vld [vmem:[#allocation2 + $0x8d0] sm:$0xff]
    %v729 = vld [vmem:[#allocation2 + $0x8d8] sm:$0xff]
    %v730 = vld [vmem:[#allocation2 + $0x8e0] sm:$0xff]
    %v731 = vld [vmem:[#allocation2 + $0x8e8] sm:$0xff]
    %v732 = vld [vmem:[#allocation2 + $0x8f0] sm:$0xff]
    %v733 = vld [vmem:[#allocation2 + $0x8f8] sm:$0xff]
    %v734 = vld [vmem:[#allocation2 + $0x900] sm:$0xff]
    %v735 = vld [vmem:[#allocation2 + $0x908] sm:$0xff]
    %v736 = vld [vmem:[#allocation2 + $0x910] sm:$0xff]
    %v737 = vld [vmem:[#allocation2 + $0x918] sm:$0xff]
    %v738 = vld [vmem:[#allocation2 + $0x920] sm:$0xff]
    %v739 = vld [vmem:[#allocation2 + $0x928] sm:$0xff]
    %v740 = vld [vmem:[#allocation2 + $0x930] sm:$0xff]
    %v741 = vld [vmem:[#allocation2 + $0x938] sm:$0xff]
    %v742 = vld [vmem:[#allocation2 + $0x940] sm:$0xff]
    %v743 = vld [vmem:[#allocation2 + $0x948] sm:$0xff]
    %v744 = vld [vmem:[#allocation2 + $0x950] sm:$0xff]
    %v745 = vld [vmem:[#allocation2 + $0x958] sm:$0xff]
    %v746 = vld [vmem:[#allocation2 + $0x960] sm:$0xff]
    %v747 = vld [vmem:[#allocation2 + $0x968] sm:$0xff]
    %v748 = vld [vmem:[#allocation2 + $0x970] sm:$0xff]
    %v749 = vld [vmem:[#allocation2 + $0x978] sm:$0xff]
    %v750 = vld [vmem:[#allocation2 + $0x980] sm:$0xff]
    %v751 = vld [vmem:[#allocation2 + $0x988] sm:$0xff]
    %v752 = vld [vmem:[#allocation2 + $0x990] sm:$0xff]
    %v753 = vld [vmem:[#allocation2 + $0x998] sm:$0xff]
    %v754 = vld [vmem:[#allocation2 + $0x9a0] sm:$0xff]
    %v755 = vld [vmem:[#allocation2 + $0x9a8] sm:$0xff]
    %v756 = vld [vmem:[#allocation2 + $0x9b0] sm:$0xff]
    %v757 = vld [vmem:[#allocation2 + $0x9b8] sm:$0xff]
    %v758 = vld [vmem:[#allocation2 + $0x9c0] sm:$0xff]
    %v759 = vld [vmem:[#allocation2 + $0x9c8] sm:$0xff]
    %v760 = vld [vmem:[#allocation2 + $0x9d0] sm:$0xff]
    %v761 = vld [vmem:[#allocation2 + $0x9d8] sm:$0xff]
    %v762 = vld [vmem:[#allocation2 + $0x9e0] sm:$0xff]
    %v763 = vld [vmem:[#allocation2 + $0x9e8] sm:$0xff]
    %v764 = vld [vmem:[#allocation2 + $0x9f0] sm:$0xff]
    %v765 = vld [vmem:[#allocation2 + $0x9f8] sm:$0xff]
    %v766 = vld [vmem:[#allocation2 + $0xa00] sm:$0xff]
    %v767 = vld [vmem:[#allocation2 + $0xa08] sm:$0xff]
    %v768 = vld [vmem:[#allocation2 + $0xa10] sm:$0xff]
    %v769 = vld [vmem:[#allocation2 + $0xa18] sm:$0xff]
    %v770 = vld [vmem:[#allocation2 + $0xa20] sm:$0xff]
    %v771 = vld [vmem:[#allocation2 + $0xa28] sm:$0xff]
    %v772 = vld [vmem:[#allocation2 + $0xa30] sm:$0xff]
    %v773 = vld [vmem:[#allocation2 + $0xa38] sm:$0xff]
    %v774 = vld [vmem:[#allocation2 + $0xa40] sm:$0xff]
    %v775 = vld [vmem:[#allocation2 + $0xa48] sm:$0xff]
    %v776 = vld [vmem:[#allocation2 + $0xa50] sm:$0xff]
    %v777 = vld [vmem:[#allocation2 + $0xa58] sm:$0xff]
    %v778 = vld [vmem:[#allocation2 + $0xa60] sm:$0xff]
    %v779 = vld [vmem:[#allocation2 + $0xa68] sm:$0xff]
    %v780 = vld [vmem:[#allocation2 + $0xa70] sm:$0xff]
    %v781 = vld [vmem:[#allocation2 + $0xa78] sm:$0xff]
    %v782 = vld [vmem:[#allocation2 + $0xa80] sm:$0xff]
    %v783 = vld [vmem:[#allocation2 + $0xa88] sm:$0xff]
    %v784 = vld [vmem:[#allocation2 + $0xa90] sm:$0xff]
    %v785 = vld [vmem:[#allocation2 + $0xa98] sm:$0xff]
    %v786 = vld [vmem:[#allocation2 + $0xaa0] sm:$0xff]
    %v787 = vld [vmem:[#allocation2 + $0xaa8] sm:$0xff]
    %v788 = vld [vmem:[#allocation2 + $0xab0] sm:$0xff]
    %v789 = vld [vmem:[#allocation2 + $0xab8] sm:$0xff]
    %v790 = vld [vmem:[#allocation2 + $0xac0] sm:$0xff]
    %v791 = vld [vmem:[#allocation2 + $0xac8] sm:$0xff]
    %v792 = vld [vmem:[#allocation2 + $0xad0] sm:$0xff]
    %v793 = vld [vmem:[#allocation2 + $0xad8] sm:$0xff]
    %v794 = vld [vmem:[#allocation2 + $0xae0] sm:$0xff]
    %v795 = vld [vmem:[#allocation2 + $0xae8] sm:$0xff]
    %v796 = vld [vmem:[#allocation2 + $0xaf0] sm:$0xff]
    %v797 = vld [vmem:[#allocation2 + $0xaf8] sm:$0xff]
    %v798 = vld [vmem:[#allocation2 + $0xb00] sm:$0xff]
    %v799 = vld [vmem:[#allocation2 + $0xb08] sm:$0xff]
    %v800 = vld [vmem:[#allocation2 + $0xb10] sm:$0xff]
    %v801 = vld [vmem:[#allocation2 + $0xb18] sm:$0xff]
    %v802 = vld [vmem:[#allocation2 + $0xb20] sm:$0xff]
    %v803 = vld [vmem:[#allocation2 + $0xb28] sm:$0xff]
    %v804 = vld [vmem:[#allocation2 + $0xb30] sm:$0xff]
    %v805 = vld [vmem:[#allocation2 + $0xb38] sm:$0xff]
    %v806 = vld [vmem:[#allocation2 + $0xb40] sm:$0xff]
    %v807 = vld [vmem:[#allocation2 + $0xb48] sm:$0xff]
    %v808 = vld [vmem:[#allocation2 + $0xb50] sm:$0xff]
    %v809 = vld [vmem:[#allocation2 + $0xb58] sm:$0xff]
    %v810 = vld [vmem:[#allocation2 + $0xb60] sm:$0xff]
    %v811 = vld [vmem:[#allocation2 + $0xb68] sm:$0xff]
    %v812 = vld [vmem:[#allocation2 + $0xb70] sm:$0xff]
    %v813 = vld [vmem:[#allocation2 + $0xb78] sm:$0xff]
    %v814 = vld [vmem:[#allocation2 + $0xb80] sm:$0xff]
    %v815 = vld [vmem:[#allocation2 + $0xb88] sm:$0xff]
    %v816 = vld [vmem:[#allocation2 + $0xb90] sm:$0xff]
    %v817 = vld [vmem:[#allocation2 + $0xb98] sm:$0xff]
    %v818 = vld [vmem:[#allocation2 + $0xba0] sm:$0xff]
    %v819 = vld [vmem:[#allocation2 + $0xba8] sm:$0xff]
    %v820 = vld [vmem:[#allocation2 + $0xbb0] sm:$0xff]
    %v821 = vld [vmem:[#allocation2 + $0xbb8] sm:$0xff]
    %v822 = vld [vmem:[#allocation2 + $0xbc0] sm:$0xff]
    %v823 = vld [vmem:[#allocation2 + $0xbc8] sm:$0xff]
    %v824 = vld [vmem:[#allocation2 + $0xbd0] sm:$0xff]
    %v825 = vld [vmem:[#allocation2 + $0xbd8] sm:$0xff]
    %v826 = vld [vmem:[#allocation2 + $0xbe0] sm:$0xff]
    %v827 = vld [vmem:[#allocation2 + $0xbe8] sm:$0xff]
    %v828 = vld [vmem:[#allocation2 + $0xbf0] sm:$0xff]
    %v829 = vld [vmem:[#allocation2 + $0xbf8] sm:$0xff]
    %v830 = vld [vmem:[#allocation2 + $0xc00] sm:$0xff]
    %v831 = vld [vmem:[#allocation2 + $0xc08] sm:$0xff]
    %v832 = vld [vmem:[#allocation2 + $0xc10] sm:$0xff]
    %v833 = vld [vmem:[#allocation2 + $0xc18] sm:$0xff]
    %v834 = vld [vmem:[#allocation2 + $0xc20] sm:$0xff]
    %v835 = vld [vmem:[#allocation2 + $0xc28] sm:$0xff]
    %v836 = vld [vmem:[#allocation2 + $0xc30] sm:$0xff]
    %v837 = vld [vmem:[#allocation2 + $0xc38] sm:$0xff]
    %v838 = vld [vmem:[#allocation2 + $0xc40] sm:$0xff]
    %v839 = vld [vmem:[#allocation2 + $0xc48] sm:$0xff]
    %v840 = vld [vmem:[#allocation2 + $0xc50] sm:$0xff]
    %v841 = vld [vmem:[#allocation2 + $0xc58] sm:$0xff]
    %v842 = vld [vmem:[#allocation2 + $0xc60] sm:$0xff]
    %v843 = vld [vmem:[#allocation2 + $0xc68] sm:$0xff]
    %v844 = vld [vmem:[#allocation2 + $0xc70] sm:$0xff]
    %v845 = vld [vmem:[#allocation2 + $0xc78] sm:$0xff]
    %v846 = vld [vmem:[#allocation2 + $0xc80] sm:$0xff]
    %v847 = vld [vmem:[#allocation2 + $0xc88] sm:$0xff]
    %v848 = vld [vmem:[#allocation2 + $0xc90] sm:$0xff]
    %v849 = vld [vmem:[#allocation2 + $0xc98] sm:$0xff]
    %v850 = vld [vmem:[#allocation2 + $0xca0] sm:$0xff]
    %v851 = vld [vmem:[#allocation2 + $0xca8] sm:$0xff]
    %v852 = vld [vmem:[#allocation2 + $0xcb0] sm:$0xff]
    %v853 = vld [vmem:[#allocation2 + $0xcb8] sm:$0xff]
    %v854 = vld [vmem:[#allocation2 + $0xcc0] sm:$0xff]
    %v855 = vld [vmem:[#allocation2 + $0xcc8] sm:$0xff]
    %v856 = vld [vmem:[#allocation2 + $0xcd0] sm:$0xff]
    %v857 = vld [vmem:[#allocation2 + $0xcd8] sm:$0xff]
    %v858 = vld [vmem:[#allocation2 + $0xce0] sm:$0xff]
    %v859 = vld [vmem:[#allocation2 + $0xce8] sm:$0xff]
    %v860 = vld [vmem:[#allocation2 + $0xcf0] sm:$0xff]
    %v861 = vld [vmem:[#allocation2 + $0xcf8] sm:$0xff]
    %v862 = vld [vmem:[#allocation2 + $0xd00] sm:$0xff]
    %v863 = vld [vmem:[#allocation2 + $0xd08] sm:$0xff]
    %v864 = vld [vmem:[#allocation2 + $0xd10] sm:$0xff]
    %v865 = vld [vmem:[#allocation2 + $0xd18] sm:$0xff]
    %v866 = vld [vmem:[#allocation2 + $0xd20] sm:$0xff]
    %v867 = vld [vmem:[#allocation2 + $0xd28] sm:$0xff]
    %v868 = vld [vmem:[#allocation2 + $0xd30] sm:$0xff]
    %v869 = vld [vmem:[#allocation2 + $0xd38] sm:$0xff]
    %v870 = vld [vmem:[#allocation2 + $0xd40] sm:$0xff]
    %v871 = vld [vmem:[#allocation2 + $0xd48] sm:$0xff]
    %v872 = vld [vmem:[#allocation2 + $0xd50] sm:$0xff]
    %v873 = vld [vmem:[#allocation2 + $0xd58] sm:$0xff]
    %v874 = vld [vmem:[#allocation2 + $0xd60] sm:$0xff]
    %v875 = vld [vmem:[#allocation2 + $0xd68] sm:$0xff]
    %v876 = vld [vmem:[#allocation2 + $0xd70] sm:$0xff]
    %v877 = vld [vmem:[#allocation2 + $0xd78] sm:$0xff]
    %v878 = vld [vmem:[#allocation2 + $0xd80] sm:$0xff]
    %v879 = vld [vmem:[#allocation2 + $0xd88] sm:$0xff]
    %v880 = vld [vmem:[#allocation2 + $0xd90] sm:$0xff]
    %v881 = vld [vmem:[#allocation2 + $0xd98] sm:$0xff]
    %v882 = vld [vmem:[#allocation2 + $0xda0] sm:$0xff]
    %v883 = vld [vmem:[#allocation2 + $0xda8] sm:$0xff]
    %v884 = vld [vmem:[#allocation2 + $0xdb0] sm:$0xff]
    %v885 = vld [vmem:[#allocation2 + $0xdb8] sm:$0xff]
    %v886 = vld [vmem:[#allocation2 + $0xdc0] sm:$0xff]
    %v887 = vld [vmem:[#allocation2 + $0xdc8] sm:$0xff]
    %v888 = vld [vmem:[#allocation2 + $0xdd0] sm:$0xff]
    %v889 = vld [vmem:[#allocation2 + $0xdd8] sm:$0xff]
    %v890 = vld [vmem:[#allocation2 + $0xde0] sm:$0xff]
    %v891 = vld [vmem:[#allocation2 + $0xde8] sm:$0xff]
    %v892 = vld [vmem:[#allocation2 + $0xdf0] sm:$0xff]
    %v893 = vld [vmem:[#allocation2 + $0xdf8] sm:$0xff]
    %v894 = vld [vmem:[#allocation2 + $0xe00] sm:$0xff]
    %v895 = vld [vmem:[#allocation2 + $0xe08] sm:$0xff]
    %v896 = vld [vmem:[#allocation2 + $0xe10] sm:$0xff]
    %v897 = vld [vmem:[#allocation2 + $0xe18] sm:$0xff]
    %v898 = vld [vmem:[#allocation2 + $0xe20] sm:$0xff]
    %v899 = vld [vmem:[#allocation2 + $0xe28] sm:$0xff]
    %v900 = vld [vmem:[#allocation2 + $0xe30] sm:$0xff]
    %v901 = vld [vmem:[#allocation2 + $0xe38] sm:$0xff]
    %v902 = vld [vmem:[#allocation2 + $0xe40] sm:$0xff]
    %v903 = vld [vmem:[#allocation2 + $0xe48] sm:$0xff]
    %v904 = vld [vmem:[#allocation2 + $0xe50] sm:$0xff]
    %v905 = vld [vmem:[#allocation2 + $0xe58] sm:$0xff]
    %v906 = vld [vmem:[#allocation2 + $0xe60] sm:$0xff]
    %v907 = vld [vmem:[#allocation2 + $0xe68] sm:$0xff]
    %v908 = vld [vmem:[#allocation2 + $0xe70] sm:$0xff]
    %v909 = vld [vmem:[#allocation2 + $0xe78] sm:$0xff]
    %v910 = vld [vmem:[#allocation2 + $0xe80] sm:$0xff]
    %v911 = vld [vmem:[#allocation2 + $0xe88] sm:$0xff]
    %v912 = vld [vmem:[#allocation2 + $0xe90] sm:$0xff]
    %v913 = vld [vmem:[#allocation2 + $0xe98] sm:$0xff]
    %v914 = vld [vmem:[#allocation2 + $0xea0] sm:$0xff]
    %v915 = vld [vmem:[#allocation2 + $0xea8] sm:$0xff]
    %v916 = vld [vmem:[#allocation2 + $0xeb0] sm:$0xff]
    %v917 = vld [vmem:[#allocation2 + $0xeb8] sm:$0xff]
    %v918 = vld [vmem:[#allocation2 + $0xec0] sm:$0xff]
    %v919 = vld [vmem:[#allocation2 + $0xec8] sm:$0xff]
    %v920 = vld [vmem:[#allocation2 + $0xed0] sm:$0xff]
    %v921 = vld [vmem:[#allocation2 + $0xed8] sm:$0xff]
    %v922 = vld [vmem:[#allocation2 + $0xee0] sm:$0xff]
    %v923 = vld [vmem:[#allocation2 + $0xee8] sm:$0xff]
    %v924 = vld [vmem:[#allocation2 + $0xef0] sm:$0xff]
    %v925 = vld [vmem:[#allocation2 + $0xef8] sm:$0xff]
    %v926 = vld [vmem:[#allocation2 + $0xf00] sm:$0xff]
    %v927 = vld [vmem:[#allocation2 + $0xf08] sm:$0xff]
    %v928 = vld [vmem:[#allocation2 + $0xf10] sm:$0xff]
    %v929 = vld [vmem:[#allocation2 + $0xf18] sm:$0xff]
    %v930 = vld [vmem:[#allocation2 + $0xf20] sm:$0xff]
    %v931 = vld [vmem:[#allocation2 + $0xf28] sm:$0xff]
    %v932 = vld [vmem:[#allocation2 + $0xf30] sm:$0xff]
    %v933 = vld [vmem:[#allocation2 + $0xf38] sm:$0xff]
    %v934 = vld [vmem:[#allocation2 + $0xf40] sm:$0xff]
    %v935 = vld [vmem:[#allocation2 + $0xf48] sm:$0xff]
    %v936 = vld [vmem:[#allocation2 + $0xf50] sm:$0xff]
    %v937 = vld [vmem:[#allocation2 + $0xf58] sm:$0xff]
    %v938 = vld [vmem:[#allocation2 + $0xf60] sm:$0xff]
    %v939 = vld [vmem:[#allocation2 + $0xf68] sm:$0xff]
    %v940 = vld [vmem:[#allocation2 + $0xf70] sm:$0xff]
    %v941 = vld [vmem:[#allocation2 + $0xf78] sm:$0xff]
    %v942 = vld [vmem:[#allocation2 + $0xf80] sm:$0xff]
    %v943 = vld [vmem:[#allocation2 + $0xf88] sm:$0xff]
    %v944 = vld [vmem:[#allocation2 + $0xf90] sm:$0xff]
    %v945 = vld [vmem:[#allocation2 + $0xf98] sm:$0xff]
    %v946 = vld [vmem:[#allocation2 + $0xfa0] sm:$0xff]
    %v947 = vld [vmem:[#allocation2 + $0xfa8] sm:$0xff]
    %v948 = vld [vmem:[#allocation2 + $0xfb0] sm:$0xff]
    %v949 = vld [vmem:[#allocation2 + $0xfb8] sm:$0xff]
    %v950 = vld [vmem:[#allocation2 + $0xfc0] sm:$0xff]
    %v951 = vld [vmem:[#allocation2 + $0xfc8] sm:$0xff]
    %v952 = vld [vmem:[#allocation2 + $0xfd0] sm:$0xff]
    %v953 = vld [vmem:[#allocation2 + $0xfd8] sm:$0xff]
    %v954 = vld [vmem:[#allocation2 + $0xfe0] sm:$0xff]
    %v955 = vld [vmem:[#allocation2 + $0xfe8] sm:$0xff]
    %v956 = vld [vmem:[#allocation2 + $0xff0] sm:$0xff]
    %v957 = vld [vmem:[#allocation2 + $0xff8] sm:$0xff]
    %v958 = vld [vmem:[#allocation2 + $0x1000] sm:$0xff]
    %v959 = vld [vmem:[#allocation2 + $0x1008] sm:$0xff]
    %v960 = vld [vmem:[#allocation2 + $0x1010] sm:$0xff]
    %v961 = vld [vmem:[#allocation2 + $0x1018] sm:$0xff]
    %v962 = vld [vmem:[#allocation2 + $0x1020] sm:$0xff]
    %v963 = vld [vmem:[#allocation2 + $0x1028] sm:$0xff]
    %v964 = vld [vmem:[#allocation2 + $0x1030] sm:$0xff]
    %v965 = vld [vmem:[#allocation2 + $0x1038] sm:$0xff]
    %v966 = vld [vmem:[#allocation2 + $0x1040] sm:$0xff]
    %v967 = vld [vmem:[#allocation2 + $0x1048] sm:$0xff]
    %v968 = vld [vmem:[#allocation2 + $0x1050] sm:$0xff]
    %v969 = vld [vmem:[#allocation2 + $0x1058] sm:$0xff]
    %v970 = vld [vmem:[#allocation2 + $0x1060] sm:$0xff]
    %v971 = vld [vmem:[#allocation2 + $0x1068] sm:$0xff]
    %v972 = vld [vmem:[#allocation2 + $0x1070] sm:$0xff]
    %v973 = vld [vmem:[#allocation2 + $0x1078] sm:$0xff]
    %v974 = vld [vmem:[#allocation2 + $0x1080] sm:$0xff]
    %v975 = vld [vmem:[#allocation2 + $0x1088] sm:$0xff]
    %v976 = vld [vmem:[#allocation2 + $0x1090] sm:$0xff]
    %v977 = vld [vmem:[#allocation2 + $0x1098] sm:$0xff]
    %v978 = vld [vmem:[#allocation2 + $0x10a0] sm:$0xff]
    %v979 = vld [vmem:[#allocation2 + $0x10a8] sm:$0xff]
    %v980 = vld [vmem:[#allocation2 + $0x10b0] sm:$0xff]
    %v981 = vld [vmem:[#allocation2 + $0x10b8] sm:$0xff]
    %v982 = vld [vmem:[#allocation2 + $0x10c0] sm:$0xff]
    %v983 = vld [vmem:[#allocation2 + $0x10c8] sm:$0xff]
    %v984 = vld [vmem:[#allocation2 + $0x10d0] sm:$0xff]
    %v985 = vld [vmem:[#allocation2 + $0x10d8] sm:$0xff]
    %v986 = vld [vmem:[#allocation2 + $0x10e0] sm:$0xff]
    %v987 = vld [vmem:[#allocation2 + $0x10e8] sm:$0xff]
    %v988 = vld [vmem:[#allocation2 + $0x10f0] sm:$0xff]
    %v989 = vld [vmem:[#allocation2 + $0x10f8] sm:$0xff]
    %v990 = vld [vmem:[#allocation2 + $0x1100] sm:$0xff]
    %v991 = vld [vmem:[#allocation2 + $0x1108] sm:$0xff]
    %v992 = vld [vmem:[#allocation2 + $0x1110] sm:$0xff]
    %v993 = vld [vmem:[#allocation2 + $0x1118] sm:$0xff]
    %v994 = vld [vmem:[#allocation2 + $0x1120] sm:$0xff]
    %v995 = vld [vmem:[#allocation2 + $0x1128] sm:$0xff]
    %v996 = vld [vmem:[#allocation2 + $0x1130] sm:$0xff]
    %v997 = vld [vmem:[#allocation2 + $0x1138] sm:$0xff]
    %v998 = vld [vmem:[#allocation2 + $0x1140] sm:$0xff]
    %v999 = vld [vmem:[#allocation2 + $0x1148] sm:$0xff]
    %v1000 = vld [vmem:[#allocation2 + $0x1150] sm:$0xff]
    %v1001 = vld [vmem:[#allocation2 + $0x1158] sm:$0xff]
    %v1002 = vld [vmem:[#allocation2 + $0x1160] sm:$0xff]
    %v1003 = vld [vmem:[#allocation2 + $0x1168] sm:$0xff]
    %v1004 = vld [vmem:[#allocation2 + $0x1170] sm:$0xff]
    %v1005 = vld [vmem:[#allocation2 + $0x1178] sm:$0xff]
    %v1006 = vld [vmem:[#allocation5] sm:$0x1f]
    %v1008 = vperm.slane %v1006, 0
    %v1009 = vperm.slane %v1006, 1
    %v1010 = vperm.slane %v1006, 2
    %v1011 = vperm.slane %v1006, 3
    %v1012 = vperm.slane %v1006, 4
    %1020 = vst [vmem:[#allocation1] ss:$4 sm:$0xff] %v444
    %s1021 = scalar_lea.vmem [#allocation1], 32
    %1022 = vst [vmem:[%s1021] ss:$4 sm:$0xff] %v445
    %v1023 = vld.sshfl [vmem:[#allocation1] sm:$0xff pattern:$0x73625140]
    %v1024 = vld.sshfl [vmem:[#allocation1 + $0x8] sm:$0xff pattern:$0x73625140]
    %v1025 = vld.sshfl [vmem:[#allocation1 + $0x10] sm:$0xff pattern:$0x73625140]
    %v1026 = vld.sshfl [vmem:[#allocation1 + $0x18] sm:$0xff pattern:$0x73625140]
    %v1027 = vld.sshfl [vmem:[#allocation1 + $0x20] sm:$0xff pattern:$0x73625140]
    %v1028 = vld.sshfl [vmem:[#allocation1 + $0x28] sm:$0xff pattern:$0x73625140]
    %v1029 = vld.sshfl [vmem:[#allocation1 + $0x30] sm:$0xff pattern:$0x73625140]
    %1037 = vmatpush.msra.mxu0 %v521
    %1038 = vmatpush.msra.mxu0 %v516
    %1039 = vmatpush.msra.mxu0 %v511
    %1040 = vmatpush.msra.mxu0 %v506
    %1041 = vmatpush.msra.mxu0 %v501
    %1042 = vmatpush.msra.mxu0 %v496
    %1043 = vmatpush.msra.mxu0 %v491
    %1044 = vmatpush.msra.mxu0 %v486
    %1045 = vmatpush.msra.mxu0 %v481
    %1046 = vmatpush.msra.mxu0 %v476
    %1047 = vmatpush.msra.mxu0 %v471
    %1048 = vmatpush.msra.mxu0 %v466
    %1049 = vmatpush.msra.mxu0 %v461
    %1050 = vmatpush.msra.mxu0 %v456
    %1051 = vmatpush.msra.mxu0 %v451
    %1052 = vmatpush.msra.mxu0 %v446
    %1053 = vmatmul.f32.gmra.mxu0 %v1023
    %v1054 = vpop.f32.mrf.mxu0
    %v1055 = vadd.f32 %v1008, %v1054
    %1056 = vdwg.mxu0
    %1057 = vmatpush.msra.mxu0 %v601
    %1058 = vmatpush.msra.mxu0 %v596
    %1059 = vmatpush.msra.mxu0 %v591
    %1060 = vmatpush.msra.mxu0 %v586
    %1061 = vmatpush.msra.mxu0 %v581
    %1062 = vmatpush.msra.mxu0 %v576
    %1063 = vmatpush.msra.mxu0 %v571
    %1064 = vmatpush.msra.mxu0 %v566
    %1065 = vmatpush.msra.mxu0 %v561
    %1066 = vmatpush.msra.mxu0 %v556
    %1067 = vmatpush.msra.mxu0 %v551
    %1068 = vmatpush.msra.mxu0 %v546
    %1069 = vmatpush.msra.mxu0 %v541
    %1070 = vmatpush.msra.mxu0 %v536
    %1071 = vmatpush.msra.mxu0 %v531
    %1072 = vmatpush.msra.mxu0 %v526
    %1073 = vmatmul.f32.gmra.mxu0 %v1024
    %v1074 = vpop.f32.mrf.mxu0
    %v1075 = vadd.f32 %v1055, %v1074
    %1076 = vdwg.mxu0
    %1077 = vmatpush.msra.mxu0 %v681
    %1078 = vmatpush.msra.mxu0 %v676
    %1079 = vmatpush.msra.mxu0 %v671
    %1080 = vmatpush.msra.mxu0 %v666
    %1081 = vmatpush.msra.mxu0 %v661
    %1082 = vmatpush.msra.mxu0 %v656
    %1083 = vmatpush.msra.mxu0 %v651
    %1084 = vmatpush.msra.mxu0 %v646
    %1085 = vmatpush.msra.mxu0 %v641
    %1086 = vmatpush.msra.mxu0 %v636
    %1087 = vmatpush.msra.mxu0 %v631
    %1088 = vmatpush.msra.mxu0 %v626
    %1089 = vmatpush.msra.mxu0 %v621
    %1090 = vmatpush.msra.mxu0 %v616
    %1091 = vmatpush.msra.mxu0 %v611
    %1092 = vmatpush.msra.mxu0 %v606
    %1093 = vmatmul.f32.gmra.mxu0 %v1025
    %v1094 = vpop.f32.mrf.mxu0
    %v1095 = vadd.f32 %v1075, %v1094
    %1096 = vdwg.mxu0
    %1097 = vmatpush.msra.mxu0 %v761
    %1098 = vmatpush.msra.mxu0 %v756
    %1099 = vmatpush.msra.mxu0 %v751
    %1100 = vmatpush.msra.mxu0 %v746
    %1101 = vmatpush.msra.mxu0 %v741
    %1102 = vmatpush.msra.mxu0 %v736
    %1103 = vmatpush.msra.mxu0 %v731
    %1104 = vmatpush.msra.mxu0 %v726
    %1105 = vmatpush.msra.mxu0 %v721
    %1106 = vmatpush.msra.mxu0 %v716
    %1107 = vmatpush.msra.mxu0 %v711
    %1108 = vmatpush.msra.mxu0 %v706
    %1109 = vmatpush.msra.mxu0 %v701
    %1110 = vmatpush.msra.mxu0 %v696
    %1111 = vmatpush.msra.mxu0 %v691
    %1112 = vmatpush.msra.mxu0 %v686
    %1113 = vmatmul.f32.gmra.mxu0 %v1026
    %v1114 = vpop.f32.mrf.mxu0
    %v1115 = vadd.f32 %v1095, %v1114
    %1116 = vdwg.mxu0
    %1117 = vmatpush.msra.mxu0 %v841
    %1118 = vmatpush.msra.mxu0 %v836
    %1119 = vmatpush.msra.mxu0 %v831
    %1120 = vmatpush.msra.mxu0 %v826
    %1121 = vmatpush.msra.mxu0 %v821
    %1122 = vmatpush.msra.mxu0 %v816
    %1123 = vmatpush.msra.mxu0 %v811
    %1124 = vmatpush.msra.mxu0 %v806
    %1125 = vmatpush.msra.mxu0 %v801
    %1126 = vmatpush.msra.mxu0 %v796
    %1127 = vmatpush.msra.mxu0 %v791
    %1128 = vmatpush.msra.mxu0 %v786
    %1129 = vmatpush.msra.mxu0 %v781
    %1130 = vmatpush.msra.mxu0 %v776
    %1131 = vmatpush.msra.mxu0 %v771
    %1132 = vmatpush.msra.mxu0 %v766
    %1133 = vmatmul.f32.gmra.mxu0 %v1027
    %v1134 = vpop.f32.mrf.mxu0
    %v1135 = vadd.f32 %v1115, %v1134
    %1136 = vdwg.mxu0
    %1137 = vmatpush.msra.mxu0 %v921
    %1138 = vmatpush.msra.mxu0 %v916
    %1139 = vmatpush.msra.mxu0 %v911
    %1140 = vmatpush.msra.mxu0 %v906
    %1141 = vmatpush.msra.mxu0 %v901
    %1142 = vmatpush.msra.mxu0 %v896
    %1143 = vmatpush.msra.mxu0 %v891
    %1144 = vmatpush.msra.mxu0 %v886
    %1145 = vmatpush.msra.mxu0 %v881
    %1146 = vmatpush.msra.mxu0 %v876
    %1147 = vmatpush.msra.mxu0 %v871
    %1148 = vmatpush.msra.mxu0 %v866
    %1149 = vmatpush.msra.mxu0 %v861
    %1150 = vmatpush.msra.mxu0 %v856
    %1151 = vmatpush.msra.mxu0 %v851
    %1152 = vmatpush.msra.mxu0 %v846
    %1153 = vmatmul.f32.gmra.mxu0 %v1028
    %v1154 = vpop.f32.mrf.mxu0
    %v1155 = vadd.f32 %v1135, %v1154
    %1156 = vdwg.mxu0
    %1157 = vmatpush.msra.mxu0 %v1001
    %1158 = vmatpush.msra.mxu0 %v996
    %1159 = vmatpush.msra.mxu0 %v991
    %1160 = vmatpush.msra.mxu0 %v986
    %1161 = vmatpush.msra.mxu0 %v981
    %1162 = vmatpush.msra.mxu0 %v976
    %1163 = vmatpush.msra.mxu0 %v971
    %1164 = vmatpush.msra.mxu0 %v966
    %1165 = vmatpush.msra.mxu0 %v961
    %1166 = vmatpush.msra.mxu0 %v956
    %1167 = vmatpush.msra.mxu0 %v951
    %1168 = vmatpush.msra.mxu0 %v946
    %1169 = vmatpush.msra.mxu0 %v941
    %1170 = vmatpush.msra.mxu0 %v936
    %1171 = vmatpush.msra.mxu0 %v931
    %1172 = vmatpush.msra.mxu0 %v926
    %1173 = vmatmul.f32.gmra.mxu0 %v1029
    %v1174 = vpop.f32.mrf.mxu0
    %v1175 = vadd.f32 %v1155, %v1174
    %1176 = vdwg.mxu0
    %1177 = vmatpush.msra.mxu0 %v522
    %1178 = vmatpush.msra.mxu0 %v517
    %1179 = vmatpush.msra.mxu0 %v512
    %1180 = vmatpush.msra.mxu0 %v507
    %1181 = vmatpush.msra.mxu0 %v502
    %1182 = vmatpush.msra.mxu0 %v497
    %1183 = vmatpush.msra.mxu0 %v492
    %1184 = vmatpush.msra.mxu0 %v487
    %1185 = vmatpush.msra.mxu0 %v482
    %1186 = vmatpush.msra.mxu0 %v477
    %1187 = vmatpush.msra.mxu0 %v472
    %1188 = vmatpush.msra.mxu0 %v467
    %1189 = vmatpush.msra.mxu0 %v462
    %1190 = vmatpush.msra.mxu0 %v457
    %1191 = vmatpush.msra.mxu0 %v452
    %1192 = vmatpush.msra.mxu0 %v447
    %1193 = vmatmul.f32.gmra.mxu0 %v1023
    %v1194 = vpop.f32.mrf.mxu0
    %v1195 = vadd.f32 %v1009, %v1194
    %1196 = vdwg.mxu0
    %1197 = vmatpush.msra.mxu0 %v602
    %1198 = vmatpush.msra.mxu0 %v597
    %1199 = vmatpush.msra.mxu0 %v592
    %1200 = vmatpush.msra.mxu0 %v587
    %1201 = vmatpush.msra.mxu0 %v582
    %1202 = vmatpush.msra.mxu0 %v577
    %1203 = vmatpush.msra.mxu0 %v572
    %1204 = vmatpush.msra.mxu0 %v567
    %1205 = vmatpush.msra.mxu0 %v562
    %1206 = vmatpush.msra.mxu0 %v557
    %1207 = vmatpush.msra.mxu0 %v552
    %1208 = vmatpush.msra.mxu0 %v547
    %1209 = vmatpush.msra.mxu0 %v542
    %1210 = vmatpush.msra.mxu0 %v537
    %1211 = vmatpush.msra.mxu0 %v532
    %1212 = vmatpush.msra.mxu0 %v527
    %1213 = vmatmul.f32.gmra.mxu0 %v1024
    %v1214 = vpop.f32.mrf.mxu0
    %v1215 = vadd.f32 %v1195, %v1214
    %1216 = vdwg.mxu0
    %1217 = vmatpush.msra.mxu0 %v682
    %1218 = vmatpush.msra.mxu0 %v677
    %1219 = vmatpush.msra.mxu0 %v672
    %1220 = vmatpush.msra.mxu0 %v667
    %1221 = vmatpush.msra.mxu0 %v662
    %1222 = vmatpush.msra.mxu0 %v657
    %1223 = vmatpush.msra.mxu0 %v652
    %1224 = vmatpush.msra.mxu0 %v647
    %1225 = vmatpush.msra.mxu0 %v642
    %1226 = vmatpush.msra.mxu0 %v637
    %1227 = vmatpush.msra.mxu0 %v632
    %1228 = vmatpush.msra.mxu0 %v627
    %1229 = vmatpush.msra.mxu0 %v622
    %1230 = vmatpush.msra.mxu0 %v617
    %1231 = vmatpush.msra.mxu0 %v612
    %1232 = vmatpush.msra.mxu0 %v607
    %1233 = vmatmul.f32.gmra.mxu0 %v1025
    %v1234 = vpop.f32.mrf.mxu0
    %v1235 = vadd.f32 %v1215, %v1234
    %1236 = vdwg.mxu0
    %1237 = vmatpush.msra.mxu0 %v762
    %1238 = vmatpush.msra.mxu0 %v757
    %1239 = vmatpush.msra.mxu0 %v752
    %1240 = vmatpush.msra.mxu0 %v747
    %1241 = vmatpush.msra.mxu0 %v742
    %1242 = vmatpush.msra.mxu0 %v737
    %1243 = vmatpush.msra.mxu0 %v732
    %1244 = vmatpush.msra.mxu0 %v727
    %1245 = vmatpush.msra.mxu0 %v722
    %1246 = vmatpush.msra.mxu0 %v717
    %1247 = vmatpush.msra.mxu0 %v712
    %1248 = vmatpush.msra.mxu0 %v707
    %1249 = vmatpush.msra.mxu0 %v702
    %1250 = vmatpush.msra.mxu0 %v697
    %1251 = vmatpush.msra.mxu0 %v692
    %1252 = vmatpush.msra.mxu0 %v687
    %1253 = vmatmul.f32.gmra.mxu0 %v1026
    %v1254 = vpop.f32.mrf.mxu0
    %v1255 = vadd.f32 %v1235, %v1254
    %1256 = vdwg.mxu0
    %1257 = vmatpush.msra.mxu0 %v842
    %1258 = vmatpush.msra.mxu0 %v837
    %1259 = vmatpush.msra.mxu0 %v832
    %1260 = vmatpush.msra.mxu0 %v827
    %1261 = vmatpush.msra.mxu0 %v822
    %1262 = vmatpush.msra.mxu0 %v817
    %1263 = vmatpush.msra.mxu0 %v812
    %1264 = vmatpush.msra.mxu0 %v807
    %1265 = vmatpush.msra.mxu0 %v802
    %1266 = vmatpush.msra.mxu0 %v797
    %1267 = vmatpush.msra.mxu0 %v792
    %1268 = vmatpush.msra.mxu0 %v787
    %1269 = vmatpush.msra.mxu0 %v782
    %1270 = vmatpush.msra.mxu0 %v777
    %1271 = vmatpush.msra.mxu0 %v772
    %1272 = vmatpush.msra.mxu0 %v767
    %1273 = vmatmul.f32.gmra.mxu0 %v1027
    %v1274 = vpop.f32.mrf.mxu0
    %v1275 = vadd.f32 %v1255, %v1274
    %1276 = vdwg.mxu0
    %1277 = vmatpush.msra.mxu0 %v922
    %1278 = vmatpush.msra.mxu0 %v917
    %1279 = vmatpush.msra.mxu0 %v912
    %1280 = vmatpush.msra.mxu0 %v907
    %1281 = vmatpush.msra.mxu0 %v902
    %1282 = vmatpush.msra.mxu0 %v897
    %1283 = vmatpush.msra.mxu0 %v892
    %1284 = vmatpush.msra.mxu0 %v887
    %1285 = vmatpush.msra.mxu0 %v882
    %1286 = vmatpush.msra.mxu0 %v877
    %1287 = vmatpush.msra.mxu0 %v872
    %1288 = vmatpush.msra.mxu0 %v867
    %1289 = vmatpush.msra.mxu0 %v862
    %1290 = vmatpush.msra.mxu0 %v857
    %1291 = vmatpush.msra.mxu0 %v852
    %1292 = vmatpush.msra.mxu0 %v847
    %1293 = vmatmul.f32.gmra.mxu0 %v1028
    %v1294 = vpop.f32.mrf.mxu0
    %v1295 = vadd.f32 %v1275, %v1294
    %1296 = vdwg.mxu0
    %1297 = vmatpush.msra.mxu0 %v1002
    %1298 = vmatpush.msra.mxu0 %v997
    %1299 = vmatpush.msra.mxu0 %v992
    %1300 = vmatpush.msra.mxu0 %v987
    %1301 = vmatpush.msra.mxu0 %v982
    %1302 = vmatpush.msra.mxu0 %v977
    %1303 = vmatpush.msra.mxu0 %v972
    %1304 = vmatpush.msra.mxu0 %v967
    %1305 = vmatpush.msra.mxu0 %v962
    %1306 = vmatpush.msra.mxu0 %v957
    %1307 = vmatpush.msra.mxu0 %v952
    %1308 = vmatpush.msra.mxu0 %v947
    %1309 = vmatpush.msra.mxu0 %v942
    %1310 = vmatpush.msra.mxu0 %v937
    %1311 = vmatpush.msra.mxu0 %v932
    %1312 = vmatpush.msra.mxu0 %v927
    %1313 = vmatmul.f32.gmra.mxu0 %v1029
    %v1314 = vpop.f32.mrf.mxu0
    %v1315 = vadd.f32 %v1295, %v1314
    %1316 = vdwg.mxu0
    %1317 = vmatpush.msra.mxu0 %v523
    %1318 = vmatpush.msra.mxu0 %v518
    %1319 = vmatpush.msra.mxu0 %v513
    %1320 = vmatpush.msra.mxu0 %v508
    %1321 = vmatpush.msra.mxu0 %v503
    %1322 = vmatpush.msra.mxu0 %v498
    %1323 = vmatpush.msra.mxu0 %v493
    %1324 = vmatpush.msra.mxu0 %v488
    %1325 = vmatpush.msra.mxu0 %v483
    %1326 = vmatpush.msra.mxu0 %v478
    %1327 = vmatpush.msra.mxu0 %v473
    %1328 = vmatpush.msra.mxu0 %v468
    %1329 = vmatpush.msra.mxu0 %v463
    %1330 = vmatpush.msra.mxu0 %v458
    %1331 = vmatpush.msra.mxu0 %v453
    %1332 = vmatpush.msra.mxu0 %v448
    %1333 = vmatmul.f32.gmra.mxu0 %v1023
    %v1334 = vpop.f32.mrf.mxu0
    %v1335 = vadd.f32 %v1010, %v1334
    %1336 = vdwg.mxu0
    %1337 = vmatpush.msra.mxu0 %v603
    %1338 = vmatpush.msra.mxu0 %v598
    %1339 = vmatpush.msra.mxu0 %v593
    %1340 = vmatpush.msra.mxu0 %v588
    %1341 = vmatpush.msra.mxu0 %v583
    %1342 = vmatpush.msra.mxu0 %v578
    %1343 = vmatpush.msra.mxu0 %v573
    %1344 = vmatpush.msra.mxu0 %v568
    %1345 = vmatpush.msra.mxu0 %v563
    %1346 = vmatpush.msra.mxu0 %v558
    %1347 = vmatpush.msra.mxu0 %v553
    %1348 = vmatpush.msra.mxu0 %v548
    %1349 = vmatpush.msra.mxu0 %v543
    %1350 = vmatpush.msra.mxu0 %v538
    %1351 = vmatpush.msra.mxu0 %v533
    %1352 = vmatpush.msra.mxu0 %v528
    %1353 = vmatmul.f32.gmra.mxu0 %v1024
    %v1354 = vpop.f32.mrf.mxu0
    %v1355 = vadd.f32 %v1335, %v1354
    %1356 = vdwg.mxu0
    %1357 = vmatpush.msra.mxu0 %v683
    %1358 = vmatpush.msra.mxu0 %v678
    %1359 = vmatpush.msra.mxu0 %v673
    %1360 = vmatpush.msra.mxu0 %v668
    %1361 = vmatpush.msra.mxu0 %v663
    %1362 = vmatpush.msra.mxu0 %v658
    %1363 = vmatpush.msra.mxu0 %v653
    %1364 = vmatpush.msra.mxu0 %v648
    %1365 = vmatpush.msra.mxu0 %v643
    %1366 = vmatpush.msra.mxu0 %v638
    %1367 = vmatpush.msra.mxu0 %v633
    %1368 = vmatpush.msra.mxu0 %v628
    %1369 = vmatpush.msra.mxu0 %v623
    %1370 = vmatpush.msra.mxu0 %v618
    %1371 = vmatpush.msra.mxu0 %v613
    %1372 = vmatpush.msra.mxu0 %v608
    %1373 = vmatmul.f32.gmra.mxu0 %v1025
    %v1374 = vpop.f32.mrf.mxu0
    %v1375 = vadd.f32 %v1355, %v1374
    %1376 = vdwg.mxu0
    %1377 = vmatpush.msra.mxu0 %v763
    %1378 = vmatpush.msra.mxu0 %v758
    %1379 = vmatpush.msra.mxu0 %v753
    %1380 = vmatpush.msra.mxu0 %v748
    %1381 = vmatpush.msra.mxu0 %v743
    %1382 = vmatpush.msra.mxu0 %v738
    %1383 = vmatpush.msra.mxu0 %v733
    %1384 = vmatpush.msra.mxu0 %v728
    %1385 = vmatpush.msra.mxu0 %v723
    %1386 = vmatpush.msra.mxu0 %v718
    %1387 = vmatpush.msra.mxu0 %v713
    %1388 = vmatpush.msra.mxu0 %v708
    %1389 = vmatpush.msra.mxu0 %v703
    %1390 = vmatpush.msra.mxu0 %v698
    %1391 = vmatpush.msra.mxu0 %v693
    %1392 = vmatpush.msra.mxu0 %v688
    %1393 = vmatmul.f32.gmra.mxu0 %v1026
    %v1394 = vpop.f32.mrf.mxu0
    %v1395 = vadd.f32 %v1375, %v1394
    %1396 = vdwg.mxu0
    %1397 = vmatpush.msra.mxu0 %v843
    %1398 = vmatpush.msra.mxu0 %v838
    %1399 = vmatpush.msra.mxu0 %v833
    %1400 = vmatpush.msra.mxu0 %v828
    %1401 = vmatpush.msra.mxu0 %v823
    %1402 = vmatpush.msra.mxu0 %v818
    %1403 = vmatpush.msra.mxu0 %v813
    %1404 = vmatpush.msra.mxu0 %v808
    %1405 = vmatpush.msra.mxu0 %v803
    %1406 = vmatpush.msra.mxu0 %v798
    %1407 = vmatpush.msra.mxu0 %v793
    %1408 = vmatpush.msra.mxu0 %v788
    %1409 = vmatpush.msra.mxu0 %v783
    %1410 = vmatpush.msra.mxu0 %v778
    %1411 = vmatpush.msra.mxu0 %v773
    %1412 = vmatpush.msra.mxu0 %v768
    %1413 = vmatmul.f32.gmra.mxu0 %v1027
    %v1414 = vpop.f32.mrf.mxu0
    %v1415 = vadd.f32 %v1395, %v1414
    %1416 = vdwg.mxu0
    %1417 = vmatpush.msra.mxu0 %v923
    %1418 = vmatpush.msra.mxu0 %v918
    %1419 = vmatpush.msra.mxu0 %v913
    %1420 = vmatpush.msra.mxu0 %v908
    %1421 = vmatpush.msra.mxu0 %v903
    %1422 = vmatpush.msra.mxu0 %v898
    %1423 = vmatpush.msra.mxu0 %v893
    %1424 = vmatpush.msra.mxu0 %v888
    %1425 = vmatpush.msra.mxu0 %v883
    %1426 = vmatpush.msra.mxu0 %v878
    %1427 = vmatpush.msra.mxu0 %v873
    %1428 = vmatpush.msra.mxu0 %v868
    %1429 = vmatpush.msra.mxu0 %v863
    %1430 = vmatpush.msra.mxu0 %v858
    %1431 = vmatpush.msra.mxu0 %v853
    %1432 = vmatpush.msra.mxu0 %v848
    %1433 = vmatmul.f32.gmra.mxu0 %v1028
    %v1434 = vpop.f32.mrf.mxu0
    %v1435 = vadd.f32 %v1415, %v1434
    %1436 = vdwg.mxu0
    %1437 = vmatpush.msra.mxu0 %v1003
    %1438 = vmatpush.msra.mxu0 %v998
    %1439 = vmatpush.msra.mxu0 %v993
    %1440 = vmatpush.msra.mxu0 %v988
    %1441 = vmatpush.msra.mxu0 %v983
    %1442 = vmatpush.msra.mxu0 %v978
    %1443 = vmatpush.msra.mxu0 %v973
    %1444 = vmatpush.msra.mxu0 %v968
    %1445 = vmatpush.msra.mxu0 %v963
    %1446 = vmatpush.msra.mxu0 %v958
    %1447 = vmatpush.msra.mxu0 %v953
    %1448 = vmatpush.msra.mxu0 %v948
    %1449 = vmatpush.msra.mxu0 %v943
    %1450 = vmatpush.msra.mxu0 %v938
    %1451 = vmatpush.msra.mxu0 %v933
    %1452 = vmatpush.msra.mxu0 %v928
    %1453 = vmatmul.f32.gmra.mxu0 %v1029
    %v1454 = vpop.f32.mrf.mxu0
    %v1455 = vadd.f32 %v1435, %v1454
    %1456 = vdwg.mxu0
    %1457 = vmatpush.msra.mxu0 %v524
    %1458 = vmatpush.msra.mxu0 %v519
    %1459 = vmatpush.msra.mxu0 %v514
    %1460 = vmatpush.msra.mxu0 %v509
    %1461 = vmatpush.msra.mxu0 %v504
    %1462 = vmatpush.msra.mxu0 %v499
    %1463 = vmatpush.msra.mxu0 %v494
    %1464 = vmatpush.msra.mxu0 %v489
    %1465 = vmatpush.msra.mxu0 %v484
    %1466 = vmatpush.msra.mxu0 %v479
    %1467 = vmatpush.msra.mxu0 %v474
    %1468 = vmatpush.msra.mxu0 %v469
    %1469 = vmatpush.msra.mxu0 %v464
    %1470 = vmatpush.msra.mxu0 %v459
    %1471 = vmatpush.msra.mxu0 %v454
    %1472 = vmatpush.msra.mxu0 %v449
    %1473 = vmatmul.f32.gmra.mxu0 %v1023
    %v1474 = vpop.f32.mrf.mxu0
    %v1475 = vadd.f32 %v1011, %v1474
    %1476 = vdwg.mxu0
    %1477 = vmatpush.msra.mxu0 %v604
    %1478 = vmatpush.msra.mxu0 %v599
    %1479 = vmatpush.msra.mxu0 %v594
    %1480 = vmatpush.msra.mxu0 %v589
    %1481 = vmatpush.msra.mxu0 %v584
    %1482 = vmatpush.msra.mxu0 %v579
    %1483 = vmatpush.msra.mxu0 %v574
    %1484 = vmatpush.msra.mxu0 %v569
    %1485 = vmatpush.msra.mxu0 %v564
    %1486 = vmatpush.msra.mxu0 %v559
    %1487 = vmatpush.msra.mxu0 %v554
    %1488 = vmatpush.msra.mxu0 %v549
    %1489 = vmatpush.msra.mxu0 %v544
    %1490 = vmatpush.msra.mxu0 %v539
    %1491 = vmatpush.msra.mxu0 %v534
    %1492 = vmatpush.msra.mxu0 %v529
    %1493 = vmatmul.f32.gmra.mxu0 %v1024
    %v1494 = vpop.f32.mrf.mxu0
    %v1495 = vadd.f32 %v1475, %v1494
    %1496 = vdwg.mxu0
    %1497 = vmatpush.msra.mxu0 %v684
    %1498 = vmatpush.msra.mxu0 %v679
    %1499 = vmatpush.msra.mxu0 %v674
    %1500 = vmatpush.msra.mxu0 %v669
    %1501 = vmatpush.msra.mxu0 %v664
    %1502 = vmatpush.msra.mxu0 %v659
    %1503 = vmatpush.msra.mxu0 %v654
    %1504 = vmatpush.msra.mxu0 %v649
    %1505 = vmatpush.msra.mxu0 %v644
    %1506 = vmatpush.msra.mxu0 %v639
    %1507 = vmatpush.msra.mxu0 %v634
    %1508 = vmatpush.msra.mxu0 %v629
    %1509 = vmatpush.msra.mxu0 %v624
    %1510 = vmatpush.msra.mxu0 %v619
    %1511 = vmatpush.msra.mxu0 %v614
    %1512 = vmatpush.msra.mxu0 %v609
    %1513 = vmatmul.f32.gmra.mxu0 %v1025
    %v1514 = vpop.f32.mrf.mxu0
    %v1515 = vadd.f32 %v1495, %v1514
    %1516 = vdwg.mxu0
    %1517 = vmatpush.msra.mxu0 %v764
    %1518 = vmatpush.msra.mxu0 %v759
    %1519 = vmatpush.msra.mxu0 %v754
    %1520 = vmatpush.msra.mxu0 %v749
    %1521 = vmatpush.msra.mxu0 %v744
    %1522 = vmatpush.msra.mxu0 %v739
    %1523 = vmatpush.msra.mxu0 %v734
    %1524 = vmatpush.msra.mxu0 %v729
    %1525 = vmatpush.msra.mxu0 %v724
    %1526 = vmatpush.msra.mxu0 %v719
    %1527 = vmatpush.msra.mxu0 %v714
    %1528 = vmatpush.msra.mxu0 %v709
    %1529 = vmatpush.msra.mxu0 %v704
    %1530 = vmatpush.msra.mxu0 %v699
    %1531 = vmatpush.msra.mxu0 %v694
    %1532 = vmatpush.msra.mxu0 %v689
    %1533 = vmatmul.f32.gmra.mxu0 %v1026
    %v1534 = vpop.f32.mrf.mxu0
    %v1535 = vadd.f32 %v1515, %v1534
    %1536 = vdwg.mxu0
    %1537 = vmatpush.msra.mxu0 %v844
    %1538 = vmatpush.msra.mxu0 %v839
    %1539 = vmatpush.msra.mxu0 %v834
    %1540 = vmatpush.msra.mxu0 %v829
    %1541 = vmatpush.msra.mxu0 %v824
    %1542 = vmatpush.msra.mxu0 %v819
    %1543 = vmatpush.msra.mxu0 %v814
    %1544 = vmatpush.msra.mxu0 %v809
    %1545 = vmatpush.msra.mxu0 %v804
    %1546 = vmatpush.msra.mxu0 %v799
    %1547 = vmatpush.msra.mxu0 %v794
    %1548 = vmatpush.msra.mxu0 %v789
    %1549 = vmatpush.msra.mxu0 %v784
    %1550 = vmatpush.msra.mxu0 %v779
    %1551 = vmatpush.msra.mxu0 %v774
    %1552 = vmatpush.msra.mxu0 %v769
    %1553 = vmatmul.f32.gmra.mxu0 %v1027
    %v1554 = vpop.f32.mrf.mxu0
    %v1555 = vadd.f32 %v1535, %v1554
    %1556 = vdwg.mxu0
    %1557 = vmatpush.msra.mxu0 %v924
    %1558 = vmatpush.msra.mxu0 %v919
    %1559 = vmatpush.msra.mxu0 %v914
    %1560 = vmatpush.msra.mxu0 %v909
    %1561 = vmatpush.msra.mxu0 %v904
    %1562 = vmatpush.msra.mxu0 %v899
    %1563 = vmatpush.msra.mxu0 %v894
    %1564 = vmatpush.msra.mxu0 %v889
    %1565 = vmatpush.msra.mxu0 %v884
    %1566 = vmatpush.msra.mxu0 %v879
    %1567 = vmatpush.msra.mxu0 %v874
    %1568 = vmatpush.msra.mxu0 %v869
    %1569 = vmatpush.msra.mxu0 %v864
    %1570 = vmatpush.msra.mxu0 %v859
    %1571 = vmatpush.msra.mxu0 %v854
    %1572 = vmatpush.msra.mxu0 %v849
    %1573 = vmatmul.f32.gmra.mxu0 %v1028
    %v1574 = vpop.f32.mrf.mxu0
    %v1575 = vadd.f32 %v1555, %v1574
    %1576 = vdwg.mxu0
    %1577 = vmatpush.msra.mxu0 %v1004
    %1578 = vmatpush.msra.mxu0 %v999
    %1579 = vmatpush.msra.mxu0 %v994
    %1580 = vmatpush.msra.mxu0 %v989
    %1581 = vmatpush.msra.mxu0 %v984
    %1582 = vmatpush.msra.mxu0 %v979
    %1583 = vmatpush.msra.mxu0 %v974
    %1584 = vmatpush.msra.mxu0 %v969
    %1585 = vmatpush.msra.mxu0 %v964
    %1586 = vmatpush.msra.mxu0 %v959
    %1587 = vmatpush.msra.mxu0 %v954
    %1588 = vmatpush.msra.mxu0 %v949
    %1589 = vmatpush.msra.mxu0 %v944
    %1590 = vmatpush.msra.mxu0 %v939
    %1591 = vmatpush.msra.mxu0 %v934
    %1592 = vmatpush.msra.mxu0 %v929
    %1593 = vmatmul.f32.gmra.mxu0 %v1029
    %v1594 = vpop.f32.mrf.mxu0
    %v1595 = vadd.f32 %v1575, %v1594
    %1596 = vdwg.mxu0
    %1597 = vmatpush.msra.mxu0 %v525
    %1598 = vmatpush.msra.mxu0 %v520
    %1599 = vmatpush.msra.mxu0 %v515
    %1600 = vmatpush.msra.mxu0 %v510
    %1601 = vmatpush.msra.mxu0 %v505
    %1602 = vmatpush.msra.mxu0 %v500
    %1603 = vmatpush.msra.mxu0 %v495
    %1604 = vmatpush.msra.mxu0 %v490
    %1605 = vmatpush.msra.mxu0 %v485
    %1606 = vmatpush.msra.mxu0 %v480
    %1607 = vmatpush.msra.mxu0 %v475
    %1608 = vmatpush.msra.mxu0 %v470
    %1609 = vmatpush.msra.mxu0 %v465
    %1610 = vmatpush.msra.mxu0 %v460
    %1611 = vmatpush.msra.mxu0 %v455
    %1612 = vmatpush.msra.mxu0 %v450
    %1613 = vmatmul.f32.gmra.mxu0 %v1023
    %v1614 = vpop.f32.mrf.mxu0
    %v1615 = vadd.f32 %v1012, %v1614
    %1616 = vdwg.mxu0
    %1617 = vmatpush.msra.mxu0 %v605
    %1618 = vmatpush.msra.mxu0 %v600
    %1619 = vmatpush.msra.mxu0 %v595
    %1620 = vmatpush.msra.mxu0 %v590
    %1621 = vmatpush.msra.mxu0 %v585
    %1622 = vmatpush.msra.mxu0 %v580
    %1623 = vmatpush.msra.mxu0 %v575
    %1624 = vmatpush.msra.mxu0 %v570
    %1625 = vmatpush.msra.mxu0 %v565
    %1626 = vmatpush.msra.mxu0 %v560
    %1627 = vmatpush.msra.mxu0 %v555
    %1628 = vmatpush.msra.mxu0 %v550
    %1629 = vmatpush.msra.mxu0 %v545
    %1630 = vmatpush.msra.mxu0 %v540
    %1631 = vmatpush.msra.mxu0 %v535
    %1632 = vmatpush.msra.mxu0 %v530
    %1633 = vmatmul.f32.gmra.mxu0 %v1024
    %v1634 = vpop.f32.mrf.mxu0
    %v1635 = vadd.f32 %v1615, %v1634
    %1636 = vdwg.mxu0
    %1637 = vmatpush.msra.mxu0 %v685
    %1638 = vmatpush.msra.mxu0 %v680
    %1639 = vmatpush.msra.mxu0 %v675
    %1640 = vmatpush.msra.mxu0 %v670
    %1641 = vmatpush.msra.mxu0 %v665
    %1642 = vmatpush.msra.mxu0 %v660
    %1643 = vmatpush.msra.mxu0 %v655
    %1644 = vmatpush.msra.mxu0 %v650
    %1645 = vmatpush.msra.mxu0 %v645
    %1646 = vmatpush.msra.mxu0 %v640
    %1647 = vmatpush.msra.mxu0 %v635
    %1648 = vmatpush.msra.mxu0 %v630
    %1649 = vmatpush.msra.mxu0 %v625
    %1650 = vmatpush.msra.mxu0 %v620
    %1651 = vmatpush.msra.mxu0 %v615
    %1652 = vmatpush.msra.mxu0 %v610
    %1653 = vmatmul.f32.gmra.mxu0 %v1025
    %v1654 = vpop.f32.mrf.mxu0
    %v1655 = vadd.f32 %v1635, %v1654
    %1656 = vdwg.mxu0
    %1657 = vmatpush.msra.mxu0 %v765
    %1658 = vmatpush.msra.mxu0 %v760
    %1659 = vmatpush.msra.mxu0 %v755
    %1660 = vmatpush.msra.mxu0 %v750
    %1661 = vmatpush.msra.mxu0 %v745
    %1662 = vmatpush.msra.mxu0 %v740
    %1663 = vmatpush.msra.mxu0 %v735
    %1664 = vmatpush.msra.mxu0 %v730
    %1665 = vmatpush.msra.mxu0 %v725
    %1666 = vmatpush.msra.mxu0 %v720
    %1667 = vmatpush.msra.mxu0 %v715
    %1668 = vmatpush.msra.mxu0 %v710
    %1669 = vmatpush.msra.mxu0 %v705
    %1670 = vmatpush.msra.mxu0 %v700
    %1671 = vmatpush.msra.mxu0 %v695
    %1672 = vmatpush.msra.mxu0 %v690
    %1673 = vmatmul.f32.gmra.mxu0 %v1026
    %v1674 = vpop.f32.mrf.mxu0
    %v1675 = vadd.f32 %v1655, %v1674
    %1676 = vdwg.mxu0
    %1677 = vmatpush.msra.mxu0 %v845
    %1678 = vmatpush.msra.mxu0 %v840
    %1679 = vmatpush.msra.mxu0 %v835
    %1680 = vmatpush.msra.mxu0 %v830
    %1681 = vmatpush.msra.mxu0 %v825
    %1682 = vmatpush.msra.mxu0 %v820
    %1683 = vmatpush.msra.mxu0 %v815
    %1684 = vmatpush.msra.mxu0 %v810
    %1685 = vmatpush.msra.mxu0 %v805
    %1686 = vmatpush.msra.mxu0 %v800
    %1687 = vmatpush.msra.mxu0 %v795
    %1688 = vmatpush.msra.mxu0 %v790
    %1689 = vmatpush.msra.mxu0 %v785
    %1690 = vmatpush.msra.mxu0 %v780
    %1691 = vmatpush.msra.mxu0 %v775
    %1692 = vmatpush.msra.mxu0 %v770
    %1693 = vmatmul.f32.gmra.mxu0 %v1027
    %v1694 = vpop.f32.mrf.mxu0
    %v1695 = vadd.f32 %v1675, %v1694
    %1696 = vdwg.mxu0
    %1697 = vmatpush.msra.mxu0 %v925
    %1698 = vmatpush.msra.mxu0 %v920
    %1699 = vmatpush.msra.mxu0 %v915
    %1700 = vmatpush.msra.mxu0 %v910
    %1701 = vmatpush.msra.mxu0 %v905
    %1702 = vmatpush.msra.mxu0 %v900
    %1703 = vmatpush.msra.mxu0 %v895
    %1704 = vmatpush.msra.mxu0 %v890
    %1705 = vmatpush.msra.mxu0 %v885
    %1706 = vmatpush.msra.mxu0 %v880
    %1707 = vmatpush.msra.mxu0 %v875
    %1708 = vmatpush.msra.mxu0 %v870
    %1709 = vmatpush.msra.mxu0 %v865
    %1710 = vmatpush.msra.mxu0 %v860
    %1711 = vmatpush.msra.mxu0 %v855
    %1712 = vmatpush.msra.mxu0 %v850
    %1713 = vmatmul.f32.gmra.mxu0 %v1028
    %v1714 = vpop.f32.mrf.mxu0
    %v1715 = vadd.f32 %v1695, %v1714
    %1716 = vdwg.mxu0
    %1717 = vmatpush.msra.mxu0 %v1005
    %1718 = vmatpush.msra.mxu0 %v1000
    %1719 = vmatpush.msra.mxu0 %v995
    %1720 = vmatpush.msra.mxu0 %v990
    %1721 = vmatpush.msra.mxu0 %v985
    %1722 = vmatpush.msra.mxu0 %v980
    %1723 = vmatpush.msra.mxu0 %v975
    %1724 = vmatpush.msra.mxu0 %v970
    %1725 = vmatpush.msra.mxu0 %v965
    %1726 = vmatpush.msra.mxu0 %v960
    %1727 = vmatpush.msra.mxu0 %v955
    %1728 = vmatpush.msra.mxu0 %v950
    %1729 = vmatpush.msra.mxu0 %v945
    %1730 = vmatpush.msra.mxu0 %v940
    %1731 = vmatpush.msra.mxu0 %v935
    %1732 = vmatpush.msra.mxu0 %v930
    %1733 = vmatmul.f32.gmra.mxu0 %v1029
    %v1734 = vpop.f32.mrf.mxu0
    %v1735 = vadd.f32 %v1715, %v1734
    %1736 = vdwg.mxu0
    %v1737 = vld [vmem:[#allocation11] sm:$0xff]
    %v1738 = vld [vmem:[#allocation11 + $0x8] sm:$0xff]
    %v1739 = vld [vmem:[#allocation11 + $0x10] sm:$0xff]
    %v1740 = vld [vmem:[#allocation11 + $0x18] sm:$0xff]
    %v1741 = vld [vmem:[#allocation11 + $0x20] sm:$0xff]
    %v1742 = vld [vmem:[#allocation11 + $0x28] sm:$0xff]
    %v1743 = vld [vmem:[#allocation11 + $0x30] sm:$0xff]
    %v1744 = vld [vmem:[#allocation11 + $0x38] sm:$0xff]
    %v1745 = vld [vmem:[#allocation11 + $0x40] sm:$0xff]
    %v1746 = vld [vmem:[#allocation11 + $0x48] sm:$0xff]
    %v1747 = vld [vmem:[#allocation11 + $0x50] sm:$0xff]
    %v1748 = vld [vmem:[#allocation11 + $0x58] sm:$0xff]
    %v1749 = vld [vmem:[#allocation11 + $0x60] sm:$0xff]
    %v1750 = vld [vmem:[#allocation11 + $0x68] sm:$0xff]
    %v1751 = vld [vmem:[#allocation11 + $0x70] sm:$0xff]
    %v1752 = vld [vmem:[#allocation11 + $0x78] sm:$0xff]
    %v1753 = vld [vmem:[#allocation11 + $0x80] sm:$0xff]
    %v1754 = vld [vmem:[#allocation11 + $0x88] sm:$0xff]
    %v1755 = vld [vmem:[#allocation11 + $0x90] sm:$0xff]
    %v1756 = vld [vmem:[#allocation11 + $0x98] sm:$0xff]
    %v1757 = vld [vmem:[#allocation11 + $0xa0] sm:$0xff]
    %v1758 = vld [vmem:[#allocation11 + $0xa8] sm:$0xff]
    %v1759 = vld [vmem:[#allocation11 + $0xb0] sm:$0xff]
    %v1760 = vld [vmem:[#allocation11 + $0xb8] sm:$0xff]
    %v1761 = vld [vmem:[#allocation11 + $0xc0] sm:$0xff]
    %v1762 = vld [vmem:[#allocation11 + $0xc8] sm:$0xff]
    %v1763 = vld [vmem:[#allocation11 + $0xd0] sm:$0xff]
    %v1764 = vld [vmem:[#allocation11 + $0xd8] sm:$0xff]
    %v1765 = vld [vmem:[#allocation11 + $0xe0] sm:$0xff]
    %v1766 = vld [vmem:[#allocation11 + $0xe8] sm:$0xff]
    %v1767 = vld [vmem:[#allocation11 + $0xf0] sm:$0xff]
    %v1768 = vld [vmem:[#allocation11 + $0xf8] sm:$0xff]
    %v1769 = vld [vmem:[#allocation11 + $0x100] sm:$0xff]
    %v1770 = vld [vmem:[#allocation11 + $0x108] sm:$0xff]
    %v1771 = vld [vmem:[#allocation11 + $0x110] sm:$0xff]
    %v1772 = vld [vmem:[#allocation11 + $0x118] sm:$0xff]
    %v1773 = vld [vmem:[#allocation11 + $0x120] sm:$0xff]
    %v1774 = vld [vmem:[#allocation11 + $0x128] sm:$0xff]
    %v1775 = vld [vmem:[#allocation11 + $0x130] sm:$0xff]
    %v1776 = vld [vmem:[#allocation11 + $0x138] sm:$0xff]
    %v1777 = vld [vmem:[#allocation11 + $0x140] sm:$0xff]
    %v1778 = vld [vmem:[#allocation11 + $0x148] sm:$0xff]
    %v1779 = vld [vmem:[#allocation11 + $0x150] sm:$0xff]
    %v1780 = vld [vmem:[#allocation11 + $0x158] sm:$0xff]
    %v1781 = vld [vmem:[#allocation11 + $0x160] sm:$0xff]
    %v1782 = vld [vmem:[#allocation11 + $0x168] sm:$0xff]
    %v1783 = vld [vmem:[#allocation11 + $0x170] sm:$0xff]
    %v1784 = vld [vmem:[#allocation11 + $0x178] sm:$0xff]
    %v1785 = vld [vmem:[#allocation11 + $0x180] sm:$0xff]
    %v1786 = vld [vmem:[#allocation11 + $0x188] sm:$0xff]
    %v1787 = vld [vmem:[#allocation11 + $0x190] sm:$0xff]
    %v1788 = vld [vmem:[#allocation11 + $0x198] sm:$0xff]
    %v1789 = vld [vmem:[#allocation11 + $0x1a0] sm:$0xff]
    %v1790 = vld [vmem:[#allocation11 + $0x1a8] sm:$0xff]
    %v1791 = vld [vmem:[#allocation11 + $0x1b0] sm:$0xff]
    %v1792 = vld [vmem:[#allocation11 + $0x1b8] sm:$0xff]
    %v1793 = vld [vmem:[#allocation11 + $0x1c0] sm:$0xff]
    %v1794 = vld [vmem:[#allocation11 + $0x1c8] sm:$0xff]
    %v1795 = vld [vmem:[#allocation11 + $0x1d0] sm:$0xff]
    %v1796 = vld [vmem:[#allocation11 + $0x1d8] sm:$0xff]
    %v1797 = vld [vmem:[#allocation11 + $0x1e0] sm:$0xff]
    %v1798 = vld [vmem:[#allocation11 + $0x1e8] sm:$0xff]
    %v1799 = vld [vmem:[#allocation11 + $0x1f0] sm:$0xff]
    %v1800 = vld [vmem:[#allocation11 + $0x1f8] sm:$0xff]
    %v1801 = vld [vmem:[#allocation11 + $0x200] sm:$0xff]
    %v1802 = vld [vmem:[#allocation11 + $0x208] sm:$0xff]
    %v1803 = vld [vmem:[#allocation11 + $0x210] sm:$0xff]
    %v1804 = vld [vmem:[#allocation11 + $0x218] sm:$0xff]
    %v1805 = vld [vmem:[#allocation11 + $0x220] sm:$0xff]
    %v1806 = vld [vmem:[#allocation11 + $0x228] sm:$0xff]
    %v1807 = vld [vmem:[#allocation11 + $0x230] sm:$0xff]
    %v1808 = vld [vmem:[#allocation11 + $0x238] sm:$0xff]
    %v1809 = vld [vmem:[#allocation11 + $0x240] sm:$0xff]
    %v1810 = vld [vmem:[#allocation11 + $0x248] sm:$0xff]
    %v1811 = vld [vmem:[#allocation11 + $0x250] sm:$0xff]
    %v1812 = vld [vmem:[#allocation11 + $0x258] sm:$0xff]
    %v1813 = vld [vmem:[#allocation11 + $0x260] sm:$0xff]
    %v1814 = vld [vmem:[#allocation11 + $0x268] sm:$0xff]
    %v1815 = vld [vmem:[#allocation11 + $0x270] sm:$0xff]
    %v1816 = vld [vmem:[#allocation11 + $0x278] sm:$0xff]
    %1817 = vmatpush.msra.mxu0 %v1752
    %1818 = vmatpush.msra.mxu0 %v1751
    %1819 = vmatpush.msra.mxu0 %v1750
    %1820 = vmatpush.msra.mxu0 %v1749
    %1821 = vmatpush.msra.mxu0 %v1748
    %1822 = vmatpush.msra.mxu0 %v1747
    %1823 = vmatpush.msra.mxu0 %v1746
    %1824 = vmatpush.msra.mxu0 %v1745
    %1825 = vmatpush.msra.mxu0 %v1744
    %1826 = vmatpush.msra.mxu0 %v1743
    %1827 = vmatpush.msra.mxu0 %v1742
    %1828 = vmatpush.msra.mxu0 %v1741
    %1829 = vmatpush.msra.mxu0 %v1740
    %1830 = vmatpush.msra.mxu0 %v1739
    %1831 = vmatpush.msra.mxu0 %v1738
    %1832 = vmatpush.msra.mxu0 %v1737
    %1833 = vmatmul.f32.gmra.mxu0 %v1175
    %v1834 = vpop.f32.mrf.mxu0
    %v1835 = vadd.f32 0.0, %v1834
    %1836 = vdwg.mxu0
    %1837 = vmatpush.msra.mxu0 %v1768
    %1838 = vmatpush.msra.mxu0 %v1767
    %1839 = vmatpush.msra.mxu0 %v1766
    %1840 = vmatpush.msra.mxu0 %v1765
    %1841 = vmatpush.msra.mxu0 %v1764
    %1842 = vmatpush.msra.mxu0 %v1763
    %1843 = vmatpush.msra.mxu0 %v1762
    %1844 = vmatpush.msra.mxu0 %v1761
    %1845 = vmatpush.msra.mxu0 %v1760
    %1846 = vmatpush.msra.mxu0 %v1759
    %1847 = vmatpush.msra.mxu0 %v1758
    %1848 = vmatpush.msra.mxu0 %v1757
    %1849 = vmatpush.msra.mxu0 %v1756
    %1850 = vmatpush.msra.mxu0 %v1755
    %1851 = vmatpush.msra.mxu0 %v1754
    %1852 = vmatpush.msra.mxu0 %v1753
    %1853 = vmatmul.f32.gmra.mxu0 %v1315
    %v1854 = vpop.f32.mrf.mxu0
    %v1855 = vadd.f32 %v1835, %v1854
    %1856 = vdwg.mxu0
    %1857 = vmatpush.msra.mxu0 %v1784
    %1858 = vmatpush.msra.mxu0 %v1783
    %1859 = vmatpush.msra.mxu0 %v1782
    %1860 = vmatpush.msra.mxu0 %v1781
    %1861 = vmatpush.msra.mxu0 %v1780
    %1862 = vmatpush.msra.mxu0 %v1779
    %1863 = vmatpush.msra.mxu0 %v1778
    %1864 = vmatpush.msra.mxu0 %v1777
    %1865 = vmatpush.msra.mxu0 %v1776
    %1866 = vmatpush.msra.mxu0 %v1775
    %1867 = vmatpush.msra.mxu0 %v1774
    %1868 = vmatpush.msra.mxu0 %v1773
    %1869 = vmatpush.msra.mxu0 %v1772
    %1870 = vmatpush.msra.mxu0 %v1771
    %1871 = vmatpush.msra.mxu0 %v1770
    %1872 = vmatpush.msra.mxu0 %v1769
    %1873 = vmatmul.f32.gmra.mxu0 %v1455
    %v1874 = vpop.f32.mrf.mxu0
    %v1875 = vadd.f32 %v1855, %v1874
    %1876 = vdwg.mxu0
    %1877 = vmatpush.msra.mxu0 %v1800
    %1878 = vmatpush.msra.mxu0 %v1799
    %1879 = vmatpush.msra.mxu0 %v1798
    %1880 = vmatpush.msra.mxu0 %v1797
    %1881 = vmatpush.msra.mxu0 %v1796
    %1882 = vmatpush.msra.mxu0 %v1795
    %1883 = vmatpush.msra.mxu0 %v1794
    %1884 = vmatpush.msra.mxu0 %v1793
    %1885 = vmatpush.msra.mxu0 %v1792
    %1886 = vmatpush.msra.mxu0 %v1791
    %1887 = vmatpush.msra.mxu0 %v1790
    %1888 = vmatpush.msra.mxu0 %v1789
    %1889 = vmatpush.msra.mxu0 %v1788
    %1890 = vmatpush.msra.mxu0 %v1787
    %1891 = vmatpush.msra.mxu0 %v1786
    %1892 = vmatpush.msra.mxu0 %v1785
    %1893 = vmatmul.f32.gmra.mxu0 %v1595
    %v1894 = vpop.f32.mrf.mxu0
    %v1895 = vadd.f32 %v1875, %v1894
    %1896 = vdwg.mxu0
    %1897 = vmatpush.msra.mxu0 %v1816
    %1898 = vmatpush.msra.mxu0 %v1815
    %1899 = vmatpush.msra.mxu0 %v1814
    %1900 = vmatpush.msra.mxu0 %v1813
    %1901 = vmatpush.msra.mxu0 %v1812
    %1902 = vmatpush.msra.mxu0 %v1811
    %1903 = vmatpush.msra.mxu0 %v1810
    %1904 = vmatpush.msra.mxu0 %v1809
    %1905 = vmatpush.msra.mxu0 %v1808
    %1906 = vmatpush.msra.mxu0 %v1807
    %1907 = vmatpush.msra.mxu0 %v1806
    %1908 = vmatpush.msra.mxu0 %v1805
    %1909 = vmatpush.msra.mxu0 %v1804
    %1910 = vmatpush.msra.mxu0 %v1803
    %1911 = vmatpush.msra.mxu0 %v1802
    %1912 = vmatpush.msra.mxu0 %v1801
    %1913 = vmatmul.f32.gmra.mxu0 %v1735
    %v1914 = vpop.f32.mrf.mxu0
    %v1915 = vadd.f32 %v1895, %v1914
    %1916 = vdwg.mxu0
    %vm1917 = vcmask 1041408
    %v1918 = vsel %vm1917, %v1915, 0.0
    %v1919 = vrot.slane %v1918, 4
    %v1920 = vadd.f32 %v1918, %v1919
    %v1921 = vrot.slane %v1920, 2
    %v1922 = vadd.f32 %v1920, %v1921
    %v1923 = vrot.slane %v1922, 1
    %v1924 = vadd.f32 %v1922, %v1923
    %v1925 = vmul.f32 %v1175, %v1175
    %v1926 = vmul.f32 %v1315, %v1315
    %v1927 = vmul.f32 %v1455, %v1455
    %v1928 = vmul.f32 %v1595, %v1595
    %v1929 = vmul.f32 %v1735, %v1735
    %1930 = vmatpush.msra.mxu0 %v1752
    %1931 = vmatpush.msra.mxu0 %v1751
    %1932 = vmatpush.msra.mxu0 %v1750
    %1933 = vmatpush.msra.mxu0 %v1749
    %1934 = vmatpush.msra.mxu0 %v1748
    %1935 = vmatpush.msra.mxu0 %v1747
    %1936 = vmatpush.msra.mxu0 %v1746
    %1937 = vmatpush.msra.mxu0 %v1745
    %1938 = vmatpush.msra.mxu0 %v1744
    %1939 = vmatpush.msra.mxu0 %v1743
    %1940 = vmatpush.msra.mxu0 %v1742
    %1941 = vmatpush.msra.mxu0 %v1741
    %1942 = vmatpush.msra.mxu0 %v1740
    %1943 = vmatpush.msra.mxu0 %v1739
    %1944 = vmatpush.msra.mxu0 %v1738
    %1945 = vmatpush.msra.mxu0 %v1737
    %1946 = vmatmul.f32.gmra.mxu0 %v1925
    %v1947 = vpop.f32.mrf.mxu0
    %v1948 = vadd.f32 0.0, %v1947
    %1949 = vdwg.mxu0
    %1950 = vmatpush.msra.mxu0 %v1768
    %1951 = vmatpush.msra.mxu0 %v1767
    %1952 = vmatpush.msra.mxu0 %v1766
    %1953 = vmatpush.msra.mxu0 %v1765
    %1954 = vmatpush.msra.mxu0 %v1764
    %1955 = vmatpush.msra.mxu0 %v1763
    %1956 = vmatpush.msra.mxu0 %v1762
    %1957 = vmatpush.msra.mxu0 %v1761
    %1958 = vmatpush.msra.mxu0 %v1760
    %1959 = vmatpush.msra.mxu0 %v1759
    %1960 = vmatpush.msra.mxu0 %v1758
    %1961 = vmatpush.msra.mxu0 %v1757
    %1962 = vmatpush.msra.mxu0 %v1756
    %1963 = vmatpush.msra.mxu0 %v1755
    %1964 = vmatpush.msra.mxu0 %v1754
    %1965 = vmatpush.msra.mxu0 %v1753
    %1966 = vmatmul.f32.gmra.mxu0 %v1926
    %v1967 = vpop.f32.mrf.mxu0
    %v1968 = vadd.f32 %v1948, %v1967
    %1969 = vdwg.mxu0
    %1970 = vmatpush.msra.mxu0 %v1784
    %1971 = vmatpush.msra.mxu0 %v1783
    %1972 = vmatpush.msra.mxu0 %v1782
    %1973 = vmatpush.msra.mxu0 %v1781
    %1974 = vmatpush.msra.mxu0 %v1780
    %1975 = vmatpush.msra.mxu0 %v1779
    %1976 = vmatpush.msra.mxu0 %v1778
    %1977 = vmatpush.msra.mxu0 %v1777
    %1978 = vmatpush.msra.mxu0 %v1776
    %1979 = vmatpush.msra.mxu0 %v1775
    %1980 = vmatpush.msra.mxu0 %v1774
    %1981 = vmatpush.msra.mxu0 %v1773
    %1982 = vmatpush.msra.mxu0 %v1772
    %1983 = vmatpush.msra.mxu0 %v1771
    %1984 = vmatpush.msra.mxu0 %v1770
    %1985 = vmatpush.msra.mxu0 %v1769
    %1986 = vmatmul.f32.gmra.mxu0 %v1927
    %v1987 = vpop.f32.mrf.mxu0
    %v1988 = vadd.f32 %v1968, %v1987
    %1989 = vdwg.mxu0
    %1990 = vmatpush.msra.mxu0 %v1800
    %1991 = vmatpush.msra.mxu0 %v1799
    %1992 = vmatpush.msra.mxu0 %v1798
    %1993 = vmatpush.msra.mxu0 %v1797
    %1994 = vmatpush.msra.mxu0 %v1796
    %1995 = vmatpush.msra.mxu0 %v1795
    %1996 = vmatpush.msra.mxu0 %v1794
    %1997 = vmatpush.msra.mxu0 %v1793
    %1998 = vmatpush.msra.mxu0 %v1792
    %1999 = vmatpush.msra.mxu0 %v1791
    %2000 = vmatpush.msra.mxu0 %v1790
    %2001 = vmatpush.msra.mxu0 %v1789
    %2002 = vmatpush.msra.mxu0 %v1788
    %2003 = vmatpush.msra.mxu0 %v1787
    %2004 = vmatpush.msra.mxu0 %v1786
    %2005 = vmatpush.msra.mxu0 %v1785
    %2006 = vmatmul.f32.gmra.mxu0 %v1928
    %v2007 = vpop.f32.mrf.mxu0
    %v2008 = vadd.f32 %v1988, %v2007
    %2009 = vdwg.mxu0
    %2010 = vmatpush.msra.mxu0 %v1816
    %2011 = vmatpush.msra.mxu0 %v1815
    %2012 = vmatpush.msra.mxu0 %v1814
    %2013 = vmatpush.msra.mxu0 %v1813
    %2014 = vmatpush.msra.mxu0 %v1812
    %2015 = vmatpush.msra.mxu0 %v1811
    %2016 = vmatpush.msra.mxu0 %v1810
    %2017 = vmatpush.msra.mxu0 %v1809
    %2018 = vmatpush.msra.mxu0 %v1808
    %2019 = vmatpush.msra.mxu0 %v1807
    %2020 = vmatpush.msra.mxu0 %v1806
    %2021 = vmatpush.msra.mxu0 %v1805
    %2022 = vmatpush.msra.mxu0 %v1804
    %2023 = vmatpush.msra.mxu0 %v1803
    %2024 = vmatpush.msra.mxu0 %v1802
    %2025 = vmatpush.msra.mxu0 %v1801
    %2026 = vmatmul.f32.gmra.mxu0 %v1929
    %v2027 = vpop.f32.mrf.mxu0
    %v2028 = vadd.f32 %v2008, %v2027
    %2029 = vdwg.mxu0
    %v2030 = vsel %vm1917, %v2028, 0.0
    %v2031 = vrot.slane %v2030, 4
    %v2032 = vadd.f32 %v2030, %v2031
    %v2033 = vrot.slane %v2032, 2
    %v2034 = vadd.f32 %v2032, %v2033
    %v2035 = vrot.slane %v2034, 1
    %v2036 = vadd.f32 %v2034, %v2035
    %v2037 = vld [vmem:[#allocation10] sm:$0x1]
    %v2038 = vmul.f32 %v2037, 0.5
    %v2039 = vmul.f32 %v1924, %v2038
    %v2040 = vmul.f32 %v2036, %v2038
    %v2041 = vmul.f32 %v2039, %v2039
    %v2042 = vsub.f32 %v2040, %v2041
    %v2043 = vmax.f32 %v2042, 0.0
    %v2044 = vld [vmem:[#allocation7] sm:$0x1]
    %v2045 = vadd.f32 %v2043, 1e-05
    %v2046 = vrsqrt.pop %v2045
    %v2047 = vmul.f32 %v2046, %v2045
    %v2048 = vmul.f32 %v2047, %v2046
    %v2049 = vmul.f32 0.5, %v2048
    %v2050 = vsub.f32 1.5, %v2049
    %v2051 = vmul.f32 %v2046, %v2050
    %vm2052 = vweird.f32 %v2045
    %vm2053 = vweird.f32 %v2046
    %vm2054 = vmor %vm2052, %vm2053
    %v2055 = vsel %vm2054, %v2046, %v2051
    %v2056 = vmul.f32 %v2044, %v2055
    %v2057 = vld [vmem:[#allocation8] sm:$0x1]
    %v2058 = vmul.f32 %v2039, %v2056
    %v2059 = vsub.f32 %v2057, %v2058
    %v2061 = vperm.slane %v2056, 0
    %v2063 = vadd.f32 %v2061, 0.0
    %v2064 = vld [vmem:[#allocation13] sm:$0xff]
    %v2065 = vld [vmem:[#allocation13 + $0x8] sm:$0xff]
    %v2066 = vld [vmem:[#allocation13 + $0x10] sm:$0xff]
    %v2067 = vld [vmem:[#allocation13 + $0x18] sm:$0xff]
    %v2068 = vld [vmem:[#allocation13 + $0x20] sm:$0xff]
    %v2069 = vld [vmem:[#allocation13 + $0x28] sm:$0xff]
    %v2070 = vld [vmem:[#allocation13 + $0x30] sm:$0xff]
    %v2071 = vld [vmem:[#allocation13 + $0x38] sm:$0xff]
    %v2072 = vld [vmem:[#allocation13 + $0x40] sm:$0xff]
    %v2073 = vld [vmem:[#allocation13 + $0x48] sm:$0xff]
    %v2074 = vld [vmem:[#allocation13 + $0x50] sm:$0xff]
    %v2075 = vld [vmem:[#allocation13 + $0x58] sm:$0xff]
    %v2076 = vld [vmem:[#allocation13 + $0x60] sm:$0xff]
    %v2077 = vld [vmem:[#allocation13 + $0x68] sm:$0xff]
    %v2078 = vld [vmem:[#allocation13 + $0x70] sm:$0xff]
    %v2079 = vld [vmem:[#allocation13 + $0x78] sm:$0xff]
    %v2080 = vld [vmem:[#allocation13 + $0x80] sm:$0xff]
    %v2081 = vld [vmem:[#allocation13 + $0x88] sm:$0xff]
    %v2082 = vld [vmem:[#allocation13 + $0x90] sm:$0xff]
    %v2083 = vld [vmem:[#allocation13 + $0x98] sm:$0xff]
    %v2084 = vld [vmem:[#allocation13 + $0xa0] sm:$0xff]
    %v2085 = vld [vmem:[#allocation13 + $0xa8] sm:$0xff]
    %v2086 = vld [vmem:[#allocation13 + $0xb0] sm:$0xff]
    %v2087 = vld [vmem:[#allocation13 + $0xb8] sm:$0xff]
    %v2088 = vld [vmem:[#allocation13 + $0xc0] sm:$0xff]
    %v2089 = vld [vmem:[#allocation13 + $0xc8] sm:$0xff]
    %v2090 = vld [vmem:[#allocation13 + $0xd0] sm:$0xff]
    %v2091 = vld [vmem:[#allocation13 + $0xd8] sm:$0xff]
    %v2092 = vld [vmem:[#allocation13 + $0xe0] sm:$0xff]
    %v2093 = vld [vmem:[#allocation13 + $0xe8] sm:$0xff]
    %v2094 = vld [vmem:[#allocation13 + $0xf0] sm:$0xff]
    %v2095 = vld [vmem:[#allocation13 + $0xf8] sm:$0xff]
    %v2096 = vld [vmem:[#allocation13 + $0x100] sm:$0xff]
    %v2097 = vld [vmem:[#allocation13 + $0x108] sm:$0xff]
    %v2098 = vld [vmem:[#allocation13 + $0x110] sm:$0xff]
    %v2099 = vld [vmem:[#allocation13 + $0x118] sm:$0xff]
    %v2100 = vld [vmem:[#allocation13 + $0x120] sm:$0xff]
    %v2101 = vld [vmem:[#allocation13 + $0x128] sm:$0xff]
    %v2102 = vld [vmem:[#allocation13 + $0x130] sm:$0xff]
    %v2103 = vld [vmem:[#allocation13 + $0x138] sm:$0xff]
    %v2104 = vld [vmem:[#allocation13 + $0x140] sm:$0xff]
    %v2105 = vld [vmem:[#allocation13 + $0x148] sm:$0xff]
    %v2106 = vld [vmem:[#allocation13 + $0x150] sm:$0xff]
    %v2107 = vld [vmem:[#allocation13 + $0x158] sm:$0xff]
    %v2108 = vld [vmem:[#allocation13 + $0x160] sm:$0xff]
    %v2109 = vld [vmem:[#allocation13 + $0x168] sm:$0xff]
    %v2110 = vld [vmem:[#allocation13 + $0x170] sm:$0xff]
    %v2111 = vld [vmem:[#allocation13 + $0x178] sm:$0xff]
    %v2112 = vld [vmem:[#allocation13 + $0x180] sm:$0xff]
    %v2113 = vld [vmem:[#allocation13 + $0x188] sm:$0xff]
    %v2114 = vld [vmem:[#allocation13 + $0x190] sm:$0xff]
    %v2115 = vld [vmem:[#allocation13 + $0x198] sm:$0xff]
    %v2116 = vld [vmem:[#allocation13 + $0x1a0] sm:$0xff]
    %v2117 = vld [vmem:[#allocation13 + $0x1a8] sm:$0xff]
    %v2118 = vld [vmem:[#allocation13 + $0x1b0] sm:$0xff]
    %v2119 = vld [vmem:[#allocation13 + $0x1b8] sm:$0xff]
    %v2120 = vld [vmem:[#allocation13 + $0x1c0] sm:$0xff]
    %v2121 = vld [vmem:[#allocation13 + $0x1c8] sm:$0xff]
    %v2122 = vld [vmem:[#allocation13 + $0x1d0] sm:$0xff]
    %v2123 = vld [vmem:[#allocation13 + $0x1d8] sm:$0xff]
    %v2124 = vld [vmem:[#allocation13 + $0x1e0] sm:$0xff]
    %v2125 = vld [vmem:[#allocation13 + $0x1e8] sm:$0xff]
    %v2126 = vld [vmem:[#allocation13 + $0x1f0] sm:$0xff]
    %v2127 = vld [vmem:[#allocation13 + $0x1f8] sm:$0xff]
    %v2128 = vld [vmem:[#allocation13 + $0x200] sm:$0xff]
    %v2129 = vld [vmem:[#allocation13 + $0x208] sm:$0xff]
    %v2130 = vld [vmem:[#allocation13 + $0x210] sm:$0xff]
    %v2131 = vld [vmem:[#allocation13 + $0x218] sm:$0xff]
    %v2132 = vld [vmem:[#allocation13 + $0x220] sm:$0xff]
    %v2133 = vld [vmem:[#allocation13 + $0x228] sm:$0xff]
    %v2134 = vld [vmem:[#allocation13 + $0x230] sm:$0xff]
    %v2135 = vld [vmem:[#allocation13 + $0x238] sm:$0xff]
    %v2136 = vld [vmem:[#allocation13 + $0x240] sm:$0xff]
    %v2137 = vld [vmem:[#allocation13 + $0x248] sm:$0xff]
    %v2138 = vld [vmem:[#allocation13 + $0x250] sm:$0xff]
    %v2139 = vld [vmem:[#allocation13 + $0x258] sm:$0xff]
    %v2140 = vld [vmem:[#allocation13 + $0x260] sm:$0xff]
    %v2141 = vld [vmem:[#allocation13 + $0x268] sm:$0xff]
    %v2142 = vld [vmem:[#allocation13 + $0x270] sm:$0xff]
    %v2143 = vld [vmem:[#allocation13 + $0x278] sm:$0xff]
    %2144 = vmatpush.msra.mxu0 %v2139
    %2145 = vmatpush.msra.mxu0 %v2134
    %2146 = vmatpush.msra.mxu0 %v2129
    %2147 = vmatpush.msra.mxu0 %v2124
    %2148 = vmatpush.msra.mxu0 %v2119
    %2149 = vmatpush.msra.mxu0 %v2114
    %2150 = vmatpush.msra.mxu0 %v2109
    %2151 = vmatpush.msra.mxu0 %v2104
    %2152 = vmatpush.msra.mxu0 %v2099
    %2153 = vmatpush.msra.mxu0 %v2094
    %2154 = vmatpush.msra.mxu0 %v2089
    %2155 = vmatpush.msra.mxu0 %v2084
    %2156 = vmatpush.msra.mxu0 %v2079
    %2157 = vmatpush.msra.mxu0 %v2074
    %2158 = vmatpush.msra.mxu0 %v2069
    %2159 = vmatpush.msra.mxu0 %v2064
    %2160 = vmatmul.f32.gmra.mxu0 %v2063
    %v2161 = vpop.f32.mrf.mxu0
    %v2162 = vadd.f32 0.0, %v2161
    %2163 = vdwg.mxu0
    %2164 = vmatpush.msra.mxu0 %v2140
    %2165 = vmatpush.msra.mxu0 %v2135
    %2166 = vmatpush.msra.mxu0 %v2130
    %2167 = vmatpush.msra.mxu0 %v2125
    %2168 = vmatpush.msra.mxu0 %v2120
    %2169 = vmatpush.msra.mxu0 %v2115
    %2170 = vmatpush.msra.mxu0 %v2110
    %2171 = vmatpush.msra.mxu0 %v2105
    %2172 = vmatpush.msra.mxu0 %v2100
    %2173 = vmatpush.msra.mxu0 %v2095
    %2174 = vmatpush.msra.mxu0 %v2090
    %2175 = vmatpush.msra.mxu0 %v2085
    %2176 = vmatpush.msra.mxu0 %v2080
    %2177 = vmatpush.msra.mxu0 %v2075
    %2178 = vmatpush.msra.mxu0 %v2070
    %2179 = vmatpush.msra.mxu0 %v2065
    %2180 = vmatmul.f32.gmra.mxu0 %v2063
    %v2181 = vpop.f32.mrf.mxu0
    %v2182 = vadd.f32 0.0, %v2181
    %2183 = vdwg.mxu0
    %2184 = vmatpush.msra.mxu0 %v2141
    %2185 = vmatpush.msra.mxu0 %v2136
    %2186 = vmatpush.msra.mxu0 %v2131
    %2187 = vmatpush.msra.mxu0 %v2126
    %2188 = vmatpush.msra.mxu0 %v2121
    %2189 = vmatpush.msra.mxu0 %v2116
    %2190 = vmatpush.msra.mxu0 %v2111
    %2191 = vmatpush.msra.mxu0 %v2106
    %2192 = vmatpush.msra.mxu0 %v2101
    %2193 = vmatpush.msra.mxu0 %v2096
    %2194 = vmatpush.msra.mxu0 %v2091
    %2195 = vmatpush.msra.mxu0 %v2086
    %2196 = vmatpush.msra.mxu0 %v2081
    %2197 = vmatpush.msra.mxu0 %v2076
    %2198 = vmatpush.msra.mxu0 %v2071
    %2199 = vmatpush.msra.mxu0 %v2066
    %2200 = vmatmul.f32.gmra.mxu0 %v2063
    %v2201 = vpop.f32.mrf.mxu0
    %v2202 = vadd.f32 0.0, %v2201
    %2203 = vdwg.mxu0
    %2204 = vmatpush.msra.mxu0 %v2142
    %2205 = vmatpush.msra.mxu0 %v2137
    %2206 = vmatpush.msra.mxu0 %v2132
    %2207 = vmatpush.msra.mxu0 %v2127
    %2208 = vmatpush.msra.mxu0 %v2122
    %2209 = vmatpush.msra.mxu0 %v2117
    %2210 = vmatpush.msra.mxu0 %v2112
    %2211 = vmatpush.msra.mxu0 %v2107
    %2212 = vmatpush.msra.mxu0 %v2102
    %2213 = vmatpush.msra.mxu0 %v2097
    %2214 = vmatpush.msra.mxu0 %v2092
    %2215 = vmatpush.msra.mxu0 %v2087
    %2216 = vmatpush.msra.mxu0 %v2082
    %2217 = vmatpush.msra.mxu0 %v2077
    %2218 = vmatpush.msra.mxu0 %v2072
    %2219 = vmatpush.msra.mxu0 %v2067
    %2220 = vmatmul.f32.gmra.mxu0 %v2063
    %v2221 = vpop.f32.mrf.mxu0
    %v2222 = vadd.f32 0.0, %v2221
    %2223 = vdwg.mxu0
    %2224 = vmatpush.msra.mxu0 %v2143
    %2225 = vmatpush.msra.mxu0 %v2138
    %2226 = vmatpush.msra.mxu0 %v2133
    %2227 = vmatpush.msra.mxu0 %v2128
    %2228 = vmatpush.msra.mxu0 %v2123
    %2229 = vmatpush.msra.mxu0 %v2118
    %2230 = vmatpush.msra.mxu0 %v2113
    %2231 = vmatpush.msra.mxu0 %v2108
    %2232 = vmatpush.msra.mxu0 %v2103
    %2233 = vmatpush.msra.mxu0 %v2098
    %2234 = vmatpush.msra.mxu0 %v2093
    %2235 = vmatpush.msra.mxu0 %v2088
    %2236 = vmatpush.msra.mxu0 %v2083
    %2237 = vmatpush.msra.mxu0 %v2078
    %2238 = vmatpush.msra.mxu0 %v2073
    %2239 = vmatpush.msra.mxu0 %v2068
    %2240 = vmatmul.f32.gmra.mxu0 %v2063
    %v2241 = vpop.f32.mrf.mxu0
    %v2242 = vadd.f32 0.0, %v2241
    %2243 = vdwg.mxu0
    %v2245 = vperm.slane %v2059, 0
    %v2247 = vadd.f32 %v2245, 0.0
    %2248 = vmatpush.msra.mxu0 %v2139
    %2249 = vmatpush.msra.mxu0 %v2134
    %2250 = vmatpush.msra.mxu0 %v2129
    %2251 = vmatpush.msra.mxu0 %v2124
    %2252 = vmatpush.msra.mxu0 %v2119
    %2253 = vmatpush.msra.mxu0 %v2114
    %2254 = vmatpush.msra.mxu0 %v2109
    %2255 = vmatpush.msra.mxu0 %v2104
    %2256 = vmatpush.msra.mxu0 %v2099
    %2257 = vmatpush.msra.mxu0 %v2094
    %2258 = vmatpush.msra.mxu0 %v2089
    %2259 = vmatpush.msra.mxu0 %v2084
    %2260 = vmatpush.msra.mxu0 %v2079
    %2261 = vmatpush.msra.mxu0 %v2074
    %2262 = vmatpush.msra.mxu0 %v2069
    %2263 = vmatpush.msra.mxu0 %v2064
    %2264 = vmatmul.f32.gmra.mxu0 %v2247
    %v2265 = vpop.f32.mrf.mxu0
    %v2266 = vadd.f32 0.0, %v2265
    %2267 = vdwg.mxu0
    %2268 = vmatpush.msra.mxu0 %v2140
    %2269 = vmatpush.msra.mxu0 %v2135
    %2270 = vmatpush.msra.mxu0 %v2130
    %2271 = vmatpush.msra.mxu0 %v2125
    %2272 = vmatpush.msra.mxu0 %v2120
    %2273 = vmatpush.msra.mxu0 %v2115
    %2274 = vmatpush.msra.mxu0 %v2110
    %2275 = vmatpush.msra.mxu0 %v2105
    %2276 = vmatpush.msra.mxu0 %v2100
    %2277 = vmatpush.msra.mxu0 %v2095
    %2278 = vmatpush.msra.mxu0 %v2090
    %2279 = vmatpush.msra.mxu0 %v2085
    %2280 = vmatpush.msra.mxu0 %v2080
    %2281 = vmatpush.msra.mxu0 %v2075
    %2282 = vmatpush.msra.mxu0 %v2070
    %2283 = vmatpush.msra.mxu0 %v2065
    %2284 = vmatmul.f32.gmra.mxu0 %v2247
    %v2285 = vpop.f32.mrf.mxu0
    %v2286 = vadd.f32 0.0, %v2285
    %2287 = vdwg.mxu0
    %2288 = vmatpush.msra.mxu0 %v2141
    %2289 = vmatpush.msra.mxu0 %v2136
    %2290 = vmatpush.msra.mxu0 %v2131
    %2291 = vmatpush.msra.mxu0 %v2126
    %2292 = vmatpush.msra.mxu0 %v2121
    %2293 = vmatpush.msra.mxu0 %v2116
    %2294 = vmatpush.msra.mxu0 %v2111
    %2295 = vmatpush.msra.mxu0 %v2106
    %2296 = vmatpush.msra.mxu0 %v2101
    %2297 = vmatpush.msra.mxu0 %v2096
    %2298 = vmatpush.msra.mxu0 %v2091
    %2299 = vmatpush.msra.mxu0 %v2086
    %2300 = vmatpush.msra.mxu0 %v2081
    %2301 = vmatpush.msra.mxu0 %v2076
    %2302 = vmatpush.msra.mxu0 %v2071
    %2303 = vmatpush.msra.mxu0 %v2066
    %2304 = vmatmul.f32.gmra.mxu0 %v2247
    %v2305 = vpop.f32.mrf.mxu0
    %v2306 = vadd.f32 0.0, %v2305
    %2307 = vdwg.mxu0
    %2308 = vmatpush.msra.mxu0 %v2142
    %2309 = vmatpush.msra.mxu0 %v2137
    %2310 = vmatpush.msra.mxu0 %v2132
    %2311 = vmatpush.msra.mxu0 %v2127
    %2312 = vmatpush.msra.mxu0 %v2122
    %2313 = vmatpush.msra.mxu0 %v2117
    %2314 = vmatpush.msra.mxu0 %v2112
    %2315 = vmatpush.msra.mxu0 %v2107
    %2316 = vmatpush.msra.mxu0 %v2102
    %2317 = vmatpush.msra.mxu0 %v2097
    %2318 = vmatpush.msra.mxu0 %v2092
    %2319 = vmatpush.msra.mxu0 %v2087
    %2320 = vmatpush.msra.mxu0 %v2082
    %2321 = vmatpush.msra.mxu0 %v2077
    %2322 = vmatpush.msra.mxu0 %v2072
    %2323 = vmatpush.msra.mxu0 %v2067
    %2324 = vmatmul.f32.gmra.mxu0 %v2247
    %v2325 = vpop.f32.mrf.mxu0
    %v2326 = vadd.f32 0.0, %v2325
    %2327 = vdwg.mxu0
    %2328 = vmatpush.msra.mxu0 %v2143
    %2329 = vmatpush.msra.mxu0 %v2138
    %2330 = vmatpush.msra.mxu0 %v2133
    %2331 = vmatpush.msra.mxu0 %v2128
    %2332 = vmatpush.msra.mxu0 %v2123
    %2333 = vmatpush.msra.mxu0 %v2118
    %2334 = vmatpush.msra.mxu0 %v2113
    %2335 = vmatpush.msra.mxu0 %v2108
    %2336 = vmatpush.msra.mxu0 %v2103
    %2337 = vmatpush.msra.mxu0 %v2098
    %2338 = vmatpush.msra.mxu0 %v2093
    %2339 = vmatpush.msra.mxu0 %v2088
    %2340 = vmatpush.msra.mxu0 %v2083
    %2341 = vmatpush.msra.mxu0 %v2078
    %2342 = vmatpush.msra.mxu0 %v2073
    %2343 = vmatpush.msra.mxu0 %v2068
    %2344 = vmatmul.f32.gmra.mxu0 %v2247
    %v2345 = vpop.f32.mrf.mxu0
    %v2346 = vadd.f32 0.0, %v2345
    %2347 = vdwg.mxu0
    %v2348 = vmul.f32 %v1175, %v2162
    %v2349 = vmul.f32 %v1315, %v2182
    %v2350 = vmul.f32 %v1455, %v2202
    %v2351 = vmul.f32 %v1595, %v2222
    %v2352 = vmul.f32 %v1735, %v2242
    %v2353 = vadd.f32 %v2348, %v2266
    %v2354 = vadd.f32 %v2349, %v2286
    %v2355 = vadd.f32 %v2350, %v2306
    %v2356 = vadd.f32 %v2351, %v2326
    %v2357 = vadd.f32 %v2352, %v2346
    %vm2358 = vcmp.gt.f32.partialorder %v2353, 0.0
    %vm2359 = vcmp.gt.f32.partialorder %v2354, 0.0
    %vm2360 = vcmp.gt.f32.partialorder %v2355, 0.0
    %vm2361 = vcmp.gt.f32.partialorder %v2356, 0.0
    %vm2362 = vcmp.gt.f32.partialorder %v2357, 0.0
    %v2363 = vmul.f32 %v2353, 0.01
    %v2364 = vmul.f32 %v2354, 0.01
    %v2365 = vmul.f32 %v2355, 0.01
    %v2366 = vmul.f32 %v2356, 0.01
    %v2367 = vmul.f32 %v2357, 0.01
    %v2368 = vsel %vm2358, %v2353, %v2363
    %v2369 = vsel %vm2359, %v2354, %v2364
    %v2370 = vsel %vm2360, %v2355, %v2365
    %v2371 = vsel %vm2361, %v2356, %v2366
    %v2372 = vsel %vm2362, %v2357, %v2367
    %v2373 = vld [vmem:[#allocation14] sm:$0xff]
    %v2374 = vld [vmem:[#allocation14 + $0x8] sm:$0xff]
    %v2375 = vld [vmem:[#allocation14 + $0x10] sm:$0xff]
    %v2376 = vld [vmem:[#allocation14 + $0x18] sm:$0xff]
    %v2377 = vld [vmem:[#allocation14 + $0x20] sm:$0xff]
    %v2378 = vld [vmem:[#allocation14 + $0x28] sm:$0xff]
    %v2379 = vld [vmem:[#allocation14 + $0x30] sm:$0xff]
    %v2380 = vld [vmem:[#allocation14 + $0x38] sm:$0xff]
    %v2381 = vld [vmem:[#allocation14 + $0x40] sm:$0xff]
    %v2382 = vld [vmem:[#allocation14 + $0x48] sm:$0xff]
    %v2383 = vld [vmem:[#allocation14 + $0x50] sm:$0xff]
    %v2384 = vld [vmem:[#allocation14 + $0x58] sm:$0xff]
    %v2385 = vld [vmem:[#allocation14 + $0x60] sm:$0xff]
    %v2386 = vld [vmem:[#allocation14 + $0x68] sm:$0xff]
    %v2387 = vld [vmem:[#allocation14 + $0x70] sm:$0xff]
    %v2388 = vld [vmem:[#allocation14 + $0x78] sm:$0xff]
    %v2389 = vld [vmem:[#allocation14 + $0x80] sm:$0xff]
    %v2390 = vld [vmem:[#allocation14 + $0x88] sm:$0xff]
    %v2391 = vld [vmem:[#allocation14 + $0x90] sm:$0xff]
    %v2392 = vld [vmem:[#allocation14 + $0x98] sm:$0xff]
    %v2393 = vld [vmem:[#allocation14 + $0xa0] sm:$0xff]
    %v2394 = vld [vmem:[#allocation14 + $0xa8] sm:$0xff]
    %v2395 = vld [vmem:[#allocation14 + $0xb0] sm:$0xff]
    %v2396 = vld [vmem:[#allocation14 + $0xb8] sm:$0xff]
    %v2397 = vld [vmem:[#allocation14 + $0xc0] sm:$0xff]
    %v2398 = vld [vmem:[#allocation14 + $0xc8] sm:$0xff]
    %v2399 = vld [vmem:[#allocation14 + $0xd0] sm:$0xff]
    %v2400 = vld [vmem:[#allocation14 + $0xd8] sm:$0xff]
    %v2401 = vld [vmem:[#allocation14 + $0xe0] sm:$0xff]
    %v2402 = vld [vmem:[#allocation14 + $0xe8] sm:$0xff]
    %v2403 = vld [vmem:[#allocation14 + $0xf0] sm:$0xff]
    %v2404 = vld [vmem:[#allocation14 + $0xf8] sm:$0xff]
    %v2405 = vld [vmem:[#allocation14 + $0x100] sm:$0xff]
    %v2406 = vld [vmem:[#allocation14 + $0x108] sm:$0xff]
    %v2407 = vld [vmem:[#allocation14 + $0x110] sm:$0xff]
    %v2408 = vld [vmem:[#allocation14 + $0x118] sm:$0xff]
    %v2409 = vld [vmem:[#allocation14 + $0x120] sm:$0xff]
    %v2410 = vld [vmem:[#allocation14 + $0x128] sm:$0xff]
    %v2411 = vld [vmem:[#allocation14 + $0x130] sm:$0xff]
    %v2412 = vld [vmem:[#allocation14 + $0x138] sm:$0xff]
    %v2413 = vld [vmem:[#allocation14 + $0x140] sm:$0xff]
    %v2414 = vld [vmem:[#allocation14 + $0x148] sm:$0xff]
    %v2415 = vld [vmem:[#allocation14 + $0x150] sm:$0xff]
    %v2416 = vld [vmem:[#allocation14 + $0x158] sm:$0xff]
    %v2417 = vld [vmem:[#allocation14 + $0x160] sm:$0xff]
    %v2418 = vld [vmem:[#allocation14 + $0x168] sm:$0xff]
    %v2419 = vld [vmem:[#allocation14 + $0x170] sm:$0xff]
    %v2420 = vld [vmem:[#allocation14 + $0x178] sm:$0xff]
    %v2421 = vld [vmem:[#allocation14 + $0x180] sm:$0xff]
    %v2422 = vld [vmem:[#allocation14 + $0x188] sm:$0xff]
    %v2423 = vld [vmem:[#allocation14 + $0x190] sm:$0xff]
    %v2424 = vld [vmem:[#allocation14 + $0x198] sm:$0xff]
    %v2425 = vld [vmem:[#allocation14 + $0x1a0] sm:$0xff]
    %v2426 = vld [vmem:[#allocation14 + $0x1a8] sm:$0xff]
    %v2427 = vld [vmem:[#allocation14 + $0x1b0] sm:$0xff]
    %v2428 = vld [vmem:[#allocation14 + $0x1b8] sm:$0xff]
    %v2429 = vld [vmem:[#allocation14 + $0x1c0] sm:$0xff]
    %v2430 = vld [vmem:[#allocation14 + $0x1c8] sm:$0xff]
    %v2431 = vld [vmem:[#allocation14 + $0x1d0] sm:$0xff]
    %v2432 = vld [vmem:[#allocation14 + $0x1d8] sm:$0xff]
    %v2433 = vld [vmem:[#allocation14 + $0x1e0] sm:$0xff]
    %v2434 = vld [vmem:[#allocation14 + $0x1e8] sm:$0xff]
    %v2435 = vld [vmem:[#allocation14 + $0x1f0] sm:$0xff]
    %v2436 = vld [vmem:[#allocation14 + $0x1f8] sm:$0xff]
    %v2437 = vld [vmem:[#allocation14 + $0x200] sm:$0xff]
    %v2438 = vld [vmem:[#allocation14 + $0x208] sm:$0xff]
    %v2439 = vld [vmem:[#allocation14 + $0x210] sm:$0xff]
    %v2440 = vld [vmem:[#allocation14 + $0x218] sm:$0xff]
    %v2441 = vld [vmem:[#allocation14 + $0x220] sm:$0xff]
    %v2442 = vld [vmem:[#allocation14 + $0x228] sm:$0xff]
    %v2443 = vld [vmem:[#allocation14 + $0x230] sm:$0xff]
    %v2444 = vld [vmem:[#allocation14 + $0x238] sm:$0xff]
    %v2445 = vld [vmem:[#allocation14 + $0x240] sm:$0xff]
    %v2446 = vld [vmem:[#allocation14 + $0x248] sm:$0xff]
    %v2447 = vld [vmem:[#allocation14 + $0x250] sm:$0xff]
    %v2448 = vld [vmem:[#allocation14 + $0x258] sm:$0xff]
    %v2449 = vld [vmem:[#allocation14 + $0x260] sm:$0xff]
    %v2450 = vld [vmem:[#allocation14 + $0x268] sm:$0xff]
    %v2451 = vld [vmem:[#allocation14 + $0x270] sm:$0xff]
    %v2452 = vld [vmem:[#allocation14 + $0x278] sm:$0xff]
    %v2453 = vld [vmem:[#allocation14 + $0x280] sm:$0xff]
    %v2454 = vld [vmem:[#allocation14 + $0x288] sm:$0xff]
    %v2455 = vld [vmem:[#allocation14 + $0x290] sm:$0xff]
    %v2456 = vld [vmem:[#allocation14 + $0x298] sm:$0xff]
    %v2457 = vld [vmem:[#allocation14 + $0x2a0] sm:$0xff]
    %v2458 = vld [vmem:[#allocation14 + $0x2a8] sm:$0xff]
    %v2459 = vld [vmem:[#allocation14 + $0x2b0] sm:$0xff]
    %v2460 = vld [vmem:[#allocation14 + $0x2b8] sm:$0xff]
    %v2461 = vld [vmem:[#allocation14 + $0x2c0] sm:$0xff]
    %v2462 = vld [vmem:[#allocation14 + $0x2c8] sm:$0xff]
    %v2463 = vld [vmem:[#allocation14 + $0x2d0] sm:$0xff]
    %v2464 = vld [vmem:[#allocation14 + $0x2d8] sm:$0xff]
    %v2465 = vld [vmem:[#allocation14 + $0x2e0] sm:$0xff]
    %v2466 = vld [vmem:[#allocation14 + $0x2e8] sm:$0xff]
    %v2467 = vld [vmem:[#allocation14 + $0x2f0] sm:$0xff]
    %v2468 = vld [vmem:[#allocation14 + $0x2f8] sm:$0xff]
    %v2469 = vld [vmem:[#allocation14 + $0x300] sm:$0xff]
    %v2470 = vld [vmem:[#allocation14 + $0x308] sm:$0xff]
    %v2471 = vld [vmem:[#allocation14 + $0x310] sm:$0xff]
    %v2472 = vld [vmem:[#allocation14 + $0x318] sm:$0xff]
    %v2473 = vld [vmem:[#allocation14 + $0x320] sm:$0xff]
    %v2474 = vld [vmem:[#allocation14 + $0x328] sm:$0xff]
    %v2475 = vld [vmem:[#allocation14 + $0x330] sm:$0xff]
    %v2476 = vld [vmem:[#allocation14 + $0x338] sm:$0xff]
    %v2477 = vld [vmem:[#allocation14 + $0x340] sm:$0xff]
    %v2478 = vld [vmem:[#allocation14 + $0x348] sm:$0xff]
    %v2479 = vld [vmem:[#allocation14 + $0x350] sm:$0xff]
    %v2480 = vld [vmem:[#allocation14 + $0x358] sm:$0xff]
    %v2481 = vld [vmem:[#allocation14 + $0x360] sm:$0xff]
    %v2482 = vld [vmem:[#allocation14 + $0x368] sm:$0xff]
    %v2483 = vld [vmem:[#allocation14 + $0x370] sm:$0xff]
    %v2484 = vld [vmem:[#allocation14 + $0x378] sm:$0xff]
    %v2485 = vld [vmem:[#allocation14 + $0x380] sm:$0xff]
    %v2486 = vld [vmem:[#allocation14 + $0x388] sm:$0xff]
    %v2487 = vld [vmem:[#allocation14 + $0x390] sm:$0xff]
    %v2488 = vld [vmem:[#allocation14 + $0x398] sm:$0xff]
    %v2489 = vld [vmem:[#allocation14 + $0x3a0] sm:$0xff]
    %v2490 = vld [vmem:[#allocation14 + $0x3a8] sm:$0xff]
    %v2491 = vld [vmem:[#allocation14 + $0x3b0] sm:$0xff]
    %v2492 = vld [vmem:[#allocation14 + $0x3b8] sm:$0xff]
    %v2493 = vld [vmem:[#allocation14 + $0x3c0] sm:$0xff]
    %v2494 = vld [vmem:[#allocation14 + $0x3c8] sm:$0xff]
    %v2495 = vld [vmem:[#allocation14 + $0x3d0] sm:$0xff]
    %v2496 = vld [vmem:[#allocation14 + $0x3d8] sm:$0xff]
    %v2497 = vld [vmem:[#allocation14 + $0x3e0] sm:$0xff]
    %v2498 = vld [vmem:[#allocation14 + $0x3e8] sm:$0xff]
    %v2499 = vld [vmem:[#allocation14 + $0x3f0] sm:$0xff]
    %v2500 = vld [vmem:[#allocation14 + $0x3f8] sm:$0xff]
    %v2501 = vld [vmem:[#allocation14 + $0x400] sm:$0xff]
    %v2502 = vld [vmem:[#allocation14 + $0x408] sm:$0xff]
    %v2503 = vld [vmem:[#allocation14 + $0x410] sm:$0xff]
    %v2504 = vld [vmem:[#allocation14 + $0x418] sm:$0xff]
    %v2505 = vld [vmem:[#allocation14 + $0x420] sm:$0xff]
    %v2506 = vld [vmem:[#allocation14 + $0x428] sm:$0xff]
    %v2507 = vld [vmem:[#allocation14 + $0x430] sm:$0xff]
    %v2508 = vld [vmem:[#allocation14 + $0x438] sm:$0xff]
    %v2509 = vld [vmem:[#allocation14 + $0x440] sm:$0xff]
    %v2510 = vld [vmem:[#allocation14 + $0x448] sm:$0xff]
    %v2511 = vld [vmem:[#allocation14 + $0x450] sm:$0xff]
    %v2512 = vld [vmem:[#allocation14 + $0x458] sm:$0xff]
    %v2513 = vld [vmem:[#allocation14 + $0x460] sm:$0xff]
    %v2514 = vld [vmem:[#allocation14 + $0x468] sm:$0xff]
    %v2515 = vld [vmem:[#allocation14 + $0x470] sm:$0xff]
    %v2516 = vld [vmem:[#allocation14 + $0x478] sm:$0xff]
    %v2517 = vld [vmem:[#allocation14 + $0x480] sm:$0xff]
    %v2518 = vld [vmem:[#allocation14 + $0x488] sm:$0xff]
    %v2519 = vld [vmem:[#allocation14 + $0x490] sm:$0xff]
    %v2520 = vld [vmem:[#allocation14 + $0x498] sm:$0xff]
    %v2521 = vld [vmem:[#allocation14 + $0x4a0] sm:$0xff]
    %v2522 = vld [vmem:[#allocation14 + $0x4a8] sm:$0xff]
    %v2523 = vld [vmem:[#allocation14 + $0x4b0] sm:$0xff]
    %v2524 = vld [vmem:[#allocation14 + $0x4b8] sm:$0xff]
    %v2525 = vld [vmem:[#allocation14 + $0x4c0] sm:$0xff]
    %v2526 = vld [vmem:[#allocation14 + $0x4c8] sm:$0xff]
    %v2527 = vld [vmem:[#allocation14 + $0x4d0] sm:$0xff]
    %v2528 = vld [vmem:[#allocation14 + $0x4d8] sm:$0xff]
    %v2529 = vld [vmem:[#allocation14 + $0x4e0] sm:$0xff]
    %v2530 = vld [vmem:[#allocation14 + $0x4e8] sm:$0xff]
    %v2531 = vld [vmem:[#allocation14 + $0x4f0] sm:$0xff]
    %v2532 = vld [vmem:[#allocation14 + $0x4f8] sm:$0xff]
    %v2533 = vld [vmem:[#allocation14 + $0x500] sm:$0xff]
    %v2534 = vld [vmem:[#allocation14 + $0x508] sm:$0xff]
    %v2535 = vld [vmem:[#allocation14 + $0x510] sm:$0xff]
    %v2536 = vld [vmem:[#allocation14 + $0x518] sm:$0xff]
    %v2537 = vld [vmem:[#allocation14 + $0x520] sm:$0xff]
    %v2538 = vld [vmem:[#allocation14 + $0x528] sm:$0xff]
    %v2539 = vld [vmem:[#allocation14 + $0x530] sm:$0xff]
    %v2540 = vld [vmem:[#allocation14 + $0x538] sm:$0xff]
    %v2541 = vld [vmem:[#allocation14 + $0x540] sm:$0xff]
    %v2542 = vld [vmem:[#allocation14 + $0x548] sm:$0xff]
    %v2543 = vld [vmem:[#allocation14 + $0x550] sm:$0xff]
    %v2544 = vld [vmem:[#allocation14 + $0x558] sm:$0xff]
    %v2545 = vld [vmem:[#allocation14 + $0x560] sm:$0xff]
    %v2546 = vld [vmem:[#allocation14 + $0x568] sm:$0xff]
    %v2547 = vld [vmem:[#allocation14 + $0x570] sm:$0xff]
    %v2548 = vld [vmem:[#allocation14 + $0x578] sm:$0xff]
    %v2549 = vld [vmem:[#allocation14 + $0x580] sm:$0xff]
    %v2550 = vld [vmem:[#allocation14 + $0x588] sm:$0xff]
    %v2551 = vld [vmem:[#allocation14 + $0x590] sm:$0xff]
    %v2552 = vld [vmem:[#allocation14 + $0x598] sm:$0xff]
    %v2553 = vld [vmem:[#allocation14 + $0x5a0] sm:$0xff]
    %v2554 = vld [vmem:[#allocation14 + $0x5a8] sm:$0xff]
    %v2555 = vld [vmem:[#allocation14 + $0x5b0] sm:$0xff]
    %v2556 = vld [vmem:[#allocation14 + $0x5b8] sm:$0xff]
    %v2557 = vld [vmem:[#allocation14 + $0x5c0] sm:$0xff]
    %v2558 = vld [vmem:[#allocation14 + $0x5c8] sm:$0xff]
    %v2559 = vld [vmem:[#allocation14 + $0x5d0] sm:$0xff]
    %v2560 = vld [vmem:[#allocation14 + $0x5d8] sm:$0xff]
    %v2561 = vld [vmem:[#allocation14 + $0x5e0] sm:$0xff]
    %v2562 = vld [vmem:[#allocation14 + $0x5e8] sm:$0xff]
    %v2563 = vld [vmem:[#allocation14 + $0x5f0] sm:$0xff]
    %v2564 = vld [vmem:[#allocation14 + $0x5f8] sm:$0xff]
    %v2565 = vld [vmem:[#allocation14 + $0x600] sm:$0xff]
    %v2566 = vld [vmem:[#allocation14 + $0x608] sm:$0xff]
    %v2567 = vld [vmem:[#allocation14 + $0x610] sm:$0xff]
    %v2568 = vld [vmem:[#allocation14 + $0x618] sm:$0xff]
    %v2569 = vld [vmem:[#allocation14 + $0x620] sm:$0xff]
    %v2570 = vld [vmem:[#allocation14 + $0x628] sm:$0xff]
    %v2571 = vld [vmem:[#allocation14 + $0x630] sm:$0xff]
    %v2572 = vld [vmem:[#allocation14 + $0x638] sm:$0xff]
    %v2573 = vld [vmem:[#allocation14 + $0x640] sm:$0xff]
    %v2574 = vld [vmem:[#allocation14 + $0x648] sm:$0xff]
    %v2575 = vld [vmem:[#allocation14 + $0x650] sm:$0xff]
    %v2576 = vld [vmem:[#allocation14 + $0x658] sm:$0xff]
    %v2577 = vld [vmem:[#allocation14 + $0x660] sm:$0xff]
    %v2578 = vld [vmem:[#allocation14 + $0x668] sm:$0xff]
    %v2579 = vld [vmem:[#allocation14 + $0x670] sm:$0xff]
    %v2580 = vld [vmem:[#allocation14 + $0x678] sm:$0xff]
    %v2581 = vld [vmem:[#allocation14 + $0x680] sm:$0xff]
    %v2582 = vld [vmem:[#allocation14 + $0x688] sm:$0xff]
    %v2583 = vld [vmem:[#allocation14 + $0x690] sm:$0xff]
    %v2584 = vld [vmem:[#allocation14 + $0x698] sm:$0xff]
    %v2585 = vld [vmem:[#allocation14 + $0x6a0] sm:$0xff]
    %v2586 = vld [vmem:[#allocation14 + $0x6a8] sm:$0xff]
    %v2587 = vld [vmem:[#allocation14 + $0x6b0] sm:$0xff]
    %v2588 = vld [vmem:[#allocation14 + $0x6b8] sm:$0xff]
    %v2589 = vld [vmem:[#allocation14 + $0x6c0] sm:$0xff]
    %v2590 = vld [vmem:[#allocation14 + $0x6c8] sm:$0xff]
    %v2591 = vld [vmem:[#allocation14 + $0x6d0] sm:$0xff]
    %v2592 = vld [vmem:[#allocation14 + $0x6d8] sm:$0xff]
    %v2593 = vld [vmem:[#allocation14 + $0x6e0] sm:$0xff]
    %v2594 = vld [vmem:[#allocation14 + $0x6e8] sm:$0xff]
    %v2595 = vld [vmem:[#allocation14 + $0x6f0] sm:$0xff]
    %v2596 = vld [vmem:[#allocation14 + $0x6f8] sm:$0xff]
    %v2597 = vld [vmem:[#allocation14 + $0x700] sm:$0xff]
    %v2598 = vld [vmem:[#allocation14 + $0x708] sm:$0xff]
    %v2599 = vld [vmem:[#allocation14 + $0x710] sm:$0xff]
    %v2600 = vld [vmem:[#allocation14 + $0x718] sm:$0xff]
    %v2601 = vld [vmem:[#allocation14 + $0x720] sm:$0xff]
    %v2602 = vld [vmem:[#allocation14 + $0x728] sm:$0xff]
    %v2603 = vld [vmem:[#allocation14 + $0x730] sm:$0xff]
    %v2604 = vld [vmem:[#allocation14 + $0x738] sm:$0xff]
    %v2605 = vld [vmem:[#allocation14 + $0x740] sm:$0xff]
    %v2606 = vld [vmem:[#allocation14 + $0x748] sm:$0xff]
    %v2607 = vld [vmem:[#allocation14 + $0x750] sm:$0xff]
    %v2608 = vld [vmem:[#allocation14 + $0x758] sm:$0xff]
    %v2609 = vld [vmem:[#allocation14 + $0x760] sm:$0xff]
    %v2610 = vld [vmem:[#allocation14 + $0x768] sm:$0xff]
    %v2611 = vld [vmem:[#allocation14 + $0x770] sm:$0xff]
    %v2612 = vld [vmem:[#allocation14 + $0x778] sm:$0xff]
    %v2613 = vld [vmem:[#allocation14 + $0x780] sm:$0xff]
    %v2614 = vld [vmem:[#allocation14 + $0x788] sm:$0xff]
    %v2615 = vld [vmem:[#allocation14 + $0x790] sm:$0xff]
    %v2616 = vld [vmem:[#allocation14 + $0x798] sm:$0xff]
    %v2617 = vld [vmem:[#allocation14 + $0x7a0] sm:$0xff]
    %v2618 = vld [vmem:[#allocation14 + $0x7a8] sm:$0xff]
    %v2619 = vld [vmem:[#allocation14 + $0x7b0] sm:$0xff]
    %v2620 = vld [vmem:[#allocation14 + $0x7b8] sm:$0xff]
    %v2621 = vld [vmem:[#allocation14 + $0x7c0] sm:$0xff]
    %v2622 = vld [vmem:[#allocation14 + $0x7c8] sm:$0xff]
    %v2623 = vld [vmem:[#allocation14 + $0x7d0] sm:$0xff]
    %v2624 = vld [vmem:[#allocation14 + $0x7d8] sm:$0xff]
    %v2625 = vld [vmem:[#allocation14 + $0x7e0] sm:$0xff]
    %v2626 = vld [vmem:[#allocation14 + $0x7e8] sm:$0xff]
    %v2627 = vld [vmem:[#allocation14 + $0x7f0] sm:$0xff]
    %v2628 = vld [vmem:[#allocation14 + $0x7f8] sm:$0xff]
    %v2629 = vld [vmem:[#allocation14 + $0x800] sm:$0xff]
    %v2630 = vld [vmem:[#allocation14 + $0x808] sm:$0xff]
    %v2631 = vld [vmem:[#allocation14 + $0x810] sm:$0xff]
    %v2632 = vld [vmem:[#allocation14 + $0x818] sm:$0xff]
    %v2633 = vld [vmem:[#allocation14 + $0x820] sm:$0xff]
    %v2634 = vld [vmem:[#allocation14 + $0x828] sm:$0xff]
    %v2635 = vld [vmem:[#allocation14 + $0x830] sm:$0xff]
    %v2636 = vld [vmem:[#allocation14 + $0x838] sm:$0xff]
    %v2637 = vld [vmem:[#allocation14 + $0x840] sm:$0xff]
    %v2638 = vld [vmem:[#allocation14 + $0x848] sm:$0xff]
    %v2639 = vld [vmem:[#allocation14 + $0x850] sm:$0xff]
    %v2640 = vld [vmem:[#allocation14 + $0x858] sm:$0xff]
    %v2641 = vld [vmem:[#allocation14 + $0x860] sm:$0xff]
    %v2642 = vld [vmem:[#allocation14 + $0x868] sm:$0xff]
    %v2643 = vld [vmem:[#allocation14 + $0x870] sm:$0xff]
    %v2644 = vld [vmem:[#allocation14 + $0x878] sm:$0xff]
    %v2645 = vld [vmem:[#allocation14 + $0x880] sm:$0xff]
    %v2646 = vld [vmem:[#allocation14 + $0x888] sm:$0xff]
    %v2647 = vld [vmem:[#allocation14 + $0x890] sm:$0xff]
    %v2648 = vld [vmem:[#allocation14 + $0x898] sm:$0xff]
    %v2649 = vld [vmem:[#allocation14 + $0x8a0] sm:$0xff]
    %v2650 = vld [vmem:[#allocation14 + $0x8a8] sm:$0xff]
    %v2651 = vld [vmem:[#allocation14 + $0x8b0] sm:$0xff]
    %v2652 = vld [vmem:[#allocation14 + $0x8b8] sm:$0xff]
    %v2653 = vld [vmem:[#allocation14 + $0x8c0] sm:$0xff]
    %v2654 = vld [vmem:[#allocation14 + $0x8c8] sm:$0xff]
    %v2655 = vld [vmem:[#allocation14 + $0x8d0] sm:$0xff]
    %v2656 = vld [vmem:[#allocation14 + $0x8d8] sm:$0xff]
    %v2657 = vld [vmem:[#allocation14 + $0x8e0] sm:$0xff]
    %v2658 = vld [vmem:[#allocation14 + $0x8e8] sm:$0xff]
    %v2659 = vld [vmem:[#allocation14 + $0x8f0] sm:$0xff]
    %v2660 = vld [vmem:[#allocation14 + $0x8f8] sm:$0xff]
    %v2661 = vld [vmem:[#allocation14 + $0x900] sm:$0xff]
    %v2662 = vld [vmem:[#allocation14 + $0x908] sm:$0xff]
    %v2663 = vld [vmem:[#allocation14 + $0x910] sm:$0xff]
    %v2664 = vld [vmem:[#allocation14 + $0x918] sm:$0xff]
    %v2665 = vld [vmem:[#allocation14 + $0x920] sm:$0xff]
    %v2666 = vld [vmem:[#allocation14 + $0x928] sm:$0xff]
    %v2667 = vld [vmem:[#allocation14 + $0x930] sm:$0xff]
    %v2668 = vld [vmem:[#allocation14 + $0x938] sm:$0xff]
    %v2669 = vld [vmem:[#allocation14 + $0x940] sm:$0xff]
    %v2670 = vld [vmem:[#allocation14 + $0x948] sm:$0xff]
    %v2671 = vld [vmem:[#allocation14 + $0x950] sm:$0xff]
    %v2672 = vld [vmem:[#allocation14 + $0x958] sm:$0xff]
    %v2673 = vld [vmem:[#allocation14 + $0x960] sm:$0xff]
    %v2674 = vld [vmem:[#allocation14 + $0x968] sm:$0xff]
    %v2675 = vld [vmem:[#allocation14 + $0x970] sm:$0xff]
    %v2676 = vld [vmem:[#allocation14 + $0x978] sm:$0xff]
    %v2677 = vld [vmem:[#allocation14 + $0x980] sm:$0xff]
    %v2678 = vld [vmem:[#allocation14 + $0x988] sm:$0xff]
    %v2679 = vld [vmem:[#allocation14 + $0x990] sm:$0xff]
    %v2680 = vld [vmem:[#allocation14 + $0x998] sm:$0xff]
    %v2681 = vld [vmem:[#allocation14 + $0x9a0] sm:$0xff]
    %v2682 = vld [vmem:[#allocation14 + $0x9a8] sm:$0xff]
    %v2683 = vld [vmem:[#allocation14 + $0x9b0] sm:$0xff]
    %v2684 = vld [vmem:[#allocation14 + $0x9b8] sm:$0xff]
    %v2685 = vld [vmem:[#allocation14 + $0x9c0] sm:$0xff]
    %v2686 = vld [vmem:[#allocation14 + $0x9c8] sm:$0xff]
    %v2687 = vld [vmem:[#allocation14 + $0x9d0] sm:$0xff]
    %v2688 = vld [vmem:[#allocation14 + $0x9d8] sm:$0xff]
    %v2689 = vld [vmem:[#allocation14 + $0x9e0] sm:$0xff]
    %v2690 = vld [vmem:[#allocation14 + $0x9e8] sm:$0xff]
    %v2691 = vld [vmem:[#allocation14 + $0x9f0] sm:$0xff]
    %v2692 = vld [vmem:[#allocation14 + $0x9f8] sm:$0xff]
    %v2693 = vld [vmem:[#allocation16] sm:$0xf]
    %v2695 = vperm.slane %v2693, 0
    %v2696 = vperm.slane %v2693, 1
    %v2697 = vperm.slane %v2693, 2
    %v2698 = vperm.slane %v2693, 3
    %2703 = vmatpush.msra.mxu0 %v2433
    %2704 = vmatpush.msra.mxu0 %v2429
    %2705 = vmatpush.msra.mxu0 %v2425
    %2706 = vmatpush.msra.mxu0 %v2421
    %2707 = vmatpush.msra.mxu0 %v2417
    %2708 = vmatpush.msra.mxu0 %v2413
    %2709 = vmatpush.msra.mxu0 %v2409
    %2710 = vmatpush.msra.mxu0 %v2405
    %2711 = vmatpush.msra.mxu0 %v2401
    %2712 = vmatpush.msra.mxu0 %v2397
    %2713 = vmatpush.msra.mxu0 %v2393
    %2714 = vmatpush.msra.mxu0 %v2389
    %2715 = vmatpush.msra.mxu0 %v2385
    %2716 = vmatpush.msra.mxu0 %v2381
    %2717 = vmatpush.msra.mxu0 %v2377
    %2718 = vmatpush.msra.mxu0 %v2373
    %2719 = vmatmul.f32.gmra.mxu0 %v2368
    %v2720 = vpop.f32.mrf.mxu0
    %v2721 = vadd.f32 %v2695, %v2720
    %2722 = vdwg.mxu0
    %2723 = vmatpush.msra.mxu0 %v2497
    %2724 = vmatpush.msra.mxu0 %v2493
    %2725 = vmatpush.msra.mxu0 %v2489
    %2726 = vmatpush.msra.mxu0 %v2485
    %2727 = vmatpush.msra.mxu0 %v2481
    %2728 = vmatpush.msra.mxu0 %v2477
    %2729 = vmatpush.msra.mxu0 %v2473
    %2730 = vmatpush.msra.mxu0 %v2469
    %2731 = vmatpush.msra.mxu0 %v2465
    %2732 = vmatpush.msra.mxu0 %v2461
    %2733 = vmatpush.msra.mxu0 %v2457
    %2734 = vmatpush.msra.mxu0 %v2453
    %2735 = vmatpush.msra.mxu0 %v2449
    %2736 = vmatpush.msra.mxu0 %v2445
    %2737 = vmatpush.msra.mxu0 %v2441
    %2738 = vmatpush.msra.mxu0 %v2437
    %2739 = vmatmul.f32.gmra.mxu0 %v2369
    %v2740 = vpop.f32.mrf.mxu0
    %v2741 = vadd.f32 %v2721, %v2740
    %2742 = vdwg.mxu0
    %2743 = vmatpush.msra.mxu0 %v2561
    %2744 = vmatpush.msra.mxu0 %v2557
    %2745 = vmatpush.msra.mxu0 %v2553
    %2746 = vmatpush.msra.mxu0 %v2549
    %2747 = vmatpush.msra.mxu0 %v2545
    %2748 = vmatpush.msra.mxu0 %v2541
    %2749 = vmatpush.msra.mxu0 %v2537
    %2750 = vmatpush.msra.mxu0 %v2533
    %2751 = vmatpush.msra.mxu0 %v2529
    %2752 = vmatpush.msra.mxu0 %v2525
    %2753 = vmatpush.msra.mxu0 %v2521
    %2754 = vmatpush.msra.mxu0 %v2517
    %2755 = vmatpush.msra.mxu0 %v2513
    %2756 = vmatpush.msra.mxu0 %v2509
    %2757 = vmatpush.msra.mxu0 %v2505
    %2758 = vmatpush.msra.mxu0 %v2501
    %2759 = vmatmul.f32.gmra.mxu0 %v2370
    %v2760 = vpop.f32.mrf.mxu0
    %v2761 = vadd.f32 %v2741, %v2760
    %2762 = vdwg.mxu0
    %2763 = vmatpush.msra.mxu0 %v2625
    %2764 = vmatpush.msra.mxu0 %v2621
    %2765 = vmatpush.msra.mxu0 %v2617
    %2766 = vmatpush.msra.mxu0 %v2613
    %2767 = vmatpush.msra.mxu0 %v2609
    %2768 = vmatpush.msra.mxu0 %v2605
    %2769 = vmatpush.msra.mxu0 %v2601
    %2770 = vmatpush.msra.mxu0 %v2597
    %2771 = vmatpush.msra.mxu0 %v2593
    %2772 = vmatpush.msra.mxu0 %v2589
    %2773 = vmatpush.msra.mxu0 %v2585
    %2774 = vmatpush.msra.mxu0 %v2581
    %2775 = vmatpush.msra.mxu0 %v2577
    %2776 = vmatpush.msra.mxu0 %v2573
    %2777 = vmatpush.msra.mxu0 %v2569
    %2778 = vmatpush.msra.mxu0 %v2565
    %2779 = vmatmul.f32.gmra.mxu0 %v2371
    %v2780 = vpop.f32.mrf.mxu0
    %v2781 = vadd.f32 %v2761, %v2780
    %2782 = vdwg.mxu0
    %2783 = vmatpush.msra.mxu0 %v2689
    %2784 = vmatpush.msra.mxu0 %v2685
    %2785 = vmatpush.msra.mxu0 %v2681
    %2786 = vmatpush.msra.mxu0 %v2677
    %2787 = vmatpush.msra.mxu0 %v2673
    %2788 = vmatpush.msra.mxu0 %v2669
    %2789 = vmatpush.msra.mxu0 %v2665
    %2790 = vmatpush.msra.mxu0 %v2661
    %2791 = vmatpush.msra.mxu0 %v2657
    %2792 = vmatpush.msra.mxu0 %v2653
    %2793 = vmatpush.msra.mxu0 %v2649
    %2794 = vmatpush.msra.mxu0 %v2645
    %2795 = vmatpush.msra.mxu0 %v2641
    %2796 = vmatpush.msra.mxu0 %v2637
    %2797 = vmatpush.msra.mxu0 %v2633
    %2798 = vmatpush.msra.mxu0 %v2629
    %2799 = vmatmul.f32.gmra.mxu0 %v2372
    %v2800 = vpop.f32.mrf.mxu0
    %v2801 = vadd.f32 %v2781, %v2800
    %2802 = vdwg.mxu0
    %2803 = vmatpush.msra.mxu0 %v2434
    %2804 = vmatpush.msra.mxu0 %v2430
    %2805 = vmatpush.msra.mxu0 %v2426
    %2806 = vmatpush.msra.mxu0 %v2422
    %2807 = vmatpush.msra.mxu0 %v2418
    %2808 = vmatpush.msra.mxu0 %v2414
    %2809 = vmatpush.msra.mxu0 %v2410
    %2810 = vmatpush.msra.mxu0 %v2406
    %2811 = vmatpush.msra.mxu0 %v2402
    %2812 = vmatpush.msra.mxu0 %v2398
    %2813 = vmatpush.msra.mxu0 %v2394
    %2814 = vmatpush.msra.mxu0 %v2390
    %2815 = vmatpush.msra.mxu0 %v2386
    %2816 = vmatpush.msra.mxu0 %v2382
    %2817 = vmatpush.msra.mxu0 %v2378
    %2818 = vmatpush.msra.mxu0 %v2374
    %2819 = vmatmul.f32.gmra.mxu0 %v2368
    %v2820 = vpop.f32.mrf.mxu0
    %v2821 = vadd.f32 %v2696, %v2820
    %2822 = vdwg.mxu0
    %2823 = vmatpush.msra.mxu0 %v2498
    %2824 = vmatpush.msra.mxu0 %v2494
    %2825 = vmatpush.msra.mxu0 %v2490
    %2826 = vmatpush.msra.mxu0 %v2486
    %2827 = vmatpush.msra.mxu0 %v2482
    %2828 = vmatpush.msra.mxu0 %v2478
    %2829 = vmatpush.msra.mxu0 %v2474
    %2830 = vmatpush.msra.mxu0 %v2470
    %2831 = vmatpush.msra.mxu0 %v2466
    %2832 = vmatpush.msra.mxu0 %v2462
    %2833 = vmatpush.msra.mxu0 %v2458
    %2834 = vmatpush.msra.mxu0 %v2454
    %2835 = vmatpush.msra.mxu0 %v2450
    %2836 = vmatpush.msra.mxu0 %v2446
    %2837 = vmatpush.msra.mxu0 %v2442
    %2838 = vmatpush.msra.mxu0 %v2438
    %2839 = vmatmul.f32.gmra.mxu0 %v2369
    %v2840 = vpop.f32.mrf.mxu0
    %v2841 = vadd.f32 %v2821, %v2840
    %2842 = vdwg.mxu0
    %2843 = vmatpush.msra.mxu0 %v2562
    %2844 = vmatpush.msra.mxu0 %v2558
    %2845 = vmatpush.msra.mxu0 %v2554
    %2846 = vmatpush.msra.mxu0 %v2550
    %2847 = vmatpush.msra.mxu0 %v2546
    %2848 = vmatpush.msra.mxu0 %v2542
    %2849 = vmatpush.msra.mxu0 %v2538
    %2850 = vmatpush.msra.mxu0 %v2534
    %2851 = vmatpush.msra.mxu0 %v2530
    %2852 = vmatpush.msra.mxu0 %v2526
    %2853 = vmatpush.msra.mxu0 %v2522
    %2854 = vmatpush.msra.mxu0 %v2518
    %2855 = vmatpush.msra.mxu0 %v2514
    %2856 = vmatpush.msra.mxu0 %v2510
    %2857 = vmatpush.msra.mxu0 %v2506
    %2858 = vmatpush.msra.mxu0 %v2502
    %2859 = vmatmul.f32.gmra.mxu0 %v2370
    %v2860 = vpop.f32.mrf.mxu0
    %v2861 = vadd.f32 %v2841, %v2860
    %2862 = vdwg.mxu0
    %2863 = vmatpush.msra.mxu0 %v2626
    %2864 = vmatpush.msra.mxu0 %v2622
    %2865 = vmatpush.msra.mxu0 %v2618
    %2866 = vmatpush.msra.mxu0 %v2614
    %2867 = vmatpush.msra.mxu0 %v2610
    %2868 = vmatpush.msra.mxu0 %v2606
    %2869 = vmatpush.msra.mxu0 %v2602
    %2870 = vmatpush.msra.mxu0 %v2598
    %2871 = vmatpush.msra.mxu0 %v2594
    %2872 = vmatpush.msra.mxu0 %v2590
    %2873 = vmatpush.msra.mxu0 %v2586
    %2874 = vmatpush.msra.mxu0 %v2582
    %2875 = vmatpush.msra.mxu0 %v2578
    %2876 = vmatpush.msra.mxu0 %v2574
    %2877 = vmatpush.msra.mxu0 %v2570
    %2878 = vmatpush.msra.mxu0 %v2566
    %2879 = vmatmul.f32.gmra.mxu0 %v2371
    %v2880 = vpop.f32.mrf.mxu0
    %v2881 = vadd.f32 %v2861, %v2880
    %2882 = vdwg.mxu0
    %2883 = vmatpush.msra.mxu0 %v2690
    %2884 = vmatpush.msra.mxu0 %v2686
    %2885 = vmatpush.msra.mxu0 %v2682
    %2886 = vmatpush.msra.mxu0 %v2678
    %2887 = vmatpush.msra.mxu0 %v2674
    %2888 = vmatpush.msra.mxu0 %v2670
    %2889 = vmatpush.msra.mxu0 %v2666
    %2890 = vmatpush.msra.mxu0 %v2662
    %2891 = vmatpush.msra.mxu0 %v2658
    %2892 = vmatpush.msra.mxu0 %v2654
    %2893 = vmatpush.msra.mxu0 %v2650
    %2894 = vmatpush.msra.mxu0 %v2646
    %2895 = vmatpush.msra.mxu0 %v2642
    %2896 = vmatpush.msra.mxu0 %v2638
    %2897 = vmatpush.msra.mxu0 %v2634
    %2898 = vmatpush.msra.mxu0 %v2630
    %2899 = vmatmul.f32.gmra.mxu0 %v2372
    %v2900 = vpop.f32.mrf.mxu0
    %v2901 = vadd.f32 %v2881, %v2900
    %2902 = vdwg.mxu0
    %2903 = vmatpush.msra.mxu0 %v2435
    %2904 = vmatpush.msra.mxu0 %v2431
    %2905 = vmatpush.msra.mxu0 %v2427
    %2906 = vmatpush.msra.mxu0 %v2423
    %2907 = vmatpush.msra.mxu0 %v2419
    %2908 = vmatpush.msra.mxu0 %v2415
    %2909 = vmatpush.msra.mxu0 %v2411
    %2910 = vmatpush.msra.mxu0 %v2407
    %2911 = vmatpush.msra.mxu0 %v2403
    %2912 = vmatpush.msra.mxu0 %v2399
    %2913 = vmatpush.msra.mxu0 %v2395
    %2914 = vmatpush.msra.mxu0 %v2391
    %2915 = vmatpush.msra.mxu0 %v2387
    %2916 = vmatpush.msra.mxu0 %v2383
    %2917 = vmatpush.msra.mxu0 %v2379
    %2918 = vmatpush.msra.mxu0 %v2375
    %2919 = vmatmul.f32.gmra.mxu0 %v2368
    %v2920 = vpop.f32.mrf.mxu0
    %v2921 = vadd.f32 %v2697, %v2920
    %2922 = vdwg.mxu0
    %2923 = vmatpush.msra.mxu0 %v2499
    %2924 = vmatpush.msra.mxu0 %v2495
    %2925 = vmatpush.msra.mxu0 %v2491
    %2926 = vmatpush.msra.mxu0 %v2487
    %2927 = vmatpush.msra.mxu0 %v2483
    %2928 = vmatpush.msra.mxu0 %v2479
    %2929 = vmatpush.msra.mxu0 %v2475
    %2930 = vmatpush.msra.mxu0 %v2471
    %2931 = vmatpush.msra.mxu0 %v2467
    %2932 = vmatpush.msra.mxu0 %v2463
    %2933 = vmatpush.msra.mxu0 %v2459
    %2934 = vmatpush.msra.mxu0 %v2455
    %2935 = vmatpush.msra.mxu0 %v2451
    %2936 = vmatpush.msra.mxu0 %v2447
    %2937 = vmatpush.msra.mxu0 %v2443
    %2938 = vmatpush.msra.mxu0 %v2439
    %2939 = vmatmul.f32.gmra.mxu0 %v2369
    %v2940 = vpop.f32.mrf.mxu0
    %v2941 = vadd.f32 %v2921, %v2940
    %2942 = vdwg.mxu0
    %2943 = vmatpush.msra.mxu0 %v2563
    %2944 = vmatpush.msra.mxu0 %v2559
    %2945 = vmatpush.msra.mxu0 %v2555
    %2946 = vmatpush.msra.mxu0 %v2551
    %2947 = vmatpush.msra.mxu0 %v2547
    %2948 = vmatpush.msra.mxu0 %v2543
    %2949 = vmatpush.msra.mxu0 %v2539
    %2950 = vmatpush.msra.mxu0 %v2535
    %2951 = vmatpush.msra.mxu0 %v2531
    %2952 = vmatpush.msra.mxu0 %v2527
    %2953 = vmatpush.msra.mxu0 %v2523
    %2954 = vmatpush.msra.mxu0 %v2519
    %2955 = vmatpush.msra.mxu0 %v2515
    %2956 = vmatpush.msra.mxu0 %v2511
    %2957 = vmatpush.msra.mxu0 %v2507
    %2958 = vmatpush.msra.mxu0 %v2503
    %2959 = vmatmul.f32.gmra.mxu0 %v2370
    %v2960 = vpop.f32.mrf.mxu0
    %v2961 = vadd.f32 %v2941, %v2960
    %2962 = vdwg.mxu0
    %2963 = vmatpush.msra.mxu0 %v2627
    %2964 = vmatpush.msra.mxu0 %v2623
    %2965 = vmatpush.msra.mxu0 %v2619
    %2966 = vmatpush.msra.mxu0 %v2615
    %2967 = vmatpush.msra.mxu0 %v2611
    %2968 = vmatpush.msra.mxu0 %v2607
    %2969 = vmatpush.msra.mxu0 %v2603
    %2970 = vmatpush.msra.mxu0 %v2599
    %2971 = vmatpush.msra.mxu0 %v2595
    %2972 = vmatpush.msra.mxu0 %v2591
    %2973 = vmatpush.msra.mxu0 %v2587
    %2974 = vmatpush.msra.mxu0 %v2583
    %2975 = vmatpush.msra.mxu0 %v2579
    %2976 = vmatpush.msra.mxu0 %v2575
    %2977 = vmatpush.msra.mxu0 %v2571
    %2978 = vmatpush.msra.mxu0 %v2567
    %2979 = vmatmul.f32.gmra.mxu0 %v2371
    %v2980 = vpop.f32.mrf.mxu0
    %v2981 = vadd.f32 %v2961, %v2980
    %2982 = vdwg.mxu0
    %2983 = vmatpush.msra.mxu0 %v2691
    %2984 = vmatpush.msra.mxu0 %v2687
    %2985 = vmatpush.msra.mxu0 %v2683
    %2986 = vmatpush.msra.mxu0 %v2679
    %2987 = vmatpush.msra.mxu0 %v2675
    %2988 = vmatpush.msra.mxu0 %v2671
    %2989 = vmatpush.msra.mxu0 %v2667
    %2990 = vmatpush.msra.mxu0 %v2663
    %2991 = vmatpush.msra.mxu0 %v2659
    %2992 = vmatpush.msra.mxu0 %v2655
    %2993 = vmatpush.msra.mxu0 %v2651
    %2994 = vmatpush.msra.mxu0 %v2647
    %2995 = vmatpush.msra.mxu0 %v2643
    %2996 = vmatpush.msra.mxu0 %v2639
    %2997 = vmatpush.msra.mxu0 %v2635
    %2998 = vmatpush.msra.mxu0 %v2631
    %2999 = vmatmul.f32.gmra.mxu0 %v2372
    %v3000 = vpop.f32.mrf.mxu0
    %v3001 = vadd.f32 %v2981, %v3000
    %3002 = vdwg.mxu0
    %3003 = vmatpush.msra.mxu0 %v2436
    %3004 = vmatpush.msra.mxu0 %v2432
    %3005 = vmatpush.msra.mxu0 %v2428
    %3006 = vmatpush.msra.mxu0 %v2424
    %3007 = vmatpush.msra.mxu0 %v2420
    %3008 = vmatpush.msra.mxu0 %v2416
    %3009 = vmatpush.msra.mxu0 %v2412
    %3010 = vmatpush.msra.mxu0 %v2408
    %3011 = vmatpush.msra.mxu0 %v2404
    %3012 = vmatpush.msra.mxu0 %v2400
    %3013 = vmatpush.msra.mxu0 %v2396
    %3014 = vmatpush.msra.mxu0 %v2392
    %3015 = vmatpush.msra.mxu0 %v2388
    %3016 = vmatpush.msra.mxu0 %v2384
    %3017 = vmatpush.msra.mxu0 %v2380
    %3018 = vmatpush.msra.mxu0 %v2376
    %3019 = vmatmul.f32.gmra.mxu0 %v2368
    %v3020 = vpop.f32.mrf.mxu0
    %v3021 = vadd.f32 %v2698, %v3020
    %3022 = vdwg.mxu0
    %3023 = vmatpush.msra.mxu0 %v2500
    %3024 = vmatpush.msra.mxu0 %v2496
    %3025 = vmatpush.msra.mxu0 %v2492
    %3026 = vmatpush.msra.mxu0 %v2488
    %3027 = vmatpush.msra.mxu0 %v2484
    %3028 = vmatpush.msra.mxu0 %v2480
    %3029 = vmatpush.msra.mxu0 %v2476
    %3030 = vmatpush.msra.mxu0 %v2472
    %3031 = vmatpush.msra.mxu0 %v2468
    %3032 = vmatpush.msra.mxu0 %v2464
    %3033 = vmatpush.msra.mxu0 %v2460
    %3034 = vmatpush.msra.mxu0 %v2456
    %3035 = vmatpush.msra.mxu0 %v2452
    %3036 = vmatpush.msra.mxu0 %v2448
    %3037 = vmatpush.msra.mxu0 %v2444
    %3038 = vmatpush.msra.mxu0 %v2440
    %3039 = vmatmul.f32.gmra.mxu0 %v2369
    %v3040 = vpop.f32.mrf.mxu0
    %v3041 = vadd.f32 %v3021, %v3040
    %3042 = vdwg.mxu0
    %3043 = vmatpush.msra.mxu0 %v2564
    %3044 = vmatpush.msra.mxu0 %v2560
    %3045 = vmatpush.msra.mxu0 %v2556
    %3046 = vmatpush.msra.mxu0 %v2552
    %3047 = vmatpush.msra.mxu0 %v2548
    %3048 = vmatpush.msra.mxu0 %v2544
    %3049 = vmatpush.msra.mxu0 %v2540
    %3050 = vmatpush.msra.mxu0 %v2536
    %3051 = vmatpush.msra.mxu0 %v2532
    %3052 = vmatpush.msra.mxu0 %v2528
    %3053 = vmatpush.msra.mxu0 %v2524
    %3054 = vmatpush.msra.mxu0 %v2520
    %3055 = vmatpush.msra.mxu0 %v2516
    %3056 = vmatpush.msra.mxu0 %v2512
    %3057 = vmatpush.msra.mxu0 %v2508
    %3058 = vmatpush.msra.mxu0 %v2504
    %3059 = vmatmul.f32.gmra.mxu0 %v2370
    %v3060 = vpop.f32.mrf.mxu0
    %v3061 = vadd.f32 %v3041, %v3060
    %3062 = vdwg.mxu0
    %3063 = vmatpush.msra.mxu0 %v2628
    %3064 = vmatpush.msra.mxu0 %v2624
    %3065 = vmatpush.msra.mxu0 %v2620
    %3066 = vmatpush.msra.mxu0 %v2616
    %3067 = vmatpush.msra.mxu0 %v2612
    %3068 = vmatpush.msra.mxu0 %v2608
    %3069 = vmatpush.msra.mxu0 %v2604
    %3070 = vmatpush.msra.mxu0 %v2600
    %3071 = vmatpush.msra.mxu0 %v2596
    %3072 = vmatpush.msra.mxu0 %v2592
    %3073 = vmatpush.msra.mxu0 %v2588
    %3074 = vmatpush.msra.mxu0 %v2584
    %3075 = vmatpush.msra.mxu0 %v2580
    %3076 = vmatpush.msra.mxu0 %v2576
    %3077 = vmatpush.msra.mxu0 %v2572
    %3078 = vmatpush.msra.mxu0 %v2568
    %3079 = vmatmul.f32.gmra.mxu0 %v2371
    %v3080 = vpop.f32.mrf.mxu0
    %v3081 = vadd.f32 %v3061, %v3080
    %3082 = vdwg.mxu0
    %3083 = vmatpush.msra.mxu0 %v2692
    %3084 = vmatpush.msra.mxu0 %v2688
    %3085 = vmatpush.msra.mxu0 %v2684
    %3086 = vmatpush.msra.mxu0 %v2680
    %3087 = vmatpush.msra.mxu0 %v2676
    %3088 = vmatpush.msra.mxu0 %v2672
    %3089 = vmatpush.msra.mxu0 %v2668
    %3090 = vmatpush.msra.mxu0 %v2664
    %3091 = vmatpush.msra.mxu0 %v2660
    %3092 = vmatpush.msra.mxu0 %v2656
    %3093 = vmatpush.msra.mxu0 %v2652
    %3094 = vmatpush.msra.mxu0 %v2648
    %3095 = vmatpush.msra.mxu0 %v2644
    %3096 = vmatpush.msra.mxu0 %v2640
    %3097 = vmatpush.msra.mxu0 %v2636
    %3098 = vmatpush.msra.mxu0 %v2632
    %3099 = vmatmul.f32.gmra.mxu0 %v2372
    %v3100 = vpop.f32.mrf.mxu0
    %v3101 = vadd.f32 %v3081, %v3100
    %3102 = vdwg.mxu0
    %v3103 = vld [vmem:[#allocation22] sm:$0xff]
    %v3104 = vld [vmem:[#allocation22 + $0x8] sm:$0xff]
    %v3105 = vld [vmem:[#allocation22 + $0x10] sm:$0xff]
    %v3106 = vld [vmem:[#allocation22 + $0x18] sm:$0xff]
    %v3107 = vld [vmem:[#allocation22 + $0x20] sm:$0xff]
    %v3108 = vld [vmem:[#allocation22 + $0x28] sm:$0xff]
    %v3109 = vld [vmem:[#allocation22 + $0x30] sm:$0xff]
    %v3110 = vld [vmem:[#allocation22 + $0x38] sm:$0xff]
    %v3111 = vld [vmem:[#allocation22 + $0x40] sm:$0xff]
    %v3112 = vld [vmem:[#allocation22 + $0x48] sm:$0xff]
    %v3113 = vld [vmem:[#allocation22 + $0x50] sm:$0xff]
    %v3114 = vld [vmem:[#allocation22 + $0x58] sm:$0xff]
    %v3115 = vld [vmem:[#allocation22 + $0x60] sm:$0xff]
    %v3116 = vld [vmem:[#allocation22 + $0x68] sm:$0xff]
    %v3117 = vld [vmem:[#allocation22 + $0x70] sm:$0xff]
    %v3118 = vld [vmem:[#allocation22 + $0x78] sm:$0xff]
    %v3119 = vld [vmem:[#allocation22 + $0x80] sm:$0xff]
    %v3120 = vld [vmem:[#allocation22 + $0x88] sm:$0xff]
    %v3121 = vld [vmem:[#allocation22 + $0x90] sm:$0xff]
    %v3122 = vld [vmem:[#allocation22 + $0x98] sm:$0xff]
    %v3123 = vld [vmem:[#allocation22 + $0xa0] sm:$0xff]
    %v3124 = vld [vmem:[#allocation22 + $0xa8] sm:$0xff]
    %v3125 = vld [vmem:[#allocation22 + $0xb0] sm:$0xff]
    %v3126 = vld [vmem:[#allocation22 + $0xb8] sm:$0xff]
    %v3127 = vld [vmem:[#allocation22 + $0xc0] sm:$0xff]
    %v3128 = vld [vmem:[#allocation22 + $0xc8] sm:$0xff]
    %v3129 = vld [vmem:[#allocation22 + $0xd0] sm:$0xff]
    %v3130 = vld [vmem:[#allocation22 + $0xd8] sm:$0xff]
    %v3131 = vld [vmem:[#allocation22 + $0xe0] sm:$0xff]
    %v3132 = vld [vmem:[#allocation22 + $0xe8] sm:$0xff]
    %v3133 = vld [vmem:[#allocation22 + $0xf0] sm:$0xff]
    %v3134 = vld [vmem:[#allocation22 + $0xf8] sm:$0xff]
    %v3135 = vld [vmem:[#allocation22 + $0x100] sm:$0xff]
    %v3136 = vld [vmem:[#allocation22 + $0x108] sm:$0xff]
    %v3137 = vld [vmem:[#allocation22 + $0x110] sm:$0xff]
    %v3138 = vld [vmem:[#allocation22 + $0x118] sm:$0xff]
    %v3139 = vld [vmem:[#allocation22 + $0x120] sm:$0xff]
    %v3140 = vld [vmem:[#allocation22 + $0x128] sm:$0xff]
    %v3141 = vld [vmem:[#allocation22 + $0x130] sm:$0xff]
    %v3142 = vld [vmem:[#allocation22 + $0x138] sm:$0xff]
    %v3143 = vld [vmem:[#allocation22 + $0x140] sm:$0xff]
    %v3144 = vld [vmem:[#allocation22 + $0x148] sm:$0xff]
    %v3145 = vld [vmem:[#allocation22 + $0x150] sm:$0xff]
    %v3146 = vld [vmem:[#allocation22 + $0x158] sm:$0xff]
    %v3147 = vld [vmem:[#allocation22 + $0x160] sm:$0xff]
    %v3148 = vld [vmem:[#allocation22 + $0x168] sm:$0xff]
    %v3149 = vld [vmem:[#allocation22 + $0x170] sm:$0xff]
    %v3150 = vld [vmem:[#allocation22 + $0x178] sm:$0xff]
    %v3151 = vld [vmem:[#allocation22 + $0x180] sm:$0xff]
    %v3152 = vld [vmem:[#allocation22 + $0x188] sm:$0xff]
    %v3153 = vld [vmem:[#allocation22 + $0x190] sm:$0xff]
    %v3154 = vld [vmem:[#allocation22 + $0x198] sm:$0xff]
    %v3155 = vld [vmem:[#allocation22 + $0x1a0] sm:$0xff]
    %v3156 = vld [vmem:[#allocation22 + $0x1a8] sm:$0xff]
    %v3157 = vld [vmem:[#allocation22 + $0x1b0] sm:$0xff]
    %v3158 = vld [vmem:[#allocation22 + $0x1b8] sm:$0xff]
    %v3159 = vld [vmem:[#allocation22 + $0x1c0] sm:$0xff]
    %v3160 = vld [vmem:[#allocation22 + $0x1c8] sm:$0xff]
    %v3161 = vld [vmem:[#allocation22 + $0x1d0] sm:$0xff]
    %v3162 = vld [vmem:[#allocation22 + $0x1d8] sm:$0xff]
    %v3163 = vld [vmem:[#allocation22 + $0x1e0] sm:$0xff]
    %v3164 = vld [vmem:[#allocation22 + $0x1e8] sm:$0xff]
    %v3165 = vld [vmem:[#allocation22 + $0x1f0] sm:$0xff]
    %v3166 = vld [vmem:[#allocation22 + $0x1f8] sm:$0xff]
    %3167 = vmatpush.msra.mxu0 %v3118
    %3168 = vmatpush.msra.mxu0 %v3117
    %3169 = vmatpush.msra.mxu0 %v3116
    %3170 = vmatpush.msra.mxu0 %v3115
    %3171 = vmatpush.msra.mxu0 %v3114
    %3172 = vmatpush.msra.mxu0 %v3113
    %3173 = vmatpush.msra.mxu0 %v3112
    %3174 = vmatpush.msra.mxu0 %v3111
    %3175 = vmatpush.msra.mxu0 %v3110
    %3176 = vmatpush.msra.mxu0 %v3109
    %3177 = vmatpush.msra.mxu0 %v3108
    %3178 = vmatpush.msra.mxu0 %v3107
    %3179 = vmatpush.msra.mxu0 %v3106
    %3180 = vmatpush.msra.mxu0 %v3105
    %3181 = vmatpush.msra.mxu0 %v3104
    %3182 = vmatpush.msra.mxu0 %v3103
    %3183 = vmatmul.f32.gmra.mxu0 %v2801
    %v3184 = vpop.f32.mrf.mxu0
    %v3185 = vadd.f32 0.0, %v3184
    %3186 = vdwg.mxu0
    %3187 = vmatpush.msra.mxu0 %v3134
    %3188 = vmatpush.msra.mxu0 %v3133
    %3189 = vmatpush.msra.mxu0 %v3132
    %3190 = vmatpush.msra.mxu0 %v3131
    %3191 = vmatpush.msra.mxu0 %v3130
    %3192 = vmatpush.msra.mxu0 %v3129
    %3193 = vmatpush.msra.mxu0 %v3128
    %3194 = vmatpush.msra.mxu0 %v3127
    %3195 = vmatpush.msra.mxu0 %v3126
    %3196 = vmatpush.msra.mxu0 %v3125
    %3197 = vmatpush.msra.mxu0 %v3124
    %3198 = vmatpush.msra.mxu0 %v3123
    %3199 = vmatpush.msra.mxu0 %v3122
    %3200 = vmatpush.msra.mxu0 %v3121
    %3201 = vmatpush.msra.mxu0 %v3120
    %3202 = vmatpush.msra.mxu0 %v3119
    %3203 = vmatmul.f32.gmra.mxu0 %v2901
    %v3204 = vpop.f32.mrf.mxu0
    %v3205 = vadd.f32 %v3185, %v3204
    %3206 = vdwg.mxu0
    %3207 = vmatpush.msra.mxu0 %v3150
    %3208 = vmatpush.msra.mxu0 %v3149
    %3209 = vmatpush.msra.mxu0 %v3148
    %3210 = vmatpush.msra.mxu0 %v3147
    %3211 = vmatpush.msra.mxu0 %v3146
    %3212 = vmatpush.msra.mxu0 %v3145
    %3213 = vmatpush.msra.mxu0 %v3144
    %3214 = vmatpush.msra.mxu0 %v3143
    %3215 = vmatpush.msra.mxu0 %v3142
    %3216 = vmatpush.msra.mxu0 %v3141
    %3217 = vmatpush.msra.mxu0 %v3140
    %3218 = vmatpush.msra.mxu0 %v3139
    %3219 = vmatpush.msra.mxu0 %v3138
    %3220 = vmatpush.msra.mxu0 %v3137
    %3221 = vmatpush.msra.mxu0 %v3136
    %3222 = vmatpush.msra.mxu0 %v3135
    %3223 = vmatmul.f32.gmra.mxu0 %v3001
    %v3224 = vpop.f32.mrf.mxu0
    %v3225 = vadd.f32 %v3205, %v3224
    %3226 = vdwg.mxu0
    %3227 = vmatpush.msra.mxu0 %v3166
    %3228 = vmatpush.msra.mxu0 %v3165
    %3229 = vmatpush.msra.mxu0 %v3164
    %3230 = vmatpush.msra.mxu0 %v3163
    %3231 = vmatpush.msra.mxu0 %v3162
    %3232 = vmatpush.msra.mxu0 %v3161
    %3233 = vmatpush.msra.mxu0 %v3160
    %3234 = vmatpush.msra.mxu0 %v3159
    %3235 = vmatpush.msra.mxu0 %v3158
    %3236 = vmatpush.msra.mxu0 %v3157
    %3237 = vmatpush.msra.mxu0 %v3156
    %3238 = vmatpush.msra.mxu0 %v3155
    %3239 = vmatpush.msra.mxu0 %v3154
    %3240 = vmatpush.msra.mxu0 %v3153
    %3241 = vmatpush.msra.mxu0 %v3152
    %3242 = vmatpush.msra.mxu0 %v3151
    %3243 = vmatmul.f32.gmra.mxu0 %v3101
    %v3244 = vpop.f32.mrf.mxu0
    %v3245 = vadd.f32 %v3225, %v3244
    %3246 = vdwg.mxu0
    %v3247 = vsel %vm1917, %v3245, 0.0
    %v3248 = vrot.slane %v3247, 4
    %v3249 = vadd.f32 %v3247, %v3248
    %v3250 = vrot.slane %v3249, 2
    %v3251 = vadd.f32 %v3249, %v3250
    %v3252 = vrot.slane %v3251, 1
    %v3253 = vadd.f32 %v3251, %v3252
    %v3254 = vmul.f32 %v2801, %v2801
    %v3255 = vmul.f32 %v2901, %v2901
    %v3256 = vmul.f32 %v3001, %v3001
    %v3257 = vmul.f32 %v3101, %v3101
    %3258 = vmatpush.msra.mxu0 %v3118
    %3259 = vmatpush.msra.mxu0 %v3117
    %3260 = vmatpush.msra.mxu0 %v3116
    %3261 = vmatpush.msra.mxu0 %v3115
    %3262 = vmatpush.msra.mxu0 %v3114
    %3263 = vmatpush.msra.mxu0 %v3113
    %3264 = vmatpush.msra.mxu0 %v3112
    %3265 = vmatpush.msra.mxu0 %v3111
    %3266 = vmatpush.msra.mxu0 %v3110
    %3267 = vmatpush.msra.mxu0 %v3109
    %3268 = vmatpush.msra.mxu0 %v3108
    %3269 = vmatpush.msra.mxu0 %v3107
    %3270 = vmatpush.msra.mxu0 %v3106
    %3271 = vmatpush.msra.mxu0 %v3105
    %3272 = vmatpush.msra.mxu0 %v3104
    %3273 = vmatpush.msra.mxu0 %v3103
    %3274 = vmatmul.f32.gmra.mxu0 %v3254
    %v3275 = vpop.f32.mrf.mxu0
    %v3276 = vadd.f32 0.0, %v3275
    %3277 = vdwg.mxu0
    %3278 = vmatpush.msra.mxu0 %v3134
    %3279 = vmatpush.msra.mxu0 %v3133
    %3280 = vmatpush.msra.mxu0 %v3132
    %3281 = vmatpush.msra.mxu0 %v3131
    %3282 = vmatpush.msra.mxu0 %v3130
    %3283 = vmatpush.msra.mxu0 %v3129
    %3284 = vmatpush.msra.mxu0 %v3128
    %3285 = vmatpush.msra.mxu0 %v3127
    %3286 = vmatpush.msra.mxu0 %v3126
    %3287 = vmatpush.msra.mxu0 %v3125
    %3288 = vmatpush.msra.mxu0 %v3124
    %3289 = vmatpush.msra.mxu0 %v3123
    %3290 = vmatpush.msra.mxu0 %v3122
    %3291 = vmatpush.msra.mxu0 %v3121
    %3292 = vmatpush.msra.mxu0 %v3120
    %3293 = vmatpush.msra.mxu0 %v3119
    %3294 = vmatmul.f32.gmra.mxu0 %v3255
    %v3295 = vpop.f32.mrf.mxu0
    %v3296 = vadd.f32 %v3276, %v3295
    %3297 = vdwg.mxu0
    %3298 = vmatpush.msra.mxu0 %v3150
    %3299 = vmatpush.msra.mxu0 %v3149
    %3300 = vmatpush.msra.mxu0 %v3148
    %3301 = vmatpush.msra.mxu0 %v3147
    %3302 = vmatpush.msra.mxu0 %v3146
    %3303 = vmatpush.msra.mxu0 %v3145
    %3304 = vmatpush.msra.mxu0 %v3144
    %3305 = vmatpush.msra.mxu0 %v3143
    %3306 = vmatpush.msra.mxu0 %v3142
    %3307 = vmatpush.msra.mxu0 %v3141
    %3308 = vmatpush.msra.mxu0 %v3140
    %3309 = vmatpush.msra.mxu0 %v3139
    %3310 = vmatpush.msra.mxu0 %v3138
    %3311 = vmatpush.msra.mxu0 %v3137
    %3312 = vmatpush.msra.mxu0 %v3136
    %3313 = vmatpush.msra.mxu0 %v3135
    %3314 = vmatmul.f32.gmra.mxu0 %v3256
    %v3315 = vpop.f32.mrf.mxu0
    %v3316 = vadd.f32 %v3296, %v3315
    %3317 = vdwg.mxu0
    %3318 = vmatpush.msra.mxu0 %v3166
    %3319 = vmatpush.msra.mxu0 %v3165
    %3320 = vmatpush.msra.mxu0 %v3164
    %3321 = vmatpush.msra.mxu0 %v3163
    %3322 = vmatpush.msra.mxu0 %v3162
    %3323 = vmatpush.msra.mxu0 %v3161
    %3324 = vmatpush.msra.mxu0 %v3160
    %3325 = vmatpush.msra.mxu0 %v3159
    %3326 = vmatpush.msra.mxu0 %v3158
    %3327 = vmatpush.msra.mxu0 %v3157
    %3328 = vmatpush.msra.mxu0 %v3156
    %3329 = vmatpush.msra.mxu0 %v3155
    %3330 = vmatpush.msra.mxu0 %v3154
    %3331 = vmatpush.msra.mxu0 %v3153
    %3332 = vmatpush.msra.mxu0 %v3152
    %3333 = vmatpush.msra.mxu0 %v3151
    %3334 = vmatmul.f32.gmra.mxu0 %v3257
    %v3335 = vpop.f32.mrf.mxu0
    %v3336 = vadd.f32 %v3316, %v3335
    %3337 = vdwg.mxu0
    %v3338 = vsel %vm1917, %v3336, 0.0
    %v3339 = vrot.slane %v3338, 4
    %v3340 = vadd.f32 %v3338, %v3339
    %v3341 = vrot.slane %v3340, 2
    %v3342 = vadd.f32 %v3340, %v3341
    %v3343 = vrot.slane %v3342, 1
    %v3344 = vadd.f32 %v3342, %v3343
    %v3345 = vld [vmem:[#allocation20] sm:$0x1]
    %v3346 = vmul.f32 %v3345, 0.5
    %v3347 = vmul.f32 %v3253, %v3346
    %v3348 = vmul.f32 %v3344, %v3346
    %v3349 = vmul.f32 %v3347, %v3347
    %v3350 = vsub.f32 %v3348, %v3349
    %v3351 = vmax.f32 %v3350, 0.0
    %v3352 = vld [vmem:[#allocation17] sm:$0x1]
    %v3353 = vadd.f32 %v3351, 1e-05
    %v3354 = vrsqrt.pop %v3353
    %v3355 = vmul.f32 %v3354, %v3353
    %v3356 = vmul.f32 %v3355, %v3354
    %v3357 = vmul.f32 0.5, %v3356
    %v3358 = vsub.f32 1.5, %v3357
    %v3359 = vmul.f32 %v3354, %v3358
    %vm3360 = vweird.f32 %v3353
    %vm3361 = vweird.f32 %v3354
    %vm3362 = vmor %vm3360, %vm3361
    %v3363 = vsel %vm3362, %v3354, %v3359
    %v3364 = vmul.f32 %v3352, %v3363
    %v3365 = vld [vmem:[#allocation19] sm:$0x1]
    %v3366 = vmul.f32 %v3347, %v3364
    %v3367 = vsub.f32 %v3365, %v3366
    %v3369 = vperm.slane %v3364, 0
    %v3371 = vadd.f32 %v3369, 0.0
    %v3372 = vld [vmem:[#allocation23] sm:$0xff]
    %v3373 = vld [vmem:[#allocation23 + $0x8] sm:$0xff]
    %v3374 = vld [vmem:[#allocation23 + $0x10] sm:$0xff]
    %v3375 = vld [vmem:[#allocation23 + $0x18] sm:$0xff]
    %v3376 = vld [vmem:[#allocation23 + $0x20] sm:$0xff]
    %v3377 = vld [vmem:[#allocation23 + $0x28] sm:$0xff]
    %v3378 = vld [vmem:[#allocation23 + $0x30] sm:$0xff]
    %v3379 = vld [vmem:[#allocation23 + $0x38] sm:$0xff]
    %v3380 = vld [vmem:[#allocation23 + $0x40] sm:$0xff]
    %v3381 = vld [vmem:[#allocation23 + $0x48] sm:$0xff]
    %v3382 = vld [vmem:[#allocation23 + $0x50] sm:$0xff]
    %v3383 = vld [vmem:[#allocation23 + $0x58] sm:$0xff]
    %v3384 = vld [vmem:[#allocation23 + $0x60] sm:$0xff]
    %v3385 = vld [vmem:[#allocation23 + $0x68] sm:$0xff]
    %v3386 = vld [vmem:[#allocation23 + $0x70] sm:$0xff]
    %v3387 = vld [vmem:[#allocation23 + $0x78] sm:$0xff]
    %v3388 = vld [vmem:[#allocation23 + $0x80] sm:$0xff]
    %v3389 = vld [vmem:[#allocation23 + $0x88] sm:$0xff]
    %v3390 = vld [vmem:[#allocation23 + $0x90] sm:$0xff]
    %v3391 = vld [vmem:[#allocation23 + $0x98] sm:$0xff]
    %v3392 = vld [vmem:[#allocation23 + $0xa0] sm:$0xff]
    %v3393 = vld [vmem:[#allocation23 + $0xa8] sm:$0xff]
    %v3394 = vld [vmem:[#allocation23 + $0xb0] sm:$0xff]
    %v3395 = vld [vmem:[#allocation23 + $0xb8] sm:$0xff]
    %v3396 = vld [vmem:[#allocation23 + $0xc0] sm:$0xff]
    %v3397 = vld [vmem:[#allocation23 + $0xc8] sm:$0xff]
    %v3398 = vld [vmem:[#allocation23 + $0xd0] sm:$0xff]
    %v3399 = vld [vmem:[#allocation23 + $0xd8] sm:$0xff]
    %v3400 = vld [vmem:[#allocation23 + $0xe0] sm:$0xff]
    %v3401 = vld [vmem:[#allocation23 + $0xe8] sm:$0xff]
    %v3402 = vld [vmem:[#allocation23 + $0xf0] sm:$0xff]
    %v3403 = vld [vmem:[#allocation23 + $0xf8] sm:$0xff]
    %v3404 = vld [vmem:[#allocation23 + $0x100] sm:$0xff]
    %v3405 = vld [vmem:[#allocation23 + $0x108] sm:$0xff]
    %v3406 = vld [vmem:[#allocation23 + $0x110] sm:$0xff]
    %v3407 = vld [vmem:[#allocation23 + $0x118] sm:$0xff]
    %v3408 = vld [vmem:[#allocation23 + $0x120] sm:$0xff]
    %v3409 = vld [vmem:[#allocation23 + $0x128] sm:$0xff]
    %v3410 = vld [vmem:[#allocation23 + $0x130] sm:$0xff]
    %v3411 = vld [vmem:[#allocation23 + $0x138] sm:$0xff]
    %v3412 = vld [vmem:[#allocation23 + $0x140] sm:$0xff]
    %v3413 = vld [vmem:[#allocation23 + $0x148] sm:$0xff]
    %v3414 = vld [vmem:[#allocation23 + $0x150] sm:$0xff]
    %v3415 = vld [vmem:[#allocation23 + $0x158] sm:$0xff]
    %v3416 = vld [vmem:[#allocation23 + $0x160] sm:$0xff]
    %v3417 = vld [vmem:[#allocation23 + $0x168] sm:$0xff]
    %v3418 = vld [vmem:[#allocation23 + $0x170] sm:$0xff]
    %v3419 = vld [vmem:[#allocation23 + $0x178] sm:$0xff]
    %v3420 = vld [vmem:[#allocation23 + $0x180] sm:$0xff]
    %v3421 = vld [vmem:[#allocation23 + $0x188] sm:$0xff]
    %v3422 = vld [vmem:[#allocation23 + $0x190] sm:$0xff]
    %v3423 = vld [vmem:[#allocation23 + $0x198] sm:$0xff]
    %v3424 = vld [vmem:[#allocation23 + $0x1a0] sm:$0xff]
    %v3425 = vld [vmem:[#allocation23 + $0x1a8] sm:$0xff]
    %v3426 = vld [vmem:[#allocation23 + $0x1b0] sm:$0xff]
    %v3427 = vld [vmem:[#allocation23 + $0x1b8] sm:$0xff]
    %v3428 = vld [vmem:[#allocation23 + $0x1c0] sm:$0xff]
    %v3429 = vld [vmem:[#allocation23 + $0x1c8] sm:$0xff]
    %v3430 = vld [vmem:[#allocation23 + $0x1d0] sm:$0xff]
    %v3431 = vld [vmem:[#allocation23 + $0x1d8] sm:$0xff]
    %v3432 = vld [vmem:[#allocation23 + $0x1e0] sm:$0xff]
    %v3433 = vld [vmem:[#allocation23 + $0x1e8] sm:$0xff]
    %v3434 = vld [vmem:[#allocation23 + $0x1f0] sm:$0xff]
    %v3435 = vld [vmem:[#allocation23 + $0x1f8] sm:$0xff]
    %3436 = vmatpush.msra.mxu0 %v3432
    %3437 = vmatpush.msra.mxu0 %v3428
    %3438 = vmatpush.msra.mxu0 %v3424
    %3439 = vmatpush.msra.mxu0 %v3420
    %3440 = vmatpush.msra.mxu0 %v3416
    %3441 = vmatpush.msra.mxu0 %v3412
    %3442 = vmatpush.msra.mxu0 %v3408
    %3443 = vmatpush.msra.mxu0 %v3404
    %3444 = vmatpush.msra.mxu0 %v3400
    %3445 = vmatpush.msra.mxu0 %v3396
    %3446 = vmatpush.msra.mxu0 %v3392
    %3447 = vmatpush.msra.mxu0 %v3388
    %3448 = vmatpush.msra.mxu0 %v3384
    %3449 = vmatpush.msra.mxu0 %v3380
    %3450 = vmatpush.msra.mxu0 %v3376
    %3451 = vmatpush.msra.mxu0 %v3372
    %3452 = vmatmul.f32.gmra.mxu0 %v3371
    %v3453 = vpop.f32.mrf.mxu0
    %v3454 = vadd.f32 0.0, %v3453
    %3455 = vdwg.mxu0
    %3456 = vmatpush.msra.mxu0 %v3433
    %3457 = vmatpush.msra.mxu0 %v3429
    %3458 = vmatpush.msra.mxu0 %v3425
    %3459 = vmatpush.msra.mxu0 %v3421
    %3460 = vmatpush.msra.mxu0 %v3417
    %3461 = vmatpush.msra.mxu0 %v3413
    %3462 = vmatpush.msra.mxu0 %v3409
    %3463 = vmatpush.msra.mxu0 %v3405
    %3464 = vmatpush.msra.mxu0 %v3401
    %3465 = vmatpush.msra.mxu0 %v3397
    %3466 = vmatpush.msra.mxu0 %v3393
    %3467 = vmatpush.msra.mxu0 %v3389
    %3468 = vmatpush.msra.mxu0 %v3385
    %3469 = vmatpush.msra.mxu0 %v3381
    %3470 = vmatpush.msra.mxu0 %v3377
    %3471 = vmatpush.msra.mxu0 %v3373
    %3472 = vmatmul.f32.gmra.mxu0 %v3371
    %v3473 = vpop.f32.mrf.mxu0
    %v3474 = vadd.f32 0.0, %v3473
    %3475 = vdwg.mxu0
    %3476 = vmatpush.msra.mxu0 %v3434
    %3477 = vmatpush.msra.mxu0 %v3430
    %3478 = vmatpush.msra.mxu0 %v3426
    %3479 = vmatpush.msra.mxu0 %v3422
    %3480 = vmatpush.msra.mxu0 %v3418
    %3481 = vmatpush.msra.mxu0 %v3414
    %3482 = vmatpush.msra.mxu0 %v3410
    %3483 = vmatpush.msra.mxu0 %v3406
    %3484 = vmatpush.msra.mxu0 %v3402
    %3485 = vmatpush.msra.mxu0 %v3398
    %3486 = vmatpush.msra.mxu0 %v3394
    %3487 = vmatpush.msra.mxu0 %v3390
    %3488 = vmatpush.msra.mxu0 %v3386
    %3489 = vmatpush.msra.mxu0 %v3382
    %3490 = vmatpush.msra.mxu0 %v3378
    %3491 = vmatpush.msra.mxu0 %v3374
    %3492 = vmatmul.f32.gmra.mxu0 %v3371
    %v3493 = vpop.f32.mrf.mxu0
    %v3494 = vadd.f32 0.0, %v3493
    %3495 = vdwg.mxu0
    %3496 = vmatpush.msra.mxu0 %v3435
    %3497 = vmatpush.msra.mxu0 %v3431
    %3498 = vmatpush.msra.mxu0 %v3427
    %3499 = vmatpush.msra.mxu0 %v3423
    %3500 = vmatpush.msra.mxu0 %v3419
    %3501 = vmatpush.msra.mxu0 %v3415
    %3502 = vmatpush.msra.mxu0 %v3411
    %3503 = vmatpush.msra.mxu0 %v3407
    %3504 = vmatpush.msra.mxu0 %v3403
    %3505 = vmatpush.msra.mxu0 %v3399
    %3506 = vmatpush.msra.mxu0 %v3395
    %3507 = vmatpush.msra.mxu0 %v3391
    %3508 = vmatpush.msra.mxu0 %v3387
    %3509 = vmatpush.msra.mxu0 %v3383
    %3510 = vmatpush.msra.mxu0 %v3379
    %3511 = vmatpush.msra.mxu0 %v3375
    %3512 = vmatmul.f32.gmra.mxu0 %v3371
    %v3513 = vpop.f32.mrf.mxu0
    %v3514 = vadd.f32 0.0, %v3513
    %3515 = vdwg.mxu0
    %v3517 = vperm.slane %v3367, 0
    %v3519 = vadd.f32 %v3517, 0.0
    %3520 = vmatpush.msra.mxu0 %v3432
    %3521 = vmatpush.msra.mxu0 %v3428
    %3522 = vmatpush.msra.mxu0 %v3424
    %3523 = vmatpush.msra.mxu0 %v3420
    %3524 = vmatpush.msra.mxu0 %v3416
    %3525 = vmatpush.msra.mxu0 %v3412
    %3526 = vmatpush.msra.mxu0 %v3408
    %3527 = vmatpush.msra.mxu0 %v3404
    %3528 = vmatpush.msra.mxu0 %v3400
    %3529 = vmatpush.msra.mxu0 %v3396
    %3530 = vmatpush.msra.mxu0 %v3392
    %3531 = vmatpush.msra.mxu0 %v3388
    %3532 = vmatpush.msra.mxu0 %v3384
    %3533 = vmatpush.msra.mxu0 %v3380
    %3534 = vmatpush.msra.mxu0 %v3376
    %3535 = vmatpush.msra.mxu0 %v3372
    %3536 = vmatmul.f32.gmra.mxu0 %v3519
    %v3537 = vpop.f32.mrf.mxu0
    %v3538 = vadd.f32 0.0, %v3537
    %3539 = vdwg.mxu0
    %3540 = vmatpush.msra.mxu0 %v3433
    %3541 = vmatpush.msra.mxu0 %v3429
    %3542 = vmatpush.msra.mxu0 %v3425
    %3543 = vmatpush.msra.mxu0 %v3421
    %3544 = vmatpush.msra.mxu0 %v3417
    %3545 = vmatpush.msra.mxu0 %v3413
    %3546 = vmatpush.msra.mxu0 %v3409
    %3547 = vmatpush.msra.mxu0 %v3405
    %3548 = vmatpush.msra.mxu0 %v3401
    %3549 = vmatpush.msra.mxu0 %v3397
    %3550 = vmatpush.msra.mxu0 %v3393
    %3551 = vmatpush.msra.mxu0 %v3389
    %3552 = vmatpush.msra.mxu0 %v3385
    %3553 = vmatpush.msra.mxu0 %v3381
    %3554 = vmatpush.msra.mxu0 %v3377
    %3555 = vmatpush.msra.mxu0 %v3373
    %3556 = vmatmul.f32.gmra.mxu0 %v3519
    %v3557 = vpop.f32.mrf.mxu0
    %v3558 = vadd.f32 0.0, %v3557
    %3559 = vdwg.mxu0
    %3560 = vmatpush.msra.mxu0 %v3434
    %3561 = vmatpush.msra.mxu0 %v3430
    %3562 = vmatpush.msra.mxu0 %v3426
    %3563 = vmatpush.msra.mxu0 %v3422
    %3564 = vmatpush.msra.mxu0 %v3418
    %3565 = vmatpush.msra.mxu0 %v3414
    %3566 = vmatpush.msra.mxu0 %v3410
    %3567 = vmatpush.msra.mxu0 %v3406
    %3568 = vmatpush.msra.mxu0 %v3402
    %3569 = vmatpush.msra.mxu0 %v3398
    %3570 = vmatpush.msra.mxu0 %v3394
    %3571 = vmatpush.msra.mxu0 %v3390
    %3572 = vmatpush.msra.mxu0 %v3386
    %3573 = vmatpush.msra.mxu0 %v3382
    %3574 = vmatpush.msra.mxu0 %v3378
    %3575 = vmatpush.msra.mxu0 %v3374
    %3576 = vmatmul.f32.gmra.mxu0 %v3519
    %v3577 = vpop.f32.mrf.mxu0
    %v3578 = vadd.f32 0.0, %v3577
    %3579 = vdwg.mxu0
    %3580 = vmatpush.msra.mxu0 %v3435
    %3581 = vmatpush.msra.mxu0 %v3431
    %3582 = vmatpush.msra.mxu0 %v3427
    %3583 = vmatpush.msra.mxu0 %v3423
    %3584 = vmatpush.msra.mxu0 %v3419
    %3585 = vmatpush.msra.mxu0 %v3415
    %3586 = vmatpush.msra.mxu0 %v3411
    %3587 = vmatpush.msra.mxu0 %v3407
    %3588 = vmatpush.msra.mxu0 %v3403
    %3589 = vmatpush.msra.mxu0 %v3399
    %3590 = vmatpush.msra.mxu0 %v3395
    %3591 = vmatpush.msra.mxu0 %v3391
    %3592 = vmatpush.msra.mxu0 %v3387
    %3593 = vmatpush.msra.mxu0 %v3383
    %3594 = vmatpush.msra.mxu0 %v3379
    %3595 = vmatpush.msra.mxu0 %v3375
    %3596 = vmatmul.f32.gmra.mxu0 %v3519
    %v3597 = vpop.f32.mrf.mxu0
    %v3598 = vadd.f32 0.0, %v3597
    %3599 = vdwg.mxu0
    %v3600 = vmul.f32 %v2801, %v3454
    %v3601 = vmul.f32 %v2901, %v3474
    %v3602 = vmul.f32 %v3001, %v3494
    %v3603 = vmul.f32 %v3101, %v3514
    %v3604 = vadd.f32 %v3600, %v3538
    %v3605 = vadd.f32 %v3601, %v3558
    %v3606 = vadd.f32 %v3602, %v3578
    %v3607 = vadd.f32 %v3603, %v3598
    %vm3608 = vcmp.gt.f32.partialorder %v3604, 0.0
    %vm3609 = vcmp.gt.f32.partialorder %v3605, 0.0
    %vm3610 = vcmp.gt.f32.partialorder %v3606, 0.0
    %vm3611 = vcmp.gt.f32.partialorder %v3607, 0.0
    %v3612 = vmul.f32 %v3604, 0.01
    %v3613 = vmul.f32 %v3605, 0.01
    %v3614 = vmul.f32 %v3606, 0.01
    %v3615 = vmul.f32 %v3607, 0.01
    %v3616 = vsel %vm3608, %v3604, %v3612
    %v3617 = vsel %vm3609, %v3605, %v3613
    %v3618 = vsel %vm3610, %v3606, %v3614
    %v3619 = vsel %vm3611, %v3607, %v3615
    %v3620 = vld [vmem:[#allocation25] sm:$0xff]
    %v3621 = vld [vmem:[#allocation25 + $0x8] sm:$0xff]
    %v3622 = vld [vmem:[#allocation25 + $0x10] sm:$0xff]
    %v3623 = vld [vmem:[#allocation25 + $0x18] sm:$0xff]
    %v3624 = vld [vmem:[#allocation25 + $0x20] sm:$0xff]
    %v3625 = vld [vmem:[#allocation25 + $0x28] sm:$0xff]
    %v3626 = vld [vmem:[#allocation25 + $0x30] sm:$0xff]
    %v3627 = vld [vmem:[#allocation25 + $0x38] sm:$0xff]
    %v3628 = vld [vmem:[#allocation25 + $0x40] sm:$0xff]
    %v3629 = vld [vmem:[#allocation25 + $0x48] sm:$0xff]
    %v3630 = vld [vmem:[#allocation25 + $0x50] sm:$0xff]
    %v3631 = vld [vmem:[#allocation25 + $0x58] sm:$0xff]
    %v3632 = vld [vmem:[#allocation25 + $0x60] sm:$0xff]
    %v3633 = vld [vmem:[#allocation25 + $0x68] sm:$0xff]
    %v3634 = vld [vmem:[#allocation25 + $0x70] sm:$0xff]
    %v3635 = vld [vmem:[#allocation25 + $0x78] sm:$0xff]
    %v3636 = vld [vmem:[#allocation25 + $0x80] sm:$0xff]
    %v3637 = vld [vmem:[#allocation25 + $0x88] sm:$0xff]
    %v3638 = vld [vmem:[#allocation25 + $0x90] sm:$0xff]
    %v3639 = vld [vmem:[#allocation25 + $0x98] sm:$0xff]
    %v3640 = vld [vmem:[#allocation25 + $0xa0] sm:$0xff]
    %v3641 = vld [vmem:[#allocation25 + $0xa8] sm:$0xff]
    %v3642 = vld [vmem:[#allocation25 + $0xb0] sm:$0xff]
    %v3643 = vld [vmem:[#allocation25 + $0xb8] sm:$0xff]
    %v3644 = vld [vmem:[#allocation25 + $0xc0] sm:$0xff]
    %v3645 = vld [vmem:[#allocation25 + $0xc8] sm:$0xff]
    %v3646 = vld [vmem:[#allocation25 + $0xd0] sm:$0xff]
    %v3647 = vld [vmem:[#allocation25 + $0xd8] sm:$0xff]
    %v3648 = vld [vmem:[#allocation25 + $0xe0] sm:$0xff]
    %v3649 = vld [vmem:[#allocation25 + $0xe8] sm:$0xff]
    %v3650 = vld [vmem:[#allocation25 + $0xf0] sm:$0xff]
    %v3651 = vld [vmem:[#allocation25 + $0xf8] sm:$0xff]
    %v3652 = vld [vmem:[#allocation25 + $0x100] sm:$0xff]
    %v3653 = vld [vmem:[#allocation25 + $0x108] sm:$0xff]
    %v3654 = vld [vmem:[#allocation25 + $0x110] sm:$0xff]
    %v3655 = vld [vmem:[#allocation25 + $0x118] sm:$0xff]
    %v3656 = vld [vmem:[#allocation25 + $0x120] sm:$0xff]
    %v3657 = vld [vmem:[#allocation25 + $0x128] sm:$0xff]
    %v3658 = vld [vmem:[#allocation25 + $0x130] sm:$0xff]
    %v3659 = vld [vmem:[#allocation25 + $0x138] sm:$0xff]
    %v3660 = vld [vmem:[#allocation25 + $0x140] sm:$0xff]
    %v3661 = vld [vmem:[#allocation25 + $0x148] sm:$0xff]
    %v3662 = vld [vmem:[#allocation25 + $0x150] sm:$0xff]
    %v3663 = vld [vmem:[#allocation25 + $0x158] sm:$0xff]
    %v3664 = vld [vmem:[#allocation25 + $0x160] sm:$0xff]
    %v3665 = vld [vmem:[#allocation25 + $0x168] sm:$0xff]
    %v3666 = vld [vmem:[#allocation25 + $0x170] sm:$0xff]
    %v3667 = vld [vmem:[#allocation25 + $0x178] sm:$0xff]
    %v3668 = vld [vmem:[#allocation25 + $0x180] sm:$0xff]
    %v3669 = vld [vmem:[#allocation25 + $0x188] sm:$0xff]
    %v3670 = vld [vmem:[#allocation25 + $0x190] sm:$0xff]
    %v3671 = vld [vmem:[#allocation25 + $0x198] sm:$0xff]
    %v3672 = vld [vmem:[#allocation25 + $0x1a0] sm:$0xff]
    %v3673 = vld [vmem:[#allocation25 + $0x1a8] sm:$0xff]
    %v3674 = vld [vmem:[#allocation25 + $0x1b0] sm:$0xff]
    %v3675 = vld [vmem:[#allocation25 + $0x1b8] sm:$0xff]
    %v3676 = vld [vmem:[#allocation25 + $0x1c0] sm:$0xff]
    %v3677 = vld [vmem:[#allocation25 + $0x1c8] sm:$0xff]
    %v3678 = vld [vmem:[#allocation25 + $0x1d0] sm:$0xff]
    %v3679 = vld [vmem:[#allocation25 + $0x1d8] sm:$0xff]
    %v3680 = vld [vmem:[#allocation25 + $0x1e0] sm:$0xff]
    %v3681 = vld [vmem:[#allocation25 + $0x1e8] sm:$0xff]
    %v3682 = vld [vmem:[#allocation25 + $0x1f0] sm:$0xff]
    %v3683 = vld [vmem:[#allocation25 + $0x1f8] sm:$0xff]
    %v3684 = vld [vmem:[#allocation25 + $0x200] sm:$0xff]
    %v3685 = vld [vmem:[#allocation25 + $0x208] sm:$0xff]
    %v3686 = vld [vmem:[#allocation25 + $0x210] sm:$0xff]
    %v3687 = vld [vmem:[#allocation25 + $0x218] sm:$0xff]
    %v3688 = vld [vmem:[#allocation25 + $0x220] sm:$0xff]
    %v3689 = vld [vmem:[#allocation25 + $0x228] sm:$0xff]
    %v3690 = vld [vmem:[#allocation25 + $0x230] sm:$0xff]
    %v3691 = vld [vmem:[#allocation25 + $0x238] sm:$0xff]
    %v3692 = vld [vmem:[#allocation25 + $0x240] sm:$0xff]
    %v3693 = vld [vmem:[#allocation25 + $0x248] sm:$0xff]
    %v3694 = vld [vmem:[#allocation25 + $0x250] sm:$0xff]
    %v3695 = vld [vmem:[#allocation25 + $0x258] sm:$0xff]
    %v3696 = vld [vmem:[#allocation25 + $0x260] sm:$0xff]
    %v3697 = vld [vmem:[#allocation25 + $0x268] sm:$0xff]
    %v3698 = vld [vmem:[#allocation25 + $0x270] sm:$0xff]
    %v3699 = vld [vmem:[#allocation25 + $0x278] sm:$0xff]
    %v3700 = vld [vmem:[#allocation25 + $0x280] sm:$0xff]
    %v3701 = vld [vmem:[#allocation25 + $0x288] sm:$0xff]
    %v3702 = vld [vmem:[#allocation25 + $0x290] sm:$0xff]
    %v3703 = vld [vmem:[#allocation25 + $0x298] sm:$0xff]
    %v3704 = vld [vmem:[#allocation25 + $0x2a0] sm:$0xff]
    %v3705 = vld [vmem:[#allocation25 + $0x2a8] sm:$0xff]
    %v3706 = vld [vmem:[#allocation25 + $0x2b0] sm:$0xff]
    %v3707 = vld [vmem:[#allocation25 + $0x2b8] sm:$0xff]
    %v3708 = vld [vmem:[#allocation25 + $0x2c0] sm:$0xff]
    %v3709 = vld [vmem:[#allocation25 + $0x2c8] sm:$0xff]
    %v3710 = vld [vmem:[#allocation25 + $0x2d0] sm:$0xff]
    %v3711 = vld [vmem:[#allocation25 + $0x2d8] sm:$0xff]
    %v3712 = vld [vmem:[#allocation25 + $0x2e0] sm:$0xff]
    %v3713 = vld [vmem:[#allocation25 + $0x2e8] sm:$0xff]
    %v3714 = vld [vmem:[#allocation25 + $0x2f0] sm:$0xff]
    %v3715 = vld [vmem:[#allocation25 + $0x2f8] sm:$0xff]
    %v3716 = vld [vmem:[#allocation25 + $0x300] sm:$0xff]
    %v3717 = vld [vmem:[#allocation25 + $0x308] sm:$0xff]
    %v3718 = vld [vmem:[#allocation25 + $0x310] sm:$0xff]
    %v3719 = vld [vmem:[#allocation25 + $0x318] sm:$0xff]
    %v3720 = vld [vmem:[#allocation25 + $0x320] sm:$0xff]
    %v3721 = vld [vmem:[#allocation25 + $0x328] sm:$0xff]
    %v3722 = vld [vmem:[#allocation25 + $0x330] sm:$0xff]
    %v3723 = vld [vmem:[#allocation25 + $0x338] sm:$0xff]
    %v3724 = vld [vmem:[#allocation25 + $0x340] sm:$0xff]
    %v3725 = vld [vmem:[#allocation25 + $0x348] sm:$0xff]
    %v3726 = vld [vmem:[#allocation25 + $0x350] sm:$0xff]
    %v3727 = vld [vmem:[#allocation25 + $0x358] sm:$0xff]
    %v3728 = vld [vmem:[#allocation25 + $0x360] sm:$0xff]
    %v3729 = vld [vmem:[#allocation25 + $0x368] sm:$0xff]
    %v3730 = vld [vmem:[#allocation25 + $0x370] sm:$0xff]
    %v3731 = vld [vmem:[#allocation25 + $0x378] sm:$0xff]
    %v3732 = vld [vmem:[#allocation25 + $0x380] sm:$0xff]
    %v3733 = vld [vmem:[#allocation25 + $0x388] sm:$0xff]
    %v3734 = vld [vmem:[#allocation25 + $0x390] sm:$0xff]
    %v3735 = vld [vmem:[#allocation25 + $0x398] sm:$0xff]
    %v3736 = vld [vmem:[#allocation25 + $0x3a0] sm:$0xff]
    %v3737 = vld [vmem:[#allocation25 + $0x3a8] sm:$0xff]
    %v3738 = vld [vmem:[#allocation25 + $0x3b0] sm:$0xff]
    %v3739 = vld [vmem:[#allocation25 + $0x3b8] sm:$0xff]
    %v3740 = vld [vmem:[#allocation25 + $0x3c0] sm:$0xff]
    %v3741 = vld [vmem:[#allocation25 + $0x3c8] sm:$0xff]
    %v3742 = vld [vmem:[#allocation25 + $0x3d0] sm:$0xff]
    %v3743 = vld [vmem:[#allocation25 + $0x3d8] sm:$0xff]
    %v3744 = vld [vmem:[#allocation25 + $0x3e0] sm:$0xff]
    %v3745 = vld [vmem:[#allocation25 + $0x3e8] sm:$0xff]
    %v3746 = vld [vmem:[#allocation25 + $0x3f0] sm:$0xff]
    %v3747 = vld [vmem:[#allocation25 + $0x3f8] sm:$0xff]
    %v3748 = vld [vmem:[#allocation26] sm:$0x3]
    %v3750 = vperm.slane %v3748, 0
    %v3751 = vperm.slane %v3748, 1
    %3754 = vmatpush.msra.mxu0 %v3650
    %3755 = vmatpush.msra.mxu0 %v3648
    %3756 = vmatpush.msra.mxu0 %v3646
    %3757 = vmatpush.msra.mxu0 %v3644
    %3758 = vmatpush.msra.mxu0 %v3642
    %3759 = vmatpush.msra.mxu0 %v3640
    %3760 = vmatpush.msra.mxu0 %v3638
    %3761 = vmatpush.msra.mxu0 %v3636
    %3762 = vmatpush.msra.mxu0 %v3634
    %3763 = vmatpush.msra.mxu0 %v3632
    %3764 = vmatpush.msra.mxu0 %v3630
    %3765 = vmatpush.msra.mxu0 %v3628
    %3766 = vmatpush.msra.mxu0 %v3626
    %3767 = vmatpush.msra.mxu0 %v3624
    %3768 = vmatpush.msra.mxu0 %v3622
    %3769 = vmatpush.msra.mxu0 %v3620
    %3770 = vmatmul.f32.gmra.mxu0 %v3616
    %v3771 = vpop.f32.mrf.mxu0
    %v3772 = vadd.f32 %v3750, %v3771
    %3773 = vdwg.mxu0
    %3774 = vmatpush.msra.mxu0 %v3682
    %3775 = vmatpush.msra.mxu0 %v3680
    %3776 = vmatpush.msra.mxu0 %v3678
    %3777 = vmatpush.msra.mxu0 %v3676
    %3778 = vmatpush.msra.mxu0 %v3674
    %3779 = vmatpush.msra.mxu0 %v3672
    %3780 = vmatpush.msra.mxu0 %v3670
    %3781 = vmatpush.msra.mxu0 %v3668
    %3782 = vmatpush.msra.mxu0 %v3666
    %3783 = vmatpush.msra.mxu0 %v3664
    %3784 = vmatpush.msra.mxu0 %v3662
    %3785 = vmatpush.msra.mxu0 %v3660
    %3786 = vmatpush.msra.mxu0 %v3658
    %3787 = vmatpush.msra.mxu0 %v3656
    %3788 = vmatpush.msra.mxu0 %v3654
    %3789 = vmatpush.msra.mxu0 %v3652
    %3790 = vmatmul.f32.gmra.mxu0 %v3617
    %v3791 = vpop.f32.mrf.mxu0
    %v3792 = vadd.f32 %v3772, %v3791
    %3793 = vdwg.mxu0
    %3794 = vmatpush.msra.mxu0 %v3714
    %3795 = vmatpush.msra.mxu0 %v3712
    %3796 = vmatpush.msra.mxu0 %v3710
    %3797 = vmatpush.msra.mxu0 %v3708
    %3798 = vmatpush.msra.mxu0 %v3706
    %3799 = vmatpush.msra.mxu0 %v3704
    %3800 = vmatpush.msra.mxu0 %v3702
    %3801 = vmatpush.msra.mxu0 %v3700
    %3802 = vmatpush.msra.mxu0 %v3698
    %3803 = vmatpush.msra.mxu0 %v3696
    %3804 = vmatpush.msra.mxu0 %v3694
    %3805 = vmatpush.msra.mxu0 %v3692
    %3806 = vmatpush.msra.mxu0 %v3690
    %3807 = vmatpush.msra.mxu0 %v3688
    %3808 = vmatpush.msra.mxu0 %v3686
    %3809 = vmatpush.msra.mxu0 %v3684
    %3810 = vmatmul.f32.gmra.mxu0 %v3618
    %v3811 = vpop.f32.mrf.mxu0
    %v3812 = vadd.f32 %v3792, %v3811
    %3813 = vdwg.mxu0
    %3814 = vmatpush.msra.mxu0 %v3746
    %3815 = vmatpush.msra.mxu0 %v3744
    %3816 = vmatpush.msra.mxu0 %v3742
    %3817 = vmatpush.msra.mxu0 %v3740
    %3818 = vmatpush.msra.mxu0 %v3738
    %3819 = vmatpush.msra.mxu0 %v3736
    %3820 = vmatpush.msra.mxu0 %v3734
    %3821 = vmatpush.msra.mxu0 %v3732
    %3822 = vmatpush.msra.mxu0 %v3730
    %3823 = vmatpush.msra.mxu0 %v3728
    %3824 = vmatpush.msra.mxu0 %v3726
    %3825 = vmatpush.msra.mxu0 %v3724
    %3826 = vmatpush.msra.mxu0 %v3722
    %3827 = vmatpush.msra.mxu0 %v3720
    %3828 = vmatpush.msra.mxu0 %v3718
    %3829 = vmatpush.msra.mxu0 %v3716
    %3830 = vmatmul.f32.gmra.mxu0 %v3619
    %v3831 = vpop.f32.mrf.mxu0
    %v3832 = vadd.f32 %v3812, %v3831
    %3833 = vdwg.mxu0
    %3834 = vmatpush.msra.mxu0 %v3651
    %3835 = vmatpush.msra.mxu0 %v3649
    %3836 = vmatpush.msra.mxu0 %v3647
    %3837 = vmatpush.msra.mxu0 %v3645
    %3838 = vmatpush.msra.mxu0 %v3643
    %3839 = vmatpush.msra.mxu0 %v3641
    %3840 = vmatpush.msra.mxu0 %v3639
    %3841 = vmatpush.msra.mxu0 %v3637
    %3842 = vmatpush.msra.mxu0 %v3635
    %3843 = vmatpush.msra.mxu0 %v3633
    %3844 = vmatpush.msra.mxu0 %v3631
    %3845 = vmatpush.msra.mxu0 %v3629
    %3846 = vmatpush.msra.mxu0 %v3627
    %3847 = vmatpush.msra.mxu0 %v3625
    %3848 = vmatpush.msra.mxu0 %v3623
    %3849 = vmatpush.msra.mxu0 %v3621
    %3850 = vmatmul.f32.gmra.mxu0 %v3616
    %v3851 = vpop.f32.mrf.mxu0
    %v3852 = vadd.f32 %v3751, %v3851
    %3853 = vdwg.mxu0
    %3854 = vmatpush.msra.mxu0 %v3683
    %3855 = vmatpush.msra.mxu0 %v3681
    %3856 = vmatpush.msra.mxu0 %v3679
    %3857 = vmatpush.msra.mxu0 %v3677
    %3858 = vmatpush.msra.mxu0 %v3675
    %3859 = vmatpush.msra.mxu0 %v3673
    %3860 = vmatpush.msra.mxu0 %v3671
    %3861 = vmatpush.msra.mxu0 %v3669
    %3862 = vmatpush.msra.mxu0 %v3667
    %3863 = vmatpush.msra.mxu0 %v3665
    %3864 = vmatpush.msra.mxu0 %v3663
    %3865 = vmatpush.msra.mxu0 %v3661
    %3866 = vmatpush.msra.mxu0 %v3659
    %3867 = vmatpush.msra.mxu0 %v3657
    %3868 = vmatpush.msra.mxu0 %v3655
    %3869 = vmatpush.msra.mxu0 %v3653
    %3870 = vmatmul.f32.gmra.mxu0 %v3617
    %v3871 = vpop.f32.mrf.mxu0
    %v3872 = vadd.f32 %v3852, %v3871
    %3873 = vdwg.mxu0
    %3874 = vmatpush.msra.mxu0 %v3715
    %3875 = vmatpush.msra.mxu0 %v3713
    %3876 = vmatpush.msra.mxu0 %v3711
    %3877 = vmatpush.msra.mxu0 %v3709
    %3878 = vmatpush.msra.mxu0 %v3707
    %3879 = vmatpush.msra.mxu0 %v3705
    %3880 = vmatpush.msra.mxu0 %v3703
    %3881 = vmatpush.msra.mxu0 %v3701
    %3882 = vmatpush.msra.mxu0 %v3699
    %3883 = vmatpush.msra.mxu0 %v3697
    %3884 = vmatpush.msra.mxu0 %v3695
    %3885 = vmatpush.msra.mxu0 %v3693
    %3886 = vmatpush.msra.mxu0 %v3691
    %3887 = vmatpush.msra.mxu0 %v3689
    %3888 = vmatpush.msra.mxu0 %v3687
    %3889 = vmatpush.msra.mxu0 %v3685
    %3890 = vmatmul.f32.gmra.mxu0 %v3618
    %v3891 = vpop.f32.mrf.mxu0
    %v3892 = vadd.f32 %v3872, %v3891
    %3893 = vdwg.mxu0
    %3894 = vmatpush.msra.mxu0 %v3747
    %3895 = vmatpush.msra.mxu0 %v3745
    %3896 = vmatpush.msra.mxu0 %v3743
    %3897 = vmatpush.msra.mxu0 %v3741
    %3898 = vmatpush.msra.mxu0 %v3739
    %3899 = vmatpush.msra.mxu0 %v3737
    %3900 = vmatpush.msra.mxu0 %v3735
    %3901 = vmatpush.msra.mxu0 %v3733
    %3902 = vmatpush.msra.mxu0 %v3731
    %3903 = vmatpush.msra.mxu0 %v3729
    %3904 = vmatpush.msra.mxu0 %v3727
    %3905 = vmatpush.msra.mxu0 %v3725
    %3906 = vmatpush.msra.mxu0 %v3723
    %3907 = vmatpush.msra.mxu0 %v3721
    %3908 = vmatpush.msra.mxu0 %v3719
    %3909 = vmatpush.msra.mxu0 %v3717
    %3910 = vmatmul.f32.gmra.mxu0 %v3619
    %v3911 = vpop.f32.mrf.mxu0
    %v3912 = vadd.f32 %v3892, %v3911
    %3913 = vdwg.mxu0
    %v3914 = vld [vmem:[#allocation32] sm:$0xff]
    %v3915 = vld [vmem:[#allocation32 + $0x8] sm:$0xff]
    %v3916 = vld [vmem:[#allocation32 + $0x10] sm:$0xff]
    %v3917 = vld [vmem:[#allocation32 + $0x18] sm:$0xff]
    %v3918 = vld [vmem:[#allocation32 + $0x20] sm:$0xff]
    %v3919 = vld [vmem:[#allocation32 + $0x28] sm:$0xff]
    %v3920 = vld [vmem:[#allocation32 + $0x30] sm:$0xff]
    %v3921 = vld [vmem:[#allocation32 + $0x38] sm:$0xff]
    %v3922 = vld [vmem:[#allocation32 + $0x40] sm:$0xff]
    %v3923 = vld [vmem:[#allocation32 + $0x48] sm:$0xff]
    %v3924 = vld [vmem:[#allocation32 + $0x50] sm:$0xff]
    %v3925 = vld [vmem:[#allocation32 + $0x58] sm:$0xff]
    %v3926 = vld [vmem:[#allocation32 + $0x60] sm:$0xff]
    %v3927 = vld [vmem:[#allocation32 + $0x68] sm:$0xff]
    %v3928 = vld [vmem:[#allocation32 + $0x70] sm:$0xff]
    %v3929 = vld [vmem:[#allocation32 + $0x78] sm:$0xff]
    %v3930 = vld [vmem:[#allocation32 + $0x80] sm:$0xff]
    %v3931 = vld [vmem:[#allocation32 + $0x88] sm:$0xff]
    %v3932 = vld [vmem:[#allocation32 + $0x90] sm:$0xff]
    %v3933 = vld [vmem:[#allocation32 + $0x98] sm:$0xff]
    %v3934 = vld [vmem:[#allocation32 + $0xa0] sm:$0xff]
    %v3935 = vld [vmem:[#allocation32 + $0xa8] sm:$0xff]
    %v3936 = vld [vmem:[#allocation32 + $0xb0] sm:$0xff]
    %v3937 = vld [vmem:[#allocation32 + $0xb8] sm:$0xff]
    %v3938 = vld [vmem:[#allocation32 + $0xc0] sm:$0xff]
    %v3939 = vld [vmem:[#allocation32 + $0xc8] sm:$0xff]
    %v3940 = vld [vmem:[#allocation32 + $0xd0] sm:$0xff]
    %v3941 = vld [vmem:[#allocation32 + $0xd8] sm:$0xff]
    %v3942 = vld [vmem:[#allocation32 + $0xe0] sm:$0xff]
    %v3943 = vld [vmem:[#allocation32 + $0xe8] sm:$0xff]
    %v3944 = vld [vmem:[#allocation32 + $0xf0] sm:$0xff]
    %v3945 = vld [vmem:[#allocation32 + $0xf8] sm:$0xff]
    %3946 = vmatpush.msra.mxu0 %v3929
    %3947 = vmatpush.msra.mxu0 %v3928
    %3948 = vmatpush.msra.mxu0 %v3927
    %3949 = vmatpush.msra.mxu0 %v3926
    %3950 = vmatpush.msra.mxu0 %v3925
    %3951 = vmatpush.msra.mxu0 %v3924
    %3952 = vmatpush.msra.mxu0 %v3923
    %3953 = vmatpush.msra.mxu0 %v3922
    %3954 = vmatpush.msra.mxu0 %v3921
    %3955 = vmatpush.msra.mxu0 %v3920
    %3956 = vmatpush.msra.mxu0 %v3919
    %3957 = vmatpush.msra.mxu0 %v3918
    %3958 = vmatpush.msra.mxu0 %v3917
    %3959 = vmatpush.msra.mxu0 %v3916
    %3960 = vmatpush.msra.mxu0 %v3915
    %3961 = vmatpush.msra.mxu0 %v3914
    %3962 = vmatmul.f32.gmra.mxu0 %v3832
    %v3963 = vpop.f32.mrf.mxu0
    %v3964 = vadd.f32 0.0, %v3963
    %3965 = vdwg.mxu0
    %3966 = vmatpush.msra.mxu0 %v3945
    %3967 = vmatpush.msra.mxu0 %v3944
    %3968 = vmatpush.msra.mxu0 %v3943
    %3969 = vmatpush.msra.mxu0 %v3942
    %3970 = vmatpush.msra.mxu0 %v3941
    %3971 = vmatpush.msra.mxu0 %v3940
    %3972 = vmatpush.msra.mxu0 %v3939
    %3973 = vmatpush.msra.mxu0 %v3938
    %3974 = vmatpush.msra.mxu0 %v3937
    %3975 = vmatpush.msra.mxu0 %v3936
    %3976 = vmatpush.msra.mxu0 %v3935
    %3977 = vmatpush.msra.mxu0 %v3934
    %3978 = vmatpush.msra.mxu0 %v3933
    %3979 = vmatpush.msra.mxu0 %v3932
    %3980 = vmatpush.msra.mxu0 %v3931
    %3981 = vmatpush.msra.mxu0 %v3930
    %3982 = vmatmul.f32.gmra.mxu0 %v3912
    %v3983 = vpop.f32.mrf.mxu0
    %v3984 = vadd.f32 %v3964, %v3983
    %3985 = vdwg.mxu0
    %v3986 = vsel %vm1917, %v3984, 0.0
    %v3987 = vrot.slane %v3986, 4
    %v3988 = vadd.f32 %v3986, %v3987
    %v3989 = vrot.slane %v3988, 2
    %v3990 = vadd.f32 %v3988, %v3989
    %v3991 = vrot.slane %v3990, 1
    %v3992 = vadd.f32 %v3990, %v3991
    %v3993 = vmul.f32 %v3832, %v3832
    %v3994 = vmul.f32 %v3912, %v3912
    %3995 = vmatpush.msra.mxu0 %v3929
    %3996 = vmatpush.msra.mxu0 %v3928
    %3997 = vmatpush.msra.mxu0 %v3927
    %3998 = vmatpush.msra.mxu0 %v3926
    %3999 = vmatpush.msra.mxu0 %v3925
    %4000 = vmatpush.msra.mxu0 %v3924
    %4001 = vmatpush.msra.mxu0 %v3923
    %4002 = vmatpush.msra.mxu0 %v3922
    %4003 = vmatpush.msra.mxu0 %v3921
    %4004 = vmatpush.msra.mxu0 %v3920
    %4005 = vmatpush.msra.mxu0 %v3919
    %4006 = vmatpush.msra.mxu0 %v3918
    %4007 = vmatpush.msra.mxu0 %v3917
    %4008 = vmatpush.msra.mxu0 %v3916
    %4009 = vmatpush.msra.mxu0 %v3915
    %4010 = vmatpush.msra.mxu0 %v3914
    %4011 = vmatmul.f32.gmra.mxu0 %v3993
    %v4012 = vpop.f32.mrf.mxu0
    %v4013 = vadd.f32 0.0, %v4012
    %4014 = vdwg.mxu0
    %4015 = vmatpush.msra.mxu0 %v3945
    %4016 = vmatpush.msra.mxu0 %v3944
    %4017 = vmatpush.msra.mxu0 %v3943
    %4018 = vmatpush.msra.mxu0 %v3942
    %4019 = vmatpush.msra.mxu0 %v3941
    %4020 = vmatpush.msra.mxu0 %v3940
    %4021 = vmatpush.msra.mxu0 %v3939
    %4022 = vmatpush.msra.mxu0 %v3938
    %4023 = vmatpush.msra.mxu0 %v3937
    %4024 = vmatpush.msra.mxu0 %v3936
    %4025 = vmatpush.msra.mxu0 %v3935
    %4026 = vmatpush.msra.mxu0 %v3934
    %4027 = vmatpush.msra.mxu0 %v3933
    %4028 = vmatpush.msra.mxu0 %v3932
    %4029 = vmatpush.msra.mxu0 %v3931
    %4030 = vmatpush.msra.mxu0 %v3930
    %4031 = vmatmul.f32.gmra.mxu0 %v3994
    %v4032 = vpop.f32.mrf.mxu0
    %v4033 = vadd.f32 %v4013, %v4032
    %4034 = vdwg.mxu0
    %v4035 = vsel %vm1917, %v4033, 0.0
    %v4036 = vrot.slane %v4035, 4
    %v4037 = vadd.f32 %v4035, %v4036
    %v4038 = vrot.slane %v4037, 2
    %v4039 = vadd.f32 %v4037, %v4038
    %v4040 = vrot.slane %v4039, 1
    %v4041 = vadd.f32 %v4039, %v4040
    %v4042 = vld [vmem:[#allocation31] sm:$0x1]
    %v4043 = vmul.f32 %v4042, 0.5
    %v4044 = vmul.f32 %v3992, %v4043
    %v4045 = vmul.f32 %v4041, %v4043
    %v4046 = vmul.f32 %v4044, %v4044
    %v4047 = vsub.f32 %v4045, %v4046
    %v4048 = vmax.f32 %v4047, 0.0
    %v4049 = vld [vmem:[#allocation28] sm:$0x1]
    %v4050 = vadd.f32 %v4048, 1e-05
    %v4051 = vrsqrt.pop %v4050
    %v4052 = vmul.f32 %v4051, %v4050
    %v4053 = vmul.f32 %v4052, %v4051
    %v4054 = vmul.f32 0.5, %v4053
    %v4055 = vsub.f32 1.5, %v4054
    %v4056 = vmul.f32 %v4051, %v4055
    %vm4057 = vweird.f32 %v4050
    %vm4058 = vweird.f32 %v4051
    %vm4059 = vmor %vm4057, %vm4058
    %v4060 = vsel %vm4059, %v4051, %v4056
    %v4061 = vmul.f32 %v4049, %v4060
    %v4062 = vld [vmem:[#allocation29] sm:$0x1]
    %v4063 = vmul.f32 %v4044, %v4061
    %v4064 = vsub.f32 %v4062, %v4063
    %v4066 = vperm.slane %v4061, 0
    %v4068 = vadd.f32 %v4066, 0.0
    %v4069 = vld [vmem:[#allocation34] sm:$0xff]
    %v4070 = vld [vmem:[#allocation34 + $0x8] sm:$0xff]
    %v4071 = vld [vmem:[#allocation34 + $0x10] sm:$0xff]
    %v4072 = vld [vmem:[#allocation34 + $0x18] sm:$0xff]
    %v4073 = vld [vmem:[#allocation34 + $0x20] sm:$0xff]
    %v4074 = vld [vmem:[#allocation34 + $0x28] sm:$0xff]
    %v4075 = vld [vmem:[#allocation34 + $0x30] sm:$0xff]
    %v4076 = vld [vmem:[#allocation34 + $0x38] sm:$0xff]
    %v4077 = vld [vmem:[#allocation34 + $0x40] sm:$0xff]
    %v4078 = vld [vmem:[#allocation34 + $0x48] sm:$0xff]
    %v4079 = vld [vmem:[#allocation34 + $0x50] sm:$0xff]
    %v4080 = vld [vmem:[#allocation34 + $0x58] sm:$0xff]
    %v4081 = vld [vmem:[#allocation34 + $0x60] sm:$0xff]
    %v4082 = vld [vmem:[#allocation34 + $0x68] sm:$0xff]
    %v4083 = vld [vmem:[#allocation34 + $0x70] sm:$0xff]
    %v4084 = vld [vmem:[#allocation34 + $0x78] sm:$0xff]
    %v4085 = vld [vmem:[#allocation34 + $0x80] sm:$0xff]
    %v4086 = vld [vmem:[#allocation34 + $0x88] sm:$0xff]
    %v4087 = vld [vmem:[#allocation34 + $0x90] sm:$0xff]
    %v4088 = vld [vmem:[#allocation34 + $0x98] sm:$0xff]
    %v4089 = vld [vmem:[#allocation34 + $0xa0] sm:$0xff]
    %v4090 = vld [vmem:[#allocation34 + $0xa8] sm:$0xff]
    %v4091 = vld [vmem:[#allocation34 + $0xb0] sm:$0xff]
    %v4092 = vld [vmem:[#allocation34 + $0xb8] sm:$0xff]
    %v4093 = vld [vmem:[#allocation34 + $0xc0] sm:$0xff]
    %v4094 = vld [vmem:[#allocation34 + $0xc8] sm:$0xff]
    %v4095 = vld [vmem:[#allocation34 + $0xd0] sm:$0xff]
    %v4096 = vld [vmem:[#allocation34 + $0xd8] sm:$0xff]
    %v4097 = vld [vmem:[#allocation34 + $0xe0] sm:$0xff]
    %v4098 = vld [vmem:[#allocation34 + $0xe8] sm:$0xff]
    %v4099 = vld [vmem:[#allocation34 + $0xf0] sm:$0xff]
    %v4100 = vld [vmem:[#allocation34 + $0xf8] sm:$0xff]
    %4101 = vmatpush.msra.mxu0 %v4099
    %4102 = vmatpush.msra.mxu0 %v4097
    %4103 = vmatpush.msra.mxu0 %v4095
    %4104 = vmatpush.msra.mxu0 %v4093
    %4105 = vmatpush.msra.mxu0 %v4091
    %4106 = vmatpush.msra.mxu0 %v4089
    %4107 = vmatpush.msra.mxu0 %v4087
    %4108 = vmatpush.msra.mxu0 %v4085
    %4109 = vmatpush.msra.mxu0 %v4083
    %4110 = vmatpush.msra.mxu0 %v4081
    %4111 = vmatpush.msra.mxu0 %v4079
    %4112 = vmatpush.msra.mxu0 %v4077
    %4113 = vmatpush.msra.mxu0 %v4075
    %4114 = vmatpush.msra.mxu0 %v4073
    %4115 = vmatpush.msra.mxu0 %v4071
    %4116 = vmatpush.msra.mxu0 %v4069
    %4117 = vmatmul.f32.gmra.mxu0 %v4068
    %v4118 = vpop.f32.mrf.mxu0
    %v4119 = vadd.f32 0.0, %v4118
    %4120 = vdwg.mxu0
    %4121 = vmatpush.msra.mxu0 %v4100
    %4122 = vmatpush.msra.mxu0 %v4098
    %4123 = vmatpush.msra.mxu0 %v4096
    %4124 = vmatpush.msra.mxu0 %v4094
    %4125 = vmatpush.msra.mxu0 %v4092
    %4126 = vmatpush.msra.mxu0 %v4090
    %4127 = vmatpush.msra.mxu0 %v4088
    %4128 = vmatpush.msra.mxu0 %v4086
    %4129 = vmatpush.msra.mxu0 %v4084
    %4130 = vmatpush.msra.mxu0 %v4082
    %4131 = vmatpush.msra.mxu0 %v4080
    %4132 = vmatpush.msra.mxu0 %v4078
    %4133 = vmatpush.msra.mxu0 %v4076
    %4134 = vmatpush.msra.mxu0 %v4074
    %4135 = vmatpush.msra.mxu0 %v4072
    %4136 = vmatpush.msra.mxu0 %v4070
    %4137 = vmatmul.f32.gmra.mxu0 %v4068
    %v4138 = vpop.f32.mrf.mxu0
    %v4139 = vadd.f32 0.0, %v4138
    %4140 = vdwg.mxu0
    %v4142 = vperm.slane %v4064, 0
    %v4144 = vadd.f32 %v4142, 0.0
    %4145 = vmatpush.msra.mxu0 %v4099
    %4146 = vmatpush.msra.mxu0 %v4097
    %4147 = vmatpush.msra.mxu0 %v4095
    %4148 = vmatpush.msra.mxu0 %v4093
    %4149 = vmatpush.msra.mxu0 %v4091
    %4150 = vmatpush.msra.mxu0 %v4089
    %4151 = vmatpush.msra.mxu0 %v4087
    %4152 = vmatpush.msra.mxu0 %v4085
    %4153 = vmatpush.msra.mxu0 %v4083
    %4154 = vmatpush.msra.mxu0 %v4081
    %4155 = vmatpush.msra.mxu0 %v4079
    %4156 = vmatpush.msra.mxu0 %v4077
    %4157 = vmatpush.msra.mxu0 %v4075
    %4158 = vmatpush.msra.mxu0 %v4073
    %4159 = vmatpush.msra.mxu0 %v4071
    %4160 = vmatpush.msra.mxu0 %v4069
    %4161 = vmatmul.f32.gmra.mxu0 %v4144
    %v4162 = vpop.f32.mrf.mxu0
    %v4163 = vadd.f32 0.0, %v4162
    %4164 = vdwg.mxu0
    %4165 = vmatpush.msra.mxu0 %v4100
    %4166 = vmatpush.msra.mxu0 %v4098
    %4167 = vmatpush.msra.mxu0 %v4096
    %4168 = vmatpush.msra.mxu0 %v4094
    %4169 = vmatpush.msra.mxu0 %v4092
    %4170 = vmatpush.msra.mxu0 %v4090
    %4171 = vmatpush.msra.mxu0 %v4088
    %4172 = vmatpush.msra.mxu0 %v4086
    %4173 = vmatpush.msra.mxu0 %v4084
    %4174 = vmatpush.msra.mxu0 %v4082
    %4175 = vmatpush.msra.mxu0 %v4080
    %4176 = vmatpush.msra.mxu0 %v4078
    %4177 = vmatpush.msra.mxu0 %v4076
    %4178 = vmatpush.msra.mxu0 %v4074
    %4179 = vmatpush.msra.mxu0 %v4072
    %4180 = vmatpush.msra.mxu0 %v4070
    %4181 = vmatmul.f32.gmra.mxu0 %v4144
    %v4182 = vpop.f32.mrf.mxu0
    %v4183 = vadd.f32 0.0, %v4182
    %4184 = vdwg.mxu0
    %v4185 = vmul.f32 %v3832, %v4119
    %v4186 = vmul.f32 %v3912, %v4139
    %v4187 = vadd.f32 %v4185, %v4163
    %v4188 = vadd.f32 %v4186, %v4183
    %vm4189 = vcmp.gt.f32.partialorder %v4187, 0.0
    %vm4190 = vcmp.gt.f32.partialorder %v4188, 0.0
    %v4191 = vmul.f32 %v4187, 0.01
    %v4192 = vmul.f32 %v4188, 0.01
    %v4193 = vsel %vm4189, %v4187, %v4191
    %v4194 = vsel %vm4190, %v4188, %v4192
    %v4195 = vld [vmem:[#allocation35] sm:$0xff]
    %v4196 = vld [vmem:[#allocation35 + $0x8] sm:$0xff]
    %v4197 = vld [vmem:[#allocation35 + $0x10] sm:$0xff]
    %v4198 = vld [vmem:[#allocation35 + $0x18] sm:$0xff]
    %v4199 = vld [vmem:[#allocation35 + $0x20] sm:$0xff]
    %v4200 = vld [vmem:[#allocation35 + $0x28] sm:$0xff]
    %v4201 = vld [vmem:[#allocation35 + $0x30] sm:$0xff]
    %v4202 = vld [vmem:[#allocation35 + $0x38] sm:$0xff]
    %v4203 = vld [vmem:[#allocation35 + $0x40] sm:$0xff]
    %v4204 = vld [vmem:[#allocation35 + $0x48] sm:$0xff]
    %v4205 = vld [vmem:[#allocation35 + $0x50] sm:$0xff]
    %v4206 = vld [vmem:[#allocation35 + $0x58] sm:$0xff]
    %v4207 = vld [vmem:[#allocation35 + $0x60] sm:$0xff]
    %v4208 = vld [vmem:[#allocation35 + $0x68] sm:$0xff]
    %v4209 = vld [vmem:[#allocation35 + $0x70] sm:$0xff]
    %v4210 = vld [vmem:[#allocation35 + $0x78] sm:$0xff]
    %v4211 = vld [vmem:[#allocation35 + $0x80] sm:$0xff]
    %v4212 = vld [vmem:[#allocation35 + $0x88] sm:$0xff]
    %v4213 = vld [vmem:[#allocation35 + $0x90] sm:$0xff]
    %v4214 = vld [vmem:[#allocation35 + $0x98] sm:$0xff]
    %v4215 = vld [vmem:[#allocation35 + $0xa0] sm:$0xff]
    %v4216 = vld [vmem:[#allocation35 + $0xa8] sm:$0xff]
    %v4217 = vld [vmem:[#allocation35 + $0xb0] sm:$0xff]
    %v4218 = vld [vmem:[#allocation35 + $0xb8] sm:$0xff]
    %v4219 = vld [vmem:[#allocation35 + $0xc0] sm:$0xff]
    %v4220 = vld [vmem:[#allocation35 + $0xc8] sm:$0xff]
    %v4221 = vld [vmem:[#allocation35 + $0xd0] sm:$0xff]
    %v4222 = vld [vmem:[#allocation35 + $0xd8] sm:$0xff]
    %v4223 = vld [vmem:[#allocation35 + $0xe0] sm:$0xff]
    %v4224 = vld [vmem:[#allocation35 + $0xe8] sm:$0xff]
    %v4225 = vld [vmem:[#allocation35 + $0xf0] sm:$0xff]
    %v4226 = vld [vmem:[#allocation35 + $0xf8] sm:$0xff]
    %v4227 = vld [vmem:[#allocation37] sm:$0x1]
    %v4229 = vperm.slane %v4227, 0
    %4231 = vmatpush.msra.mxu0 %v4210
    %4232 = vmatpush.msra.mxu0 %v4209
    %4233 = vmatpush.msra.mxu0 %v4208
    %4234 = vmatpush.msra.mxu0 %v4207
    %4235 = vmatpush.msra.mxu0 %v4206
    %4236 = vmatpush.msra.mxu0 %v4205
    %4237 = vmatpush.msra.mxu0 %v4204
    %4238 = vmatpush.msra.mxu0 %v4203
    %4239 = vmatpush.msra.mxu0 %v4202
    %4240 = vmatpush.msra.mxu0 %v4201
    %4241 = vmatpush.msra.mxu0 %v4200
    %4242 = vmatpush.msra.mxu0 %v4199
    %4243 = vmatpush.msra.mxu0 %v4198
    %4244 = vmatpush.msra.mxu0 %v4197
    %4245 = vmatpush.msra.mxu0 %v4196
    %4246 = vmatpush.msra.mxu0 %v4195
    %4247 = vmatmul.f32.gmra.mxu0 %v4193
    %v4248 = vpop.f32.mrf.mxu0
    %v4249 = vadd.f32 %v4229, %v4248
    %4250 = vdwg.mxu0
    %4251 = vmatpush.msra.mxu0 %v4226
    %4252 = vmatpush.msra.mxu0 %v4225
    %4253 = vmatpush.msra.mxu0 %v4224
    %4254 = vmatpush.msra.mxu0 %v4223
    %4255 = vmatpush.msra.mxu0 %v4222
    %4256 = vmatpush.msra.mxu0 %v4221
    %4257 = vmatpush.msra.mxu0 %v4220
    %4258 = vmatpush.msra.mxu0 %v4219
    %4259 = vmatpush.msra.mxu0 %v4218
    %4260 = vmatpush.msra.mxu0 %v4217
    %4261 = vmatpush.msra.mxu0 %v4216
    %4262 = vmatpush.msra.mxu0 %v4215
    %4263 = vmatpush.msra.mxu0 %v4214
    %4264 = vmatpush.msra.mxu0 %v4213
    %4265 = vmatpush.msra.mxu0 %v4212
    %4266 = vmatpush.msra.mxu0 %v4211
    %4267 = vmatmul.f32.gmra.mxu0 %v4194
    %v4268 = vpop.f32.mrf.mxu0
    %v4269 = vadd.f32 %v4249, %v4268
    %4270 = vdwg.mxu0
    %v4271 = vld [vmem:[#allocation38] sm:$0xff]
    %v4272 = vld [vmem:[#allocation38 + $0x8] sm:$0xff]
    %v4273 = vld [vmem:[#allocation38 + $0x10] sm:$0xff]
    %v4274 = vld [vmem:[#allocation38 + $0x18] sm:$0xff]
    %v4275 = vld [vmem:[#allocation38 + $0x20] sm:$0xff]
    %v4276 = vld [vmem:[#allocation38 + $0x28] sm:$0xff]
    %v4277 = vld [vmem:[#allocation38 + $0x30] sm:$0xff]
    %v4278 = vld [vmem:[#allocation38 + $0x38] sm:$0xff]
    %v4279 = vld [vmem:[#allocation38 + $0x40] sm:$0xff]
    %v4280 = vld [vmem:[#allocation38 + $0x48] sm:$0xff]
    %v4281 = vld [vmem:[#allocation38 + $0x50] sm:$0xff]
    %v4282 = vld [vmem:[#allocation38 + $0x58] sm:$0xff]
    %v4283 = vld [vmem:[#allocation38 + $0x60] sm:$0xff]
    %v4284 = vld [vmem:[#allocation38 + $0x68] sm:$0xff]
    %v4285 = vld [vmem:[#allocation38 + $0x70] sm:$0xff]
    %v4286 = vld [vmem:[#allocation38 + $0x78] sm:$0xff]
    %v4287 = vld [vmem:[#allocation40] sm:$0x1]
    %v4289 = vperm.slane %v4287, 0
    %4291 = vmatpush.msra.mxu0 %v4286
    %4292 = vmatpush.msra.mxu0 %v4285
    %4293 = vmatpush.msra.mxu0 %v4284
    %4294 = vmatpush.msra.mxu0 %v4283
    %4295 = vmatpush.msra.mxu0 %v4282
    %4296 = vmatpush.msra.mxu0 %v4281
    %4297 = vmatpush.msra.mxu0 %v4280
    %4298 = vmatpush.msra.mxu0 %v4279
    %4299 = vmatpush.msra.mxu0 %v4278
    %4300 = vmatpush.msra.mxu0 %v4277
    %4301 = vmatpush.msra.mxu0 %v4276
    %4302 = vmatpush.msra.mxu0 %v4275
    %4303 = vmatpush.msra.mxu0 %v4274
    %4304 = vmatpush.msra.mxu0 %v4273
    %4305 = vmatpush.msra.mxu0 %v4272
    %4306 = vmatpush.msra.mxu0 %v4271
    %4307 = vmatmul.f32.gmra.mxu0 %v4269
    %v4308 = vpop.f32.mrf.mxu0
    %v4309 = vadd.f32 %v4289, %v4308
    %4310 = vdwg.mxu0
    %4311 = vst [vmem:[#allocation41] sm:$0x3] %v4309
    // Predicated region
    $region206: #{auto_edcoder_forward.1} parent=1 // pred_check
      _
    $region207: #{auto_edcoder_forward.1} parent=1 // pred_check_branch
      %4313 = sbr.rel (0) target = $region209
    $region208: #{auto_edcoder_forward.1} parent=1 // pred_region
      %4315 = vsyncadd [#allocation4], 0
      %s4317 = sshll.u32 [#allocation41], 4
      %s4318 = int_to_ptr.vmem [resolvable:$true] %s4317
      %s4319 = sshll.u32 %s26, 4
      %s4320 = int_to_ptr.hbm [resolvable:$true] %s4319
      %4322 = dma.vmem_to_hbm [thread:$0]  %s4318, 32, %s4320, [#allocation4]
    $region209: #{auto_edcoder_forward.1} parent=1 // pred_fallthru
      _
    // Predicated region
    $region210: #{auto_edcoder_forward.1} parent=1 // pred_check
      _
    $region211: #{auto_edcoder_forward.1} parent=1 // pred_check_branch
      %4324 = sbr.rel (0) target = $region213
    $region212: #{auto_edcoder_forward.1} parent=1 // pred_region
      %4326 = dma.done [#allocation4], 32
    $region213: #{auto_edcoder_forward.1} parent=1 // pred_fallthru
      _
    %4327 = vsyncpa [#allocation3], 1
    %4328 = vsyncpa [#allocation6], 1
    %4329 = vsyncpa [#allocation9], 1
    %4330 = vsyncpa [#allocation12], 1
    %4331 = vsyncpa [#allocation15], 1
    %4332 = vsyncpa [#allocation18], 1
    %4333 = vsyncpa [#allocation21], 1
    %4334 = vsyncpa [#allocation24], 1
    %4335 = vsyncpa [#allocation27], 1
    %4336 = vsyncpa [#allocation30], 1
    %4337 = vsyncpa [#allocation33], 1
    %4338 = vsyncpa [#allocation36], 1
    %4339 = vsyncpa [#allocation39], 1
    %4340 = vsyncpa [#allocation4], 1

</llo_original>
